<compile_context>
chip_gen: v5e
topology: v5e:2x2
jax: 0.10.0
libtpu: 0.0.40
codegen_flags: <defaults>
</compile_context>

<pallas_src>
import functools

import jax
import jax.numpy as jnp
import numpy as np
from jax.experimental import pallas as pl
from jax.experimental.pallas import tpu as pltpu

# ---- MelSpectrogram hyper-parameters (from the module's __init__) ----------
N_FFT = 512
HOP = 256
N_MELS = 80
SAMPLE_RATE = 16000           # torchaudio.transforms.MelSpectrogram default
N_FREQS = N_FFT // 2 + 1      # 257 onesided rfft bins
NFP = 264                     # per-half freq rows padded to a multiple of 8 (sublane)


# ---------------------------------------------------------------------------
# Deterministic parameter construction (windowed DFT basis, mel filterbank)
# ---------------------------------------------------------------------------
def make_windowed_dft_basis():
    """(2*NFP, N_FFT) bf16: rows [0:257] = hann*cos, rows [NFP:NFP+257] = -hann*sin."""
    n = np.arange(N_FFT)[:, None].astype(np.float64)
    k = np.arange(N_FREQS)[None, :].astype(np.float64)
    ang = 2.0 * np.pi * n * k / N_FFT
    cos_m = np.cos(ang)                       # (512, 257)
    sin_m = -np.sin(ang)                      # sign irrelevant for |X|
    # torch.hann_window(512), periodic=True
    win = 0.5 - 0.5 * np.cos(2.0 * np.pi * np.arange(N_FFT).astype(np.float64) / N_FFT)
    cw = (win[:, None] * cos_m).T             # (257, 512)
    sw = (win[:, None] * sin_m).T
    basis = np.zeros((2 * NFP, N_FFT), np.float32)
    basis[:N_FREQS, :] = cw.astype(np.float32)
    basis[NFP:NFP + N_FREQS, :] = sw.astype(np.float32)
    return jnp.asarray(basis, dtype=jnp.bfloat16)


def make_mel_filterbank_t():
    """(N_MELS, NFP) f32 mel filterbank, transposed; matches torchaudio defaults
    (norm=None, mel_scale='htk', f_min=0, f_max=sr/2)."""
    f_min, f_max = 0.0, SAMPLE_RATE / 2.0
    all_freqs = np.linspace(0.0, SAMPLE_RATE // 2, N_FREQS)

    def hz_to_mel(f):
        return 2595.0 * np.log10(1.0 + f / 700.0)

    def mel_to_hz(m):
        return 700.0 * (10.0 ** (m / 2595.0) - 1.0)

    m_pts = np.linspace(hz_to_mel(f_min), hz_to_mel(f_max), N_MELS + 2)
    f_pts = mel_to_hz(m_pts)
    f_diff = f_pts[1:] - f_pts[:-1]                      # (n_mels+1,)
    slopes = f_pts[None, :] - all_freqs[:, None]         # (n_freqs, n_mels+2)
    down = -slopes[:, :-2] / f_diff[:-1]
    up = slopes[:, 2:] / f_diff[1:]
    fb = np.maximum(0.0, np.minimum(down, up))           # (n_freqs, n_mels)

    fb_t = np.zeros((N_MELS, NFP), np.float32)
    fb_t[:, :N_FREQS] = fb.T.astype(np.float32)
    return jnp.asarray(fb_t)


# ---------------------------------------------------------------------------
# Pallas kernel: one bf16 DFT matmul -> magnitude -> f32 mel matmul -> mean/std
# ---------------------------------------------------------------------------
def freq_mean_spread_kernel(frames_ref, basis_ref, fb_ref, out_ref):
    # frames_ref: (N_FFT, tn) bf16, basis_ref: (2*NFP, N_FFT) bf16 (window folded in)
    spec = jnp.dot(basis_ref[...], frames_ref[...],
                   preferred_element_type=jnp.float32)          # (2*NFP, tn) f32
    re = spec[:NFP, :]
    im = spec[NFP:, :]
    mag = jnp.sqrt(re * re + im * im)                            # power=1 spectrum
    mel = jnp.dot(fb_ref[...], mag,
                  preferred_element_type=jnp.float32)            # (N_MELS, tn) f32

    mean = jnp.sum(mel, axis=0, keepdims=True) * (1.0 / N_MELS)  # (1, tn)
    d = mel - mean
    # torch.std default: unbiased (ddof = 1); two-pass form for numerical safety
    var = jnp.sum(d * d, axis=0, keepdims=True) * (1.0 / (N_MELS - 1))
    std = jnp.sqrt(var)

    # Lane-dense (2, tn) output block: row 0 = mean, row 1 = std.
    row = jax.lax.broadcasted_iota(jnp.int32, out_ref.shape, 0)
    out_ref[...] = jnp.where(row == 0, mean, std)


@functools.partial(jax.jit, static_argnames=("tile_n",))
def freq_mean_spread(wavs, basis, fb_t, *, tile_n=256):
    """wavs: (B, T) float32  ->  (B, 2, n_frames) float32.

    tile_n: frames per grid step (sweep 128/256/512).  For best v7x utilization keep
    B*n_frames large enough that the grid has >= 2 steps (both TensorCores busy).
    """
    B, T = wavs.shape
    n_frames = (T - N_FFT) // HOP + 1              # center=False framing
    # --- framing glue (plain JAX) ---
    # TODO(synk): hop==n_fft//2, so frames could be fed as two adjacent 256-sample
    # blocks via two in_specs to avoid the 2x gather duplication in HBM; kernel is
    # MXU-bound so this is left as-is.
    idx = jnp.arange(n_frames)[:, None] * HOP + jnp.arange(N_FFT)[None, :]
    frames = wavs[:, idx].reshape(B * n_frames, N_FFT)            # (N, 512)
    N = B * n_frames
    n_pad = ((N + tile_n - 1) // tile_n) * tile_n

    frames_t = frames.T.astype(jnp.bfloat16)                      # (512, N) bf16
    frames_t = jnp.pad(frames_t, ((0, 0), (0, n_pad - N)))        # zero frames -> 0/0 out

    out = pl.pallas_call(
        freq_mean_spread_kernel,
        out_shape=jax.ShapeDtypeStruct((2, n_pad), jnp.float32),
        grid_spec=pltpu.PrefetchScalarGridSpec(
            num_scalar_prefetch=0,
            grid=(n_pad // tile_n,),
            in_specs=[
                pl.BlockSpec((N_FFT, tile_n), lambda i: (0, i)),       # frames^T tile
                pl.BlockSpec((2 * NFP, N_FFT), lambda i: (0, 0)),      # windowed DFT basis
                pl.BlockSpec((N_MELS, NFP), lambda i: (0, 0)),         # mel fb^T
            ],
            out_specs=pl.BlockSpec((2, tile_n), lambda i: (0, i)),     # lane-dense output
        ),
        compiler_params=pltpu.CompilerParams(
            dimension_semantics=("parallel",)
        ),
    )(frames_t, basis, fb_t)

    # (2, N) -> (2, B, n_frames) -> (B, 2, n_frames)   (matches torch.stack(dim=1))
    return jnp.transpose(out[:, :N].reshape(2, B, n_frames), (1, 0, 2))


# TODO(synk): `normalise=True` branch loads 'ms_mean.pt'/'ms_std.pt' from disk;
# no checkpoint load here, so only normalise=False semantics are implemented.


if __name__ == "__main__":
    key = jax.random.PRNGKey(0)
    B = 2
    n_frames = 8
    T = N_FFT + HOP * (n_frames - 1)              # 2304 samples -> 8 frames (center=False)
    wavs = jax.random.normal(key, (B, T), dtype=jnp.float32)

    basis = make_windowed_dft_basis()
    fb_t = make_mel_filterbank_t()

    out = freq_mean_spread(wavs, basis, fb_t, tile_n=256)
    out = jax.block_until_ready(out)

    # pure-JAX reference (same bf16 basis / bf16 frames, f32 accumulation)
    idx = jnp.arange(n_frames)[:, None] * HOP + jnp.arange(N_FFT)[None, :]
    frames = wavs[:, idx].reshape(B * n_frames, N_FFT).astype(jnp.bfloat16)
    spec = jnp.dot(frames, basis.T, preferred_element_type=jnp.float32)   # (N, 2*NFP)
    re = spec[:, :NFP]
    im = spec[:, NFP:]
    mel = jnp.dot(jnp.sqrt(re * re + im * im), fb_t.T,
                  preferred_element_type=jnp.float32)                     # (N, 80)
    mean_ref = jnp.mean(mel, axis=1)
    std_ref = jnp.std(mel, axis=1, ddof=1)
    ref = jnp.transpose(
        jnp.stack([mean_ref, std_ref], axis=1).reshape(B, n_frames, 2), (0, 2, 1)
    )

    assert out.shape == (B, 2, n_frames)
    assert jnp.allclose(out, ref, rtol=5e-3, atol=5e-3), (
        float(jnp.max(jnp.abs(out - ref)))
    )

    print("KERNEL_OK")
</pallas_src>

<mosaic_0001>
module attributes {stable_mosaic.version = 11 : i64} {
  func.func @freq_mean_spread_kernel(%arg0: i32, %arg1: memref<512x256xbf16, #tpu.memory_space<vmem>>, %arg2: memref<528x512xbf16, #tpu.memory_space<vmem>>, %arg3: memref<80x264xf32, #tpu.memory_space<vmem>>, %arg4: memref<2x256xf32, #tpu.memory_space<vmem>>) attributes {dimension_semantics = [#tpu.dimension_semantics<parallel>], iteration_bounds = array<i64: 1>, scalar_prefetch = 0 : i64, scratch_operands = 0 : i64, tpu.core_type = #tpu.core_type<tc>, window_params = [{transform_indices = @transform_0, window_bounds = array<i64: 512, 256>}, {pipeline_mode = #tpu.pipeline_mode<synchronous>, transform_indices = @transform_1, window_bounds = array<i64: 528, 512>}, {pipeline_mode = #tpu.pipeline_mode<synchronous>, transform_indices = @transform_2, window_bounds = array<i64: 80, 264>}, {transform_indices = @transform_3, window_bounds = array<i64: 2, 256>}]} {
    %c0 = arith.constant 0 : index
    %c0_0 = arith.constant 0 : index
    %0 = vector.load %arg2[%c0, %c0_0] : memref<528x512xbf16, #tpu.memory_space<vmem>>, vector<528x512xbf16>
    %c0_1 = arith.constant 0 : index
    %c0_2 = arith.constant 0 : index
    %1 = vector.load %arg1[%c0_1, %c0_2] : memref<512x256xbf16, #tpu.memory_space<vmem>>, vector<512x256xbf16>
    %cst = arith.constant dense<0.000000e+00> : vector<528x256xf32>
    %2 = tpu.matmul %0, %1, %cst {dimension_numbers = #tpu.dot_dimension_numbers<[1], [0], [0], [1], [0, 0, 1, 1], [], []>} : vector<528x512xbf16>, vector<512x256xbf16>, vector<528x256xf32> -> vector<528x256xf32>
    %3 = vector.extract_strided_slice %2 {offsets = [0, 0], sizes = [264, 256], strides = [1, 1]} : vector<528x256xf32> to vector<264x256xf32>
    %4 = vector.extract_strided_slice %2 {offsets = [264, 0], sizes = [264, 256], strides = [1, 1]} : vector<528x256xf32> to vector<264x256xf32>
    %5 = arith.mulf %3, %3 : vector<264x256xf32>
    %6 = arith.mulf %4, %4 : vector<264x256xf32>
    %7 = arith.addf %5, %6 : vector<264x256xf32>
    %8 = math.sqrt %7 : vector<264x256xf32>
    %c0_3 = arith.constant 0 : index
    %c0_4 = arith.constant 0 : index
    %9 = vector.load %arg3[%c0_3, %c0_4] : memref<80x264xf32, #tpu.memory_space<vmem>>, vector<80x264xf32>
    %cst_5 = arith.constant dense<0.000000e+00> : vector<80x256xf32>
    %10 = tpu.matmul %9, %8, %cst_5 {dimension_numbers = #tpu.dot_dimension_numbers<[1], [0], [0], [1], [0, 0, 1, 1], [], []>} : vector<80x264xf32>, vector<264x256xf32>, vector<80x256xf32> -> vector<80x256xf32>
    %cst_6 = arith.constant dense<0.000000e+00> : vector<256xf32>
    %11 = vector.multi_reduction <add>, %10, %cst_6 [0] : vector<80x256xf32> to vector<256xf32>
    %12 = vector.shape_cast %11 : vector<256xf32> to vector<1x256xf32>
    %cst_7 = arith.constant 1.250000e-02 : f32
    %13 = vector.broadcast %cst_7 : f32 to vector<1x256xf32>
    %14 = arith.mulf %12, %13 : vector<1x256xf32>
    %15 = vector.broadcast %14 : vector<1x256xf32> to vector<80x256xf32>
    %16 = arith.subf %10, %15 : vector<80x256xf32>
    %17 = arith.mulf %16, %16 : vector<80x256xf32>
    %cst_8 = arith.constant dense<0.000000e+00> : vector<256xf32>
    %18 = vector.multi_reduction <add>, %17, %cst_8 [0] : vector<80x256xf32> to vector<256xf32>
    %19 = vector.shape_cast %18 : vector<256xf32> to vector<1x256xf32>
    %cst_9 = arith.constant 0.0126582282 : f32
    %20 = vector.broadcast %cst_9 : f32 to vector<1x256xf32>
    %21 = arith.mulf %19, %20 : vector<1x256xf32>
    %22 = math.sqrt %21 : vector<1x256xf32>
    %23 = tpu.iota {dimensions = array<i32: 0>} : vector<2x256xi32>
    %c0_i32 = arith.constant 0 : i32
    %24 = vector.broadcast %c0_i32 : i32 to vector<2x256xi32>
    %25 = arith.cmpi eq, %23, %24 : vector<2x256xi32>
    %26 = vector.shape_cast %14 : vector<1x256xf32> to vector<1x256xf32>
    %27 = vector.broadcast %26 : vector<1x256xf32> to vector<2x256xf32>
    %28 = vector.shape_cast %22 : vector<1x256xf32> to vector<1x256xf32>
    %29 = vector.broadcast %28 : vector<1x256xf32> to vector<2x256xf32>
    %30 = arith.select %25, %27, %29 : vector<2x256xi1>, vector<2x256xf32>
    %c0_10 = arith.constant 0 : index
    %c0_11 = arith.constant 0 : index
    %31 = vector.load %arg4[%c0_10, %c0_11] : memref<2x256xf32, #tpu.memory_space<vmem>>, vector<2x256xf32>
    tpu.vector_store %arg4[%c0_10, %c0_11], %30 {strides = array<i32>} : memref<2x256xf32, #tpu.memory_space<vmem>>, vector<2x256xf32>,
    return
  }
  func.func @transform_0(%arg0: i32) -> (i32, i32) {
    %c0_i32 = arith.constant 0 : i32
    %c0_i32_0 = arith.constant 0 : i32
    return %c0_i32, %arg0 : i32, i32
  }
  func.func @transform_1(%arg0: i32) -> (i32, i32) {
    %c0_i32 = arith.constant 0 : i32
    %c0_i32_0 = arith.constant 0 : i32
    %c0_i32_1 = arith.constant 0 : i32
    return %c0_i32, %c0_i32_0 : i32, i32
  }
  func.func @transform_2(%arg0: i32) -> (i32, i32) {
    %c0_i32 = arith.constant 0 : i32
    %c0_i32_0 = arith.constant 0 : i32
    %c0_i32_1 = arith.constant 0 : i32
    return %c0_i32, %c0_i32_0 : i32, i32
  }
  func.func @transform_3(%arg0: i32) -> (i32, i32) {
    %c0_i32 = arith.constant 0 : i32
    %c0_i32_0 = arith.constant 0 : i32
    return %c0_i32, %arg0 : i32, i32
  }
}

</mosaic_0001>

<llo_original>
// kernel: freq_mean_spread.1
$region0: #{freq_mean_spread.1}
  #allocation0 [shape = 'u32[]', space=smem, size = 0x4, offset = 0x4, fixed_abs, tag = 'smem constant byte address 0x4 - core index']
  #allocation1 [shape = 'u32[72,128]{1,0:T(1,128)}', space=vmem, size = 0x9000, scoped, tag = 'internal scratch']
  %s0 = inlined_call_operand.vmem [shape: bf16[512,256], index: 0, kind: input, shape index: {}]
  %s1 = inlined_call_operand.vmem [shape: bf16[528,512], index: 1, kind: input, shape index: {}]
  %s2 = inlined_call_operand.vmem [shape: f32[80,264], index: 2, kind: input, shape index: {}]
  %s3 = inlined_call_operand.vmem [shape: f32[2,256], index: 3, kind: output, shape index: {}]
  %s4 = sld [smem:[#allocation0]]
  $region22: #{freq_mean_spread.1} parent=0
    _
  %s6 = ssub.s32 1, %s4
  %s7 = scalar_select 0, %s6, %s4
  // Predicated region
  $region2: #{freq_mean_spread.1} parent=0 // pred_check
    _
  $region3: #{freq_mean_spread.1} parent=0 // pred_check_branch
    %9 = sbr.rel (0) target = $region5
  $region4: #{freq_mean_spread.1} parent=0 // pred_region
    _
  $region5: #{freq_mean_spread.1} parent=0 // pred_fallthru
    _
  // Predicated region
  $region6: #{freq_mean_spread.1} parent=0 // pred_check
    _
  $region7: #{freq_mean_spread.1} parent=0 // pred_check_branch
    %11 = sbr.rel (0) target = $region9
  $region8: #{freq_mean_spread.1} parent=0 // pred_region
    _
  $region9: #{freq_mean_spread.1} parent=0 // pred_fallthru
    _
  // Predicated region
  $region10: #{freq_mean_spread.1} parent=0 // pred_check
    _
  $region11: #{freq_mean_spread.1} parent=0 // pred_check_branch
    %13 = sbr.rel (0) target = $region13
  $region12: #{freq_mean_spread.1} parent=0 // pred_region
    _
  $region13: #{freq_mean_spread.1} parent=0 // pred_fallthru
    _
  %v14 = vld [vmem:[%s1] sm:$0xff]
  %v15 = vld [vmem:[%s1 + $0x8] sm:$0xff]
  %v16 = vld [vmem:[%s1 + $0x10] sm:$0xff]
  %v17 = vld [vmem:[%s1 + $0x18] sm:$0xff]
  %v18 = vld [vmem:[%s1 + $0x20] sm:$0xff]
  %v19 = vld [vmem:[%s1 + $0x28] sm:$0xff]
  %v20 = vld [vmem:[%s1 + $0x30] sm:$0xff]
  %v21 = vld [vmem:[%s1 + $0x38] sm:$0xff]
  %v22 = vld [vmem:[%s1 + $0x40] sm:$0xff]
  %v23 = vld [vmem:[%s1 + $0x48] sm:$0xff]
  %v24 = vld [vmem:[%s1 + $0x50] sm:$0xff]
  %v25 = vld [vmem:[%s1 + $0x58] sm:$0xff]
  %v26 = vld [vmem:[%s1 + $0x60] sm:$0xff]
  %v27 = vld [vmem:[%s1 + $0x68] sm:$0xff]
  %v28 = vld [vmem:[%s1 + $0x70] sm:$0xff]
  %v29 = vld [vmem:[%s1 + $0x78] sm:$0xff]
  %v30 = vld [vmem:[%s1 + $0x80] sm:$0xff]
  %v31 = vld [vmem:[%s1 + $0x88] sm:$0xff]
  %v32 = vld [vmem:[%s1 + $0x90] sm:$0xff]
  %v33 = vld [vmem:[%s1 + $0x98] sm:$0xff]
  %v34 = vld [vmem:[%s1 + $0xa0] sm:$0xff]
  %v35 = vld [vmem:[%s1 + $0xa8] sm:$0xff]
  %v36 = vld [vmem:[%s1 + $0xb0] sm:$0xff]
  %v37 = vld [vmem:[%s1 + $0xb8] sm:$0xff]
  %v38 = vld [vmem:[%s1 + $0xc0] sm:$0xff]
  %v39 = vld [vmem:[%s1 + $0xc8] sm:$0xff]
  %v40 = vld [vmem:[%s1 + $0xd0] sm:$0xff]
  %v41 = vld [vmem:[%s1 + $0xd8] sm:$0xff]
  %v42 = vld [vmem:[%s1 + $0xe0] sm:$0xff]
  %v43 = vld [vmem:[%s1 + $0xe8] sm:$0xff]
  %v44 = vld [vmem:[%s1 + $0xf0] sm:$0xff]
  %v45 = vld [vmem:[%s1 + $0xf8] sm:$0xff]
  %v46 = vld [vmem:[%s1 + $0x100] sm:$0xff]
  %v47 = vld [vmem:[%s1 + $0x108] sm:$0xff]
  %v48 = vld [vmem:[%s1 + $0x110] sm:$0xff]
  %v49 = vld [vmem:[%s1 + $0x118] sm:$0xff]
  %v50 = vld [vmem:[%s1 + $0x120] sm:$0xff]
  %v51 = vld [vmem:[%s1 + $0x128] sm:$0xff]
  %v52 = vld [vmem:[%s1 + $0x130] sm:$0xff]
  %v53 = vld [vmem:[%s1 + $0x138] sm:$0xff]
  %v54 = vld [vmem:[%s1 + $0x140] sm:$0xff]
  %v55 = vld [vmem:[%s1 + $0x148] sm:$0xff]
  %v56 = vld [vmem:[%s1 + $0x150] sm:$0xff]
  %v57 = vld [vmem:[%s1 + $0x158] sm:$0xff]
  %v58 = vld [vmem:[%s1 + $0x160] sm:$0xff]
  %v59 = vld [vmem:[%s1 + $0x168] sm:$0xff]
  %v60 = vld [vmem:[%s1 + $0x170] sm:$0xff]
  %v61 = vld [vmem:[%s1 + $0x178] sm:$0xff]
  %v62 = vld [vmem:[%s1 + $0x180] sm:$0xff]
  %v63 = vld [vmem:[%s1 + $0x188] sm:$0xff]
  %v64 = vld [vmem:[%s1 + $0x190] sm:$0xff]
  %v65 = vld [vmem:[%s1 + $0x198] sm:$0xff]
  %v66 = vld [vmem:[%s1 + $0x1a0] sm:$0xff]
  %v67 = vld [vmem:[%s1 + $0x1a8] sm:$0xff]
  %v68 = vld [vmem:[%s1 + $0x1b0] sm:$0xff]
  %v69 = vld [vmem:[%s1 + $0x1b8] sm:$0xff]
  %v70 = vld [vmem:[%s1 + $0x1c0] sm:$0xff]
  %v71 = vld [vmem:[%s1 + $0x1c8] sm:$0xff]
  %v72 = vld [vmem:[%s1 + $0x1d0] sm:$0xff]
  %v73 = vld [vmem:[%s1 + $0x1d8] sm:$0xff]
  %v74 = vld [vmem:[%s1 + $0x1e0] sm:$0xff]
  %v75 = vld [vmem:[%s1 + $0x1e8] sm:$0xff]
  %v76 = vld [vmem:[%s1 + $0x1f0] sm:$0xff]
  %v77 = vld [vmem:[%s1 + $0x1f8] sm:$0xff]
  %v78 = vld [vmem:[%s1 + $0x200] sm:$0xff]
  %v79 = vld [vmem:[%s1 + $0x208] sm:$0xff]
  %v80 = vld [vmem:[%s1 + $0x210] sm:$0xff]
  %v81 = vld [vmem:[%s1 + $0x218] sm:$0xff]
  %v82 = vld [vmem:[%s1 + $0x220] sm:$0xff]
  %v83 = vld [vmem:[%s1 + $0x228] sm:$0xff]
  %v84 = vld [vmem:[%s1 + $0x230] sm:$0xff]
  %v85 = vld [vmem:[%s1 + $0x238] sm:$0xff]
  %v86 = vld [vmem:[%s1 + $0x240] sm:$0xff]
  %v87 = vld [vmem:[%s1 + $0x248] sm:$0xff]
  %v88 = vld [vmem:[%s1 + $0x250] sm:$0xff]
  %v89 = vld [vmem:[%s1 + $0x258] sm:$0xff]
  %v90 = vld [vmem:[%s1 + $0x260] sm:$0xff]
  %v91 = vld [vmem:[%s1 + $0x268] sm:$0xff]
  %v92 = vld [vmem:[%s1 + $0x270] sm:$0xff]
  %v93 = vld [vmem:[%s1 + $0x278] sm:$0xff]
  %v94 = vld [vmem:[%s1 + $0x280] sm:$0xff]
  %v95 = vld [vmem:[%s1 + $0x288] sm:$0xff]
  %v96 = vld [vmem:[%s1 + $0x290] sm:$0xff]
  %v97 = vld [vmem:[%s1 + $0x298] sm:$0xff]
  %v98 = vld [vmem:[%s1 + $0x2a0] sm:$0xff]
  %v99 = vld [vmem:[%s1 + $0x2a8] sm:$0xff]
  %v100 = vld [vmem:[%s1 + $0x2b0] sm:$0xff]
  %v101 = vld [vmem:[%s1 + $0x2b8] sm:$0xff]
  %v102 = vld [vmem:[%s1 + $0x2c0] sm:$0xff]
  %v103 = vld [vmem:[%s1 + $0x2c8] sm:$0xff]
  %v104 = vld [vmem:[%s1 + $0x2d0] sm:$0xff]
  %v105 = vld [vmem:[%s1 + $0x2d8] sm:$0xff]
  %v106 = vld [vmem:[%s1 + $0x2e0] sm:$0xff]
  %v107 = vld [vmem:[%s1 + $0x2e8] sm:$0xff]
  %v108 = vld [vmem:[%s1 + $0x2f0] sm:$0xff]
  %v109 = vld [vmem:[%s1 + $0x2f8] sm:$0xff]
  %v110 = vld [vmem:[%s1 + $0x300] sm:$0xff]
  %v111 = vld [vmem:[%s1 + $0x308] sm:$0xff]
  %v112 = vld [vmem:[%s1 + $0x310] sm:$0xff]
  %v113 = vld [vmem:[%s1 + $0x318] sm:$0xff]
  %v114 = vld [vmem:[%s1 + $0x320] sm:$0xff]
  %v115 = vld [vmem:[%s1 + $0x328] sm:$0xff]
  %v116 = vld [vmem:[%s1 + $0x330] sm:$0xff]
  %v117 = vld [vmem:[%s1 + $0x338] sm:$0xff]
  %v118 = vld [vmem:[%s1 + $0x340] sm:$0xff]
  %v119 = vld [vmem:[%s1 + $0x348] sm:$0xff]
  %v120 = vld [vmem:[%s1 + $0x350] sm:$0xff]
  %v121 = vld [vmem:[%s1 + $0x358] sm:$0xff]
  %v122 = vld [vmem:[%s1 + $0x360] sm:$0xff]
  %v123 = vld [vmem:[%s1 + $0x368] sm:$0xff]
  %v124 = vld [vmem:[%s1 + $0x370] sm:$0xff]
  %v125 = vld [vmem:[%s1 + $0x378] sm:$0xff]
  %v126 = vld [vmem:[%s1 + $0x380] sm:$0xff]
  %v127 = vld [vmem:[%s1 + $0x388] sm:$0xff]
  %v128 = vld [vmem:[%s1 + $0x390] sm:$0xff]
  %v129 = vld [vmem:[%s1 + $0x398] sm:$0xff]
  %v130 = vld [vmem:[%s1 + $0x3a0] sm:$0xff]
  %v131 = vld [vmem:[%s1 + $0x3a8] sm:$0xff]
  %v132 = vld [vmem:[%s1 + $0x3b0] sm:$0xff]
  %v133 = vld [vmem:[%s1 + $0x3b8] sm:$0xff]
  %v134 = vld [vmem:[%s1 + $0x3c0] sm:$0xff]
  %v135 = vld [vmem:[%s1 + $0x3c8] sm:$0xff]
  %v136 = vld [vmem:[%s1 + $0x3d0] sm:$0xff]
  %v137 = vld [vmem:[%s1 + $0x3d8] sm:$0xff]
  %v138 = vld [vmem:[%s1 + $0x3e0] sm:$0xff]
  %v139 = vld [vmem:[%s1 + $0x3e8] sm:$0xff]
  %v140 = vld [vmem:[%s1 + $0x3f0] sm:$0xff]
  %v141 = vld [vmem:[%s1 + $0x3f8] sm:$0xff]
  %v142 = vld [vmem:[%s1 + $0x400] sm:$0xff]
  %v143 = vld [vmem:[%s1 + $0x408] sm:$0xff]
  %v144 = vld [vmem:[%s1 + $0x410] sm:$0xff]
  %v145 = vld [vmem:[%s1 + $0x418] sm:$0xff]
  %v146 = vld [vmem:[%s0] sm:$0xff]
  %v147 = vld [vmem:[%s0 + $0x8] sm:$0xff]
  %v148 = vld [vmem:[%s0 + $0x10] sm:$0xff]
  %v149 = vld [vmem:[%s0 + $0x18] sm:$0xff]
  %v150 = vld [vmem:[%s0 + $0x20] sm:$0xff]
  %v151 = vld [vmem:[%s0 + $0x28] sm:$0xff]
  %v152 = vld [vmem:[%s0 + $0x30] sm:$0xff]
  %v153 = vld [vmem:[%s0 + $0x38] sm:$0xff]
  %v154 = vld [vmem:[%s0 + $0x40] sm:$0xff]
  %v155 = vld [vmem:[%s0 + $0x48] sm:$0xff]
  %v156 = vld [vmem:[%s0 + $0x50] sm:$0xff]
  %v157 = vld [vmem:[%s0 + $0x58] sm:$0xff]
  %v158 = vld [vmem:[%s0 + $0x60] sm:$0xff]
  %v159 = vld [vmem:[%s0 + $0x68] sm:$0xff]
  %v160 = vld [vmem:[%s0 + $0x70] sm:$0xff]
  %v161 = vld [vmem:[%s0 + $0x78] sm:$0xff]
  %v162 = vld [vmem:[%s0 + $0x80] sm:$0xff]
  %v163 = vld [vmem:[%s0 + $0x88] sm:$0xff]
  %v164 = vld [vmem:[%s0 + $0x90] sm:$0xff]
  %v165 = vld [vmem:[%s0 + $0x98] sm:$0xff]
  %v166 = vld [vmem:[%s0 + $0xa0] sm:$0xff]
  %v167 = vld [vmem:[%s0 + $0xa8] sm:$0xff]
  %v168 = vld [vmem:[%s0 + $0xb0] sm:$0xff]
  %v169 = vld [vmem:[%s0 + $0xb8] sm:$0xff]
  %v170 = vld [vmem:[%s0 + $0xc0] sm:$0xff]
  %v171 = vld [vmem:[%s0 + $0xc8] sm:$0xff]
  %v172 = vld [vmem:[%s0 + $0xd0] sm:$0xff]
  %v173 = vld [vmem:[%s0 + $0xd8] sm:$0xff]
  %v174 = vld [vmem:[%s0 + $0xe0] sm:$0xff]
  %v175 = vld [vmem:[%s0 + $0xe8] sm:$0xff]
  %v176 = vld [vmem:[%s0 + $0xf0] sm:$0xff]
  %v177 = vld [vmem:[%s0 + $0xf8] sm:$0xff]
  %v178 = vld [vmem:[%s0 + $0x100] sm:$0xff]
  %v179 = vld [vmem:[%s0 + $0x108] sm:$0xff]
  %v180 = vld [vmem:[%s0 + $0x110] sm:$0xff]
  %v181 = vld [vmem:[%s0 + $0x118] sm:$0xff]
  %v182 = vld [vmem:[%s0 + $0x120] sm:$0xff]
  %v183 = vld [vmem:[%s0 + $0x128] sm:$0xff]
  %v184 = vld [vmem:[%s0 + $0x130] sm:$0xff]
  %v185 = vld [vmem:[%s0 + $0x138] sm:$0xff]
  %v186 = vld [vmem:[%s0 + $0x140] sm:$0xff]
  %v187 = vld [vmem:[%s0 + $0x148] sm:$0xff]
  %v188 = vld [vmem:[%s0 + $0x150] sm:$0xff]
  %v189 = vld [vmem:[%s0 + $0x158] sm:$0xff]
  %v190 = vld [vmem:[%s0 + $0x160] sm:$0xff]
  %v191 = vld [vmem:[%s0 + $0x168] sm:$0xff]
  %v192 = vld [vmem:[%s0 + $0x170] sm:$0xff]
  %v193 = vld [vmem:[%s0 + $0x178] sm:$0xff]
  %v194 = vld [vmem:[%s0 + $0x180] sm:$0xff]
  %v195 = vld [vmem:[%s0 + $0x188] sm:$0xff]
  %v196 = vld [vmem:[%s0 + $0x190] sm:$0xff]
  %v197 = vld [vmem:[%s0 + $0x198] sm:$0xff]
  %v198 = vld [vmem:[%s0 + $0x1a0] sm:$0xff]
  %v199 = vld [vmem:[%s0 + $0x1a8] sm:$0xff]
  %v200 = vld [vmem:[%s0 + $0x1b0] sm:$0xff]
  %v201 = vld [vmem:[%s0 + $0x1b8] sm:$0xff]
  %v202 = vld [vmem:[%s0 + $0x1c0] sm:$0xff]
  %v203 = vld [vmem:[%s0 + $0x1c8] sm:$0xff]
  %v204 = vld [vmem:[%s0 + $0x1d0] sm:$0xff]
  %v205 = vld [vmem:[%s0 + $0x1d8] sm:$0xff]
  %v206 = vld [vmem:[%s0 + $0x1e0] sm:$0xff]
  %v207 = vld [vmem:[%s0 + $0x1e8] sm:$0xff]
  %v208 = vld [vmem:[%s0 + $0x1f0] sm:$0xff]
  %v209 = vld [vmem:[%s0 + $0x1f8] sm:$0xff]
  %v342 = vunpack.c.l.b16 %v14
  %v343 = vunpack.c.h.b16 %v14
  %v344 = vunpack.c.l.b16 %v15
  %v345 = vunpack.c.h.b16 %v15
  %v346 = vunpack.c.l.b16 %v16
  %v347 = vunpack.c.h.b16 %v16
  %v348 = vunpack.c.l.b16 %v17
  %v349 = vunpack.c.h.b16 %v17
  %v350 = vunpack.c.l.b16 %v18
  %v351 = vunpack.c.h.b16 %v18
  %v352 = vunpack.c.l.b16 %v19
  %v353 = vunpack.c.h.b16 %v19
  %v354 = vunpack.c.l.b16 %v20
  %v355 = vunpack.c.h.b16 %v20
  %v356 = vunpack.c.l.b16 %v21
  %v357 = vunpack.c.h.b16 %v21
  %v358 = vunpack.c.l.b16 %v22
  %v359 = vunpack.c.h.b16 %v22
  %v360 = vunpack.c.l.b16 %v23
  %v361 = vunpack.c.h.b16 %v23
  %v362 = vunpack.c.l.b16 %v24
  %v363 = vunpack.c.h.b16 %v24
  %v364 = vunpack.c.l.b16 %v25
  %v365 = vunpack.c.h.b16 %v25
  %v366 = vunpack.c.l.b16 %v26
  %v367 = vunpack.c.h.b16 %v26
  %v368 = vunpack.c.l.b16 %v27
  %v369 = vunpack.c.h.b16 %v27
  %v370 = vunpack.c.l.b16 %v28
  %v371 = vunpack.c.h.b16 %v28
  %v372 = vunpack.c.l.b16 %v29
  %v373 = vunpack.c.h.b16 %v29
  %v374 = vunpack.c.l.b16 %v30
  %v375 = vunpack.c.h.b16 %v30
  %v376 = vunpack.c.l.b16 %v31
  %v377 = vunpack.c.h.b16 %v31
  %v378 = vunpack.c.l.b16 %v32
  %v379 = vunpack.c.h.b16 %v32
  %v380 = vunpack.c.l.b16 %v33
  %v381 = vunpack.c.h.b16 %v33
  %v382 = vunpack.c.l.b16 %v34
  %v383 = vunpack.c.h.b16 %v34
  %v384 = vunpack.c.l.b16 %v35
  %v385 = vunpack.c.h.b16 %v35
  %v386 = vunpack.c.l.b16 %v36
  %v387 = vunpack.c.h.b16 %v36
  %v388 = vunpack.c.l.b16 %v37
  %v389 = vunpack.c.h.b16 %v37
  %v390 = vunpack.c.l.b16 %v38
  %v391 = vunpack.c.h.b16 %v38
  %v392 = vunpack.c.l.b16 %v39
  %v393 = vunpack.c.h.b16 %v39
  %v394 = vunpack.c.l.b16 %v40
  %v395 = vunpack.c.h.b16 %v40
  %v396 = vunpack.c.l.b16 %v41
  %v397 = vunpack.c.h.b16 %v41
  %v398 = vunpack.c.l.b16 %v42
  %v399 = vunpack.c.h.b16 %v42
  %v400 = vunpack.c.l.b16 %v43
  %v401 = vunpack.c.h.b16 %v43
  %v402 = vunpack.c.l.b16 %v44
  %v403 = vunpack.c.h.b16 %v44
  %v404 = vunpack.c.l.b16 %v45
  %v405 = vunpack.c.h.b16 %v45
  %v406 = vunpack.c.l.b16 %v46
  %v407 = vunpack.c.h.b16 %v46
  %v408 = vunpack.c.l.b16 %v47
  %v409 = vunpack.c.h.b16 %v47
  %v410 = vunpack.c.l.b16 %v48
  %v411 = vunpack.c.h.b16 %v48
  %v412 = vunpack.c.l.b16 %v49
  %v413 = vunpack.c.h.b16 %v49
  %v414 = vunpack.c.l.b16 %v50
  %v415 = vunpack.c.h.b16 %v50
  %v416 = vunpack.c.l.b16 %v51
  %v417 = vunpack.c.h.b16 %v51
  %v418 = vunpack.c.l.b16 %v52
  %v419 = vunpack.c.h.b16 %v52
  %v420 = vunpack.c.l.b16 %v53
  %v421 = vunpack.c.h.b16 %v53
  %v422 = vunpack.c.l.b16 %v54
  %v423 = vunpack.c.h.b16 %v54
  %v424 = vunpack.c.l.b16 %v55
  %v425 = vunpack.c.h.b16 %v55
  %v426 = vunpack.c.l.b16 %v56
  %v427 = vunpack.c.h.b16 %v56
  %v428 = vunpack.c.l.b16 %v57
  %v429 = vunpack.c.h.b16 %v57
  %v430 = vunpack.c.l.b16 %v58
  %v431 = vunpack.c.h.b16 %v58
  %v432 = vunpack.c.l.b16 %v59
  %v433 = vunpack.c.h.b16 %v59
  %v434 = vunpack.c.l.b16 %v60
  %v435 = vunpack.c.h.b16 %v60
  %v436 = vunpack.c.l.b16 %v61
  %v437 = vunpack.c.h.b16 %v61
  %v438 = vunpack.c.l.b16 %v62
  %v439 = vunpack.c.h.b16 %v62
  %v440 = vunpack.c.l.b16 %v63
  %v441 = vunpack.c.h.b16 %v63
  %v442 = vunpack.c.l.b16 %v64
  %v443 = vunpack.c.h.b16 %v64
  %v444 = vunpack.c.l.b16 %v65
  %v445 = vunpack.c.h.b16 %v65
  %v446 = vunpack.c.l.b16 %v66
  %v447 = vunpack.c.h.b16 %v66
  %v448 = vunpack.c.l.b16 %v67
  %v449 = vunpack.c.h.b16 %v67
  %v450 = vunpack.c.l.b16 %v68
  %v451 = vunpack.c.h.b16 %v68
  %v452 = vunpack.c.l.b16 %v69
  %v453 = vunpack.c.h.b16 %v69
  %v454 = vunpack.c.l.b16 %v70
  %v455 = vunpack.c.h.b16 %v70
  %v456 = vunpack.c.l.b16 %v71
  %v457 = vunpack.c.h.b16 %v71
  %v458 = vunpack.c.l.b16 %v72
  %v459 = vunpack.c.h.b16 %v72
  %v460 = vunpack.c.l.b16 %v73
  %v461 = vunpack.c.h.b16 %v73
  %v462 = vunpack.c.l.b16 %v74
  %v463 = vunpack.c.h.b16 %v74
  %v464 = vunpack.c.l.b16 %v75
  %v465 = vunpack.c.h.b16 %v75
  %v466 = vunpack.c.l.b16 %v76
  %v467 = vunpack.c.h.b16 %v76
  %v468 = vunpack.c.l.b16 %v77
  %v469 = vunpack.c.h.b16 %v77
  %v470 = vunpack.c.l.b16 %v78
  %v471 = vunpack.c.h.b16 %v78
  %v472 = vunpack.c.l.b16 %v79
  %v473 = vunpack.c.h.b16 %v79
  %v474 = vunpack.c.l.b16 %v80
  %v475 = vunpack.c.h.b16 %v80
  %v476 = vunpack.c.l.b16 %v81
  %v477 = vunpack.c.h.b16 %v81
  %v478 = vunpack.c.l.b16 %v82
  %v479 = vunpack.c.h.b16 %v82
  %v480 = vunpack.c.l.b16 %v83
  %v481 = vunpack.c.h.b16 %v83
  %v482 = vunpack.c.l.b16 %v84
  %v483 = vunpack.c.h.b16 %v84
  %v484 = vunpack.c.l.b16 %v85
  %v485 = vunpack.c.h.b16 %v85
  %v486 = vunpack.c.l.b16 %v86
  %v487 = vunpack.c.h.b16 %v86
  %v488 = vunpack.c.l.b16 %v87
  %v489 = vunpack.c.h.b16 %v87
  %v490 = vunpack.c.l.b16 %v88
  %v491 = vunpack.c.h.b16 %v88
  %v492 = vunpack.c.l.b16 %v89
  %v493 = vunpack.c.h.b16 %v89
  %v494 = vunpack.c.l.b16 %v90
  %v495 = vunpack.c.h.b16 %v90
  %v496 = vunpack.c.l.b16 %v91
  %v497 = vunpack.c.h.b16 %v91
  %v498 = vunpack.c.l.b16 %v92
  %v499 = vunpack.c.h.b16 %v92
  %v500 = vunpack.c.l.b16 %v93
  %v501 = vunpack.c.h.b16 %v93
  %v502 = vunpack.c.l.b16 %v94
  %v503 = vunpack.c.h.b16 %v94
  %v504 = vunpack.c.l.b16 %v95
  %v505 = vunpack.c.h.b16 %v95
  %v506 = vunpack.c.l.b16 %v96
  %v507 = vunpack.c.h.b16 %v96
  %v508 = vunpack.c.l.b16 %v97
  %v509 = vunpack.c.h.b16 %v97
  %v510 = vunpack.c.l.b16 %v98
  %v511 = vunpack.c.h.b16 %v98
  %v512 = vunpack.c.l.b16 %v99
  %v513 = vunpack.c.h.b16 %v99
  %v514 = vunpack.c.l.b16 %v100
  %v515 = vunpack.c.h.b16 %v100
  %v516 = vunpack.c.l.b16 %v101
  %v517 = vunpack.c.h.b16 %v101
  %v518 = vunpack.c.l.b16 %v102
  %v519 = vunpack.c.h.b16 %v102
  %v520 = vunpack.c.l.b16 %v103
  %v521 = vunpack.c.h.b16 %v103
  %v522 = vunpack.c.l.b16 %v104
  %v523 = vunpack.c.h.b16 %v104
  %v524 = vunpack.c.l.b16 %v105
  %v525 = vunpack.c.h.b16 %v105
  %v526 = vunpack.c.l.b16 %v106
  %v527 = vunpack.c.h.b16 %v106
  %v528 = vunpack.c.l.b16 %v107
  %v529 = vunpack.c.h.b16 %v107
  %v530 = vunpack.c.l.b16 %v108
  %v531 = vunpack.c.h.b16 %v108
  %v532 = vunpack.c.l.b16 %v109
  %v533 = vunpack.c.h.b16 %v109
  %v534 = vunpack.c.l.b16 %v110
  %v535 = vunpack.c.h.b16 %v110
  %v536 = vunpack.c.l.b16 %v111
  %v537 = vunpack.c.h.b16 %v111
  %v538 = vunpack.c.l.b16 %v112
  %v539 = vunpack.c.h.b16 %v112
  %v540 = vunpack.c.l.b16 %v113
  %v541 = vunpack.c.h.b16 %v113
  %v542 = vunpack.c.l.b16 %v114
  %v543 = vunpack.c.h.b16 %v114
  %v544 = vunpack.c.l.b16 %v115
  %v545 = vunpack.c.h.b16 %v115
  %v546 = vunpack.c.l.b16 %v116
  %v547 = vunpack.c.h.b16 %v116
  %v548 = vunpack.c.l.b16 %v117
  %v549 = vunpack.c.h.b16 %v117
  %v550 = vunpack.c.l.b16 %v118
  %v551 = vunpack.c.h.b16 %v118
  %v552 = vunpack.c.l.b16 %v119
  %v553 = vunpack.c.h.b16 %v119
  %v554 = vunpack.c.l.b16 %v120
  %v555 = vunpack.c.h.b16 %v120
  %v556 = vunpack.c.l.b16 %v121
  %v557 = vunpack.c.h.b16 %v121
  %v558 = vunpack.c.l.b16 %v122
  %v559 = vunpack.c.h.b16 %v122
  %v560 = vunpack.c.l.b16 %v123
  %v561 = vunpack.c.h.b16 %v123
  %v562 = vunpack.c.l.b16 %v124
  %v563 = vunpack.c.h.b16 %v124
  %v564 = vunpack.c.l.b16 %v125
  %v565 = vunpack.c.h.b16 %v125
  %v566 = vunpack.c.l.b16 %v126
  %v567 = vunpack.c.h.b16 %v126
  %v568 = vunpack.c.l.b16 %v127
  %v569 = vunpack.c.h.b16 %v127
  %v570 = vunpack.c.l.b16 %v128
  %v571 = vunpack.c.h.b16 %v128
  %v572 = vunpack.c.l.b16 %v129
  %v573 = vunpack.c.h.b16 %v129
  %v574 = vunpack.c.l.b16 %v130
  %v575 = vunpack.c.h.b16 %v130
  %v576 = vunpack.c.l.b16 %v131
  %v577 = vunpack.c.h.b16 %v131
  %v578 = vunpack.c.l.b16 %v132
  %v579 = vunpack.c.h.b16 %v132
  %v580 = vunpack.c.l.b16 %v133
  %v581 = vunpack.c.h.b16 %v133
  %v582 = vunpack.c.l.b16 %v134
  %v583 = vunpack.c.h.b16 %v134
  %v584 = vunpack.c.l.b16 %v135
  %v585 = vunpack.c.h.b16 %v135
  %v586 = vunpack.c.l.b16 %v136
  %v587 = vunpack.c.h.b16 %v136
  %v588 = vunpack.c.l.b16 %v137
  %v589 = vunpack.c.h.b16 %v137
  %v590 = vunpack.c.l.b16 %v138
  %v591 = vunpack.c.h.b16 %v138
  %v592 = vunpack.c.l.b16 %v139
  %v593 = vunpack.c.h.b16 %v139
  %v594 = vunpack.c.l.b16 %v140
  %v595 = vunpack.c.h.b16 %v140
  %v596 = vunpack.c.l.b16 %v141
  %v597 = vunpack.c.h.b16 %v141
  %v598 = vunpack.c.l.b16 %v142
  %v599 = vunpack.c.h.b16 %v142
  %v600 = vunpack.c.l.b16 %v143
  %v601 = vunpack.c.h.b16 %v143
  %v602 = vunpack.c.l.b16 %v144
  %v603 = vunpack.c.h.b16 %v144
  %v604 = vunpack.c.l.b16 %v145
  %v605 = vunpack.c.h.b16 %v145
  %v606 = vpack.c.b16 %v346, %v342
  %v607 = vpack.c.b16 %v347, %v343
  %v608 = vpack.c.b16 %v348, %v344
  %v609 = vpack.c.b16 %v349, %v345
  %v610 = vpack.c.b16 %v354, %v350
  %v611 = vpack.c.b16 %v355, %v351
  %v612 = vpack.c.b16 %v356, %v352
  %v613 = vpack.c.b16 %v357, %v353
  %v614 = vpack.c.b16 %v362, %v358
  %v615 = vpack.c.b16 %v363, %v359
  %v616 = vpack.c.b16 %v364, %v360
  %v617 = vpack.c.b16 %v365, %v361
  %v618 = vpack.c.b16 %v370, %v366
  %v619 = vpack.c.b16 %v371, %v367
  %v620 = vpack.c.b16 %v372, %v368
  %v621 = vpack.c.b16 %v373, %v369
  %v622 = vpack.c.b16 %v378, %v374
  %v623 = vpack.c.b16 %v379, %v375
  %v624 = vpack.c.b16 %v380, %v376
  %v625 = vpack.c.b16 %v381, %v377
  %v626 = vpack.c.b16 %v386, %v382
  %v627 = vpack.c.b16 %v387, %v383
  %v628 = vpack.c.b16 %v388, %v384
  %v629 = vpack.c.b16 %v389, %v385
  %v630 = vpack.c.b16 %v394, %v390
  %v631 = vpack.c.b16 %v395, %v391
  %v632 = vpack.c.b16 %v396, %v392
  %v633 = vpack.c.b16 %v397, %v393
  %v634 = vpack.c.b16 %v402, %v398
  %v635 = vpack.c.b16 %v403, %v399
  %v636 = vpack.c.b16 %v404, %v400
  %v637 = vpack.c.b16 %v405, %v401
  %v638 = vpack.c.b16 %v410, %v406
  %v639 = vpack.c.b16 %v411, %v407
  %v640 = vpack.c.b16 %v412, %v408
  %v641 = vpack.c.b16 %v413, %v409
  %v642 = vpack.c.b16 %v418, %v414
  %v643 = vpack.c.b16 %v419, %v415
  %v644 = vpack.c.b16 %v420, %v416
  %v645 = vpack.c.b16 %v421, %v417
  %v646 = vpack.c.b16 %v426, %v422
  %v647 = vpack.c.b16 %v427, %v423
  %v648 = vpack.c.b16 %v428, %v424
  %v649 = vpack.c.b16 %v429, %v425
  %v650 = vpack.c.b16 %v434, %v430
  %v651 = vpack.c.b16 %v435, %v431
  %v652 = vpack.c.b16 %v436, %v432
  %v653 = vpack.c.b16 %v437, %v433
  %v654 = vpack.c.b16 %v442, %v438
  %v655 = vpack.c.b16 %v443, %v439
  %v656 = vpack.c.b16 %v444, %v440
  %v657 = vpack.c.b16 %v445, %v441
  %v658 = vpack.c.b16 %v450, %v446
  %v659 = vpack.c.b16 %v451, %v447
  %v660 = vpack.c.b16 %v452, %v448
  %v661 = vpack.c.b16 %v453, %v449
  %v662 = vpack.c.b16 %v458, %v454
  %v663 = vpack.c.b16 %v459, %v455
  %v664 = vpack.c.b16 %v460, %v456
  %v665 = vpack.c.b16 %v461, %v457
  %v666 = vpack.c.b16 %v466, %v462
  %v667 = vpack.c.b16 %v467, %v463
  %v668 = vpack.c.b16 %v468, %v464
  %v669 = vpack.c.b16 %v469, %v465
  %v670 = vpack.c.b16 %v474, %v470
  %v671 = vpack.c.b16 %v475, %v471
  %v672 = vpack.c.b16 %v476, %v472
  %v673 = vpack.c.b16 %v477, %v473
  %v674 = vpack.c.b16 %v482, %v478
  %v675 = vpack.c.b16 %v483, %v479
  %v676 = vpack.c.b16 %v484, %v480
  %v677 = vpack.c.b16 %v485, %v481
  %v678 = vpack.c.b16 %v490, %v486
  %v679 = vpack.c.b16 %v491, %v487
  %v680 = vpack.c.b16 %v492, %v488
  %v681 = vpack.c.b16 %v493, %v489
  %v682 = vpack.c.b16 %v498, %v494
  %v683 = vpack.c.b16 %v499, %v495
  %v684 = vpack.c.b16 %v500, %v496
  %v685 = vpack.c.b16 %v501, %v497
  %v686 = vpack.c.b16 %v506, %v502
  %v687 = vpack.c.b16 %v507, %v503
  %v688 = vpack.c.b16 %v508, %v504
  %v689 = vpack.c.b16 %v509, %v505
  %v690 = vpack.c.b16 %v514, %v510
  %v691 = vpack.c.b16 %v515, %v511
  %v692 = vpack.c.b16 %v516, %v512
  %v693 = vpack.c.b16 %v517, %v513
  %v694 = vpack.c.b16 %v522, %v518
  %v695 = vpack.c.b16 %v523, %v519
  %v696 = vpack.c.b16 %v524, %v520
  %v697 = vpack.c.b16 %v525, %v521
  %v698 = vpack.c.b16 %v530, %v526
  %v699 = vpack.c.b16 %v531, %v527
  %v700 = vpack.c.b16 %v532, %v528
  %v701 = vpack.c.b16 %v533, %v529
  %v702 = vpack.c.b16 %v538, %v534
  %v703 = vpack.c.b16 %v539, %v535
  %v704 = vpack.c.b16 %v540, %v536
  %v705 = vpack.c.b16 %v541, %v537
  %v706 = vpack.c.b16 %v546, %v542
  %v707 = vpack.c.b16 %v547, %v543
  %v708 = vpack.c.b16 %v548, %v544
  %v709 = vpack.c.b16 %v549, %v545
  %v710 = vpack.c.b16 %v554, %v550
  %v711 = vpack.c.b16 %v555, %v551
  %v712 = vpack.c.b16 %v556, %v552
  %v713 = vpack.c.b16 %v557, %v553
  %v714 = vpack.c.b16 %v562, %v558
  %v715 = vpack.c.b16 %v563, %v559
  %v716 = vpack.c.b16 %v564, %v560
  %v717 = vpack.c.b16 %v565, %v561
  %v718 = vpack.c.b16 %v570, %v566
  %v719 = vpack.c.b16 %v571, %v567
  %v720 = vpack.c.b16 %v572, %v568
  %v721 = vpack.c.b16 %v573, %v569
  %v722 = vpack.c.b16 %v578, %v574
  %v723 = vpack.c.b16 %v579, %v575
  %v724 = vpack.c.b16 %v580, %v576
  %v725 = vpack.c.b16 %v581, %v577
  %v726 = vpack.c.b16 %v586, %v582
  %v727 = vpack.c.b16 %v587, %v583
  %v728 = vpack.c.b16 %v588, %v584
  %v729 = vpack.c.b16 %v589, %v585
  %v730 = vpack.c.b16 %v594, %v590
  %v731 = vpack.c.b16 %v595, %v591
  %v732 = vpack.c.b16 %v596, %v592
  %v733 = vpack.c.b16 %v597, %v593
  %v734 = vpack.c.b16 %v602, %v598
  %v735 = vpack.c.b16 %v603, %v599
  %v736 = vpack.c.b16 %v604, %v600
  %v737 = vpack.c.b16 %v605, %v601
  %v934 = vunpack.c.l.b16 %v146
  %v935 = vunpack.c.h.b16 %v146
  %v936 = vunpack.c.l.b16 %v147
  %v937 = vunpack.c.h.b16 %v147
  %v938 = vunpack.c.l.b16 %v148
  %v939 = vunpack.c.h.b16 %v148
  %v940 = vunpack.c.l.b16 %v149
  %v941 = vunpack.c.h.b16 %v149
  %v942 = vunpack.c.l.b16 %v150
  %v943 = vunpack.c.h.b16 %v150
  %v944 = vunpack.c.l.b16 %v151
  %v945 = vunpack.c.h.b16 %v151
  %v946 = vunpack.c.l.b16 %v152
  %v947 = vunpack.c.h.b16 %v152
  %v948 = vunpack.c.l.b16 %v153
  %v949 = vunpack.c.h.b16 %v153
  %v950 = vunpack.c.l.b16 %v154
  %v951 = vunpack.c.h.b16 %v154
  %v952 = vunpack.c.l.b16 %v155
  %v953 = vunpack.c.h.b16 %v155
  %v954 = vunpack.c.l.b16 %v156
  %v955 = vunpack.c.h.b16 %v156
  %v956 = vunpack.c.l.b16 %v157
  %v957 = vunpack.c.h.b16 %v157
  %v958 = vunpack.c.l.b16 %v158
  %v959 = vunpack.c.h.b16 %v158
  %v960 = vunpack.c.l.b16 %v159
  %v961 = vunpack.c.h.b16 %v159
  %v962 = vunpack.c.l.b16 %v160
  %v963 = vunpack.c.h.b16 %v160
  %v964 = vunpack.c.l.b16 %v161
  %v965 = vunpack.c.h.b16 %v161
  %v966 = vunpack.c.l.b16 %v162
  %v967 = vunpack.c.h.b16 %v162
  %v968 = vunpack.c.l.b16 %v163
  %v969 = vunpack.c.h.b16 %v163
  %v970 = vunpack.c.l.b16 %v164
  %v971 = vunpack.c.h.b16 %v164
  %v972 = vunpack.c.l.b16 %v165
  %v973 = vunpack.c.h.b16 %v165
  %v974 = vunpack.c.l.b16 %v166
  %v975 = vunpack.c.h.b16 %v166
  %v976 = vunpack.c.l.b16 %v167
  %v977 = vunpack.c.h.b16 %v167
  %v978 = vunpack.c.l.b16 %v168
  %v979 = vunpack.c.h.b16 %v168
  %v980 = vunpack.c.l.b16 %v169
  %v981 = vunpack.c.h.b16 %v169
  %v982 = vunpack.c.l.b16 %v170
  %v983 = vunpack.c.h.b16 %v170
  %v984 = vunpack.c.l.b16 %v171
  %v985 = vunpack.c.h.b16 %v171
  %v986 = vunpack.c.l.b16 %v172
  %v987 = vunpack.c.h.b16 %v172
  %v988 = vunpack.c.l.b16 %v173
  %v989 = vunpack.c.h.b16 %v173
  %v990 = vunpack.c.l.b16 %v174
  %v991 = vunpack.c.h.b16 %v174
  %v992 = vunpack.c.l.b16 %v175
  %v993 = vunpack.c.h.b16 %v175
  %v994 = vunpack.c.l.b16 %v176
  %v995 = vunpack.c.h.b16 %v176
  %v996 = vunpack.c.l.b16 %v177
  %v997 = vunpack.c.h.b16 %v177
  %v998 = vunpack.c.l.b16 %v178
  %v999 = vunpack.c.h.b16 %v178
  %v1000 = vunpack.c.l.b16 %v179
  %v1001 = vunpack.c.h.b16 %v179
  %v1002 = vunpack.c.l.b16 %v180
  %v1003 = vunpack.c.h.b16 %v180
  %v1004 = vunpack.c.l.b16 %v181
  %v1005 = vunpack.c.h.b16 %v181
  %v1006 = vunpack.c.l.b16 %v182
  %v1007 = vunpack.c.h.b16 %v182
  %v1008 = vunpack.c.l.b16 %v183
  %v1009 = vunpack.c.h.b16 %v183
  %v1010 = vunpack.c.l.b16 %v184
  %v1011 = vunpack.c.h.b16 %v184
  %v1012 = vunpack.c.l.b16 %v185
  %v1013 = vunpack.c.h.b16 %v185
  %v1014 = vunpack.c.l.b16 %v186
  %v1015 = vunpack.c.h.b16 %v186
  %v1016 = vunpack.c.l.b16 %v187
  %v1017 = vunpack.c.h.b16 %v187
  %v1018 = vunpack.c.l.b16 %v188
  %v1019 = vunpack.c.h.b16 %v188
  %v1020 = vunpack.c.l.b16 %v189
  %v1021 = vunpack.c.h.b16 %v189
  %v1022 = vunpack.c.l.b16 %v190
  %v1023 = vunpack.c.h.b16 %v190
  %v1024 = vunpack.c.l.b16 %v191
  %v1025 = vunpack.c.h.b16 %v191
  %v1026 = vunpack.c.l.b16 %v192
  %v1027 = vunpack.c.h.b16 %v192
  %v1028 = vunpack.c.l.b16 %v193
  %v1029 = vunpack.c.h.b16 %v193
  %v1030 = vunpack.c.l.b16 %v194
  %v1031 = vunpack.c.h.b16 %v194
  %v1032 = vunpack.c.l.b16 %v195
  %v1033 = vunpack.c.h.b16 %v195
  %v1034 = vunpack.c.l.b16 %v196
  %v1035 = vunpack.c.h.b16 %v196
  %v1036 = vunpack.c.l.b16 %v197
  %v1037 = vunpack.c.h.b16 %v197
  %v1038 = vunpack.c.l.b16 %v198
  %v1039 = vunpack.c.h.b16 %v198
  %v1040 = vunpack.c.l.b16 %v199
  %v1041 = vunpack.c.h.b16 %v199
  %v1042 = vunpack.c.l.b16 %v200
  %v1043 = vunpack.c.h.b16 %v200
  %v1044 = vunpack.c.l.b16 %v201
  %v1045 = vunpack.c.h.b16 %v201
  %v1046 = vunpack.c.l.b16 %v202
  %v1047 = vunpack.c.h.b16 %v202
  %v1048 = vunpack.c.l.b16 %v203
  %v1049 = vunpack.c.h.b16 %v203
  %v1050 = vunpack.c.l.b16 %v204
  %v1051 = vunpack.c.h.b16 %v204
  %v1052 = vunpack.c.l.b16 %v205
  %v1053 = vunpack.c.h.b16 %v205
  %v1054 = vunpack.c.l.b16 %v206
  %v1055 = vunpack.c.h.b16 %v206
  %v1056 = vunpack.c.l.b16 %v207
  %v1057 = vunpack.c.h.b16 %v207
  %v1058 = vunpack.c.l.b16 %v208
  %v1059 = vunpack.c.h.b16 %v208
  %v1060 = vunpack.c.l.b16 %v209
  %v1061 = vunpack.c.h.b16 %v209
  %v1062 = vpack.c.b16 %v936, %v934
  %v1063 = vpack.c.b16 %v937, %v935
  %v1064 = vpack.c.b16 %v940, %v938
  %v1065 = vpack.c.b16 %v941, %v939
  %v1066 = vpack.c.b16 %v944, %v942
  %v1067 = vpack.c.b16 %v945, %v943
  %v1068 = vpack.c.b16 %v948, %v946
  %v1069 = vpack.c.b16 %v949, %v947
  %v1070 = vpack.c.b16 %v952, %v950
  %v1071 = vpack.c.b16 %v953, %v951
  %v1072 = vpack.c.b16 %v956, %v954
  %v1073 = vpack.c.b16 %v957, %v955
  %v1074 = vpack.c.b16 %v960, %v958
  %v1075 = vpack.c.b16 %v961, %v959
  %v1076 = vpack.c.b16 %v964, %v962
  %v1077 = vpack.c.b16 %v965, %v963
  %v1078 = vpack.c.b16 %v968, %v966
  %v1079 = vpack.c.b16 %v969, %v967
  %v1080 = vpack.c.b16 %v972, %v970
  %v1081 = vpack.c.b16 %v973, %v971
  %v1082 = vpack.c.b16 %v976, %v974
  %v1083 = vpack.c.b16 %v977, %v975
  %v1084 = vpack.c.b16 %v980, %v978
  %v1085 = vpack.c.b16 %v981, %v979
  %v1086 = vpack.c.b16 %v984, %v982
  %v1087 = vpack.c.b16 %v985, %v983
  %v1088 = vpack.c.b16 %v988, %v986
  %v1089 = vpack.c.b16 %v989, %v987
  %v1090 = vpack.c.b16 %v992, %v990
  %v1091 = vpack.c.b16 %v993, %v991
  %v1092 = vpack.c.b16 %v996, %v994
  %v1093 = vpack.c.b16 %v997, %v995
  %v1094 = vpack.c.b16 %v1000, %v998
  %v1095 = vpack.c.b16 %v1001, %v999
  %v1096 = vpack.c.b16 %v1004, %v1002
  %v1097 = vpack.c.b16 %v1005, %v1003
  %v1098 = vpack.c.b16 %v1008, %v1006
  %v1099 = vpack.c.b16 %v1009, %v1007
  %v1100 = vpack.c.b16 %v1012, %v1010
  %v1101 = vpack.c.b16 %v1013, %v1011
  %v1102 = vpack.c.b16 %v1016, %v1014
  %v1103 = vpack.c.b16 %v1017, %v1015
  %v1104 = vpack.c.b16 %v1020, %v1018
  %v1105 = vpack.c.b16 %v1021, %v1019
  %v1106 = vpack.c.b16 %v1024, %v1022
  %v1107 = vpack.c.b16 %v1025, %v1023
  %v1108 = vpack.c.b16 %v1028, %v1026
  %v1109 = vpack.c.b16 %v1029, %v1027
  %v1110 = vpack.c.b16 %v1032, %v1030
  %v1111 = vpack.c.b16 %v1033, %v1031
  %v1112 = vpack.c.b16 %v1036, %v1034
  %v1113 = vpack.c.b16 %v1037, %v1035
  %v1114 = vpack.c.b16 %v1040, %v1038
  %v1115 = vpack.c.b16 %v1041, %v1039
  %v1116 = vpack.c.b16 %v1044, %v1042
  %v1117 = vpack.c.b16 %v1045, %v1043
  %v1118 = vpack.c.b16 %v1048, %v1046
  %v1119 = vpack.c.b16 %v1049, %v1047
  %v1120 = vpack.c.b16 %v1052, %v1050
  %v1121 = vpack.c.b16 %v1053, %v1051
  %v1122 = vpack.c.b16 %v1056, %v1054
  %v1123 = vpack.c.b16 %v1057, %v1055
  %v1124 = vpack.c.b16 %v1060, %v1058
  %v1125 = vpack.c.b16 %v1061, %v1059
  %1190 = vmatpush.bf16.msra.mxu0 %v1076
  %1191 = vmatpush.bf16.msra.mxu0 %v1074
  %1192 = vmatpush.bf16.msra.mxu0 %v1072
  %1193 = vmatpush.bf16.msra.mxu0 %v1070
  %1194 = vmatpush.bf16.msra.mxu0 %v1068
  %1195 = vmatpush.bf16.msra.mxu0 %v1066
  %1196 = vmatpush.bf16.msra.mxu0 %v1064
  %1197 = vmatpush.bf16.msra.mxu0 %v1062
  %1198 = vmatmul.bf16.gmra.mxu0 %v606
  %v1199 = vpop.f32.mrf.mxu0
  %v1200 = vadd.f32 0.0, %v1199
  %v1201 = vpop.f32.mrf.mxu0
  %v1202 = vadd.f32 0.0, %v1201
  %1203 = vmatmul.bf16.gmra.mxu0 %v610
  %v1204 = vpop.f32.mrf.mxu0
  %v1205 = vadd.f32 0.0, %v1204
  %v1206 = vpop.f32.mrf.mxu0
  %v1207 = vadd.f32 0.0, %v1206
  %1208 = vmatmul.bf16.gmra.mxu0 %v614
  %v1209 = vpop.f32.mrf.mxu0
  %v1210 = vadd.f32 0.0, %v1209
  %v1211 = vpop.f32.mrf.mxu0
  %v1212 = vadd.f32 0.0, %v1211
  %1213 = vmatmul.bf16.gmra.mxu0 %v618
  %v1214 = vpop.f32.mrf.mxu0
  %v1215 = vadd.f32 0.0, %v1214
  %v1216 = vpop.f32.mrf.mxu0
  %v1217 = vadd.f32 0.0, %v1216
  %1218 = vmatmul.bf16.gmra.mxu0 %v622
  %v1219 = vpop.f32.mrf.mxu0
  %v1220 = vadd.f32 0.0, %v1219
  %v1221 = vpop.f32.mrf.mxu0
  %v1222 = vadd.f32 0.0, %v1221
  %1223 = vmatmul.bf16.gmra.mxu0 %v626
  %v1224 = vpop.f32.mrf.mxu0
  %v1225 = vadd.f32 0.0, %v1224
  %v1226 = vpop.f32.mrf.mxu0
  %v1227 = vadd.f32 0.0, %v1226
  %1228 = vmatmul.bf16.gmra.mxu0 %v630
  %v1229 = vpop.f32.mrf.mxu0
  %v1230 = vadd.f32 0.0, %v1229
  %v1231 = vpop.f32.mrf.mxu0
  %v1232 = vadd.f32 0.0, %v1231
  %1233 = vmatmul.bf16.gmra.mxu0 %v634
  %v1234 = vpop.f32.mrf.mxu0
  %v1235 = vadd.f32 0.0, %v1234
  %v1236 = vpop.f32.mrf.mxu0
  %v1237 = vadd.f32 0.0, %v1236
  %1238 = vmatmul.bf16.gmra.mxu0 %v638
  %v1239 = vpop.f32.mrf.mxu0
  %v1240 = vadd.f32 0.0, %v1239
  %v1241 = vpop.f32.mrf.mxu0
  %v1242 = vadd.f32 0.0, %v1241
  %1243 = vmatmul.bf16.gmra.mxu0 %v642
  %v1244 = vpop.f32.mrf.mxu0
  %v1245 = vadd.f32 0.0, %v1244
  %v1246 = vpop.f32.mrf.mxu0
  %v1247 = vadd.f32 0.0, %v1246
  %1248 = vmatmul.bf16.gmra.mxu0 %v646
  %v1249 = vpop.f32.mrf.mxu0
  %v1250 = vadd.f32 0.0, %v1249
  %v1251 = vpop.f32.mrf.mxu0
  %v1252 = vadd.f32 0.0, %v1251
  %1253 = vmatmul.bf16.gmra.mxu0 %v650
  %v1254 = vpop.f32.mrf.mxu0
  %v1255 = vadd.f32 0.0, %v1254
  %v1256 = vpop.f32.mrf.mxu0
  %v1257 = vadd.f32 0.0, %v1256
  %1258 = vmatmul.bf16.gmra.mxu0 %v654
  %v1259 = vpop.f32.mrf.mxu0
  %v1260 = vadd.f32 0.0, %v1259
  %v1261 = vpop.f32.mrf.mxu0
  %v1262 = vadd.f32 0.0, %v1261
  %1263 = vmatmul.bf16.gmra.mxu0 %v658
  %v1264 = vpop.f32.mrf.mxu0
  %v1265 = vadd.f32 0.0, %v1264
  %v1266 = vpop.f32.mrf.mxu0
  %v1267 = vadd.f32 0.0, %v1266
  %1268 = vmatmul.bf16.gmra.mxu0 %v662
  %v1269 = vpop.f32.mrf.mxu0
  %v1270 = vadd.f32 0.0, %v1269
  %v1271 = vpop.f32.mrf.mxu0
  %v1272 = vadd.f32 0.0, %v1271
  %1273 = vmatmul.bf16.gmra.mxu0 %v666
  %v1274 = vpop.f32.mrf.mxu0
  %v1275 = vadd.f32 0.0, %v1274
  %v1276 = vpop.f32.mrf.mxu0
  %v1277 = vadd.f32 0.0, %v1276
  %1278 = vmatmul.bf16.gmra.mxu0 %v670
  %v1279 = vpop.f32.mrf.mxu0
  %v1280 = vadd.f32 0.0, %v1279
  %v1281 = vpop.f32.mrf.mxu0
  %v1282 = vadd.f32 0.0, %v1281
  %1283 = vmatmul.bf16.gmra.mxu0 %v674
  %v1284 = vpop.f32.mrf.mxu0
  %v1285 = vadd.f32 0.0, %v1284
  %v1286 = vpop.f32.mrf.mxu0
  %v1287 = vadd.f32 0.0, %v1286
  %1288 = vmatmul.bf16.gmra.mxu0 %v678
  %v1289 = vpop.f32.mrf.mxu0
  %v1290 = vadd.f32 0.0, %v1289
  %v1291 = vpop.f32.mrf.mxu0
  %v1292 = vadd.f32 0.0, %v1291
  %1293 = vmatmul.bf16.gmra.mxu0 %v682
  %v1294 = vpop.f32.mrf.mxu0
  %v1295 = vadd.f32 0.0, %v1294
  %v1296 = vpop.f32.mrf.mxu0
  %v1297 = vadd.f32 0.0, %v1296
  %1298 = vmatmul.bf16.gmra.mxu0 %v686
  %v1299 = vpop.f32.mrf.mxu0
  %v1300 = vadd.f32 0.0, %v1299
  %v1301 = vpop.f32.mrf.mxu0
  %v1302 = vadd.f32 0.0, %v1301
  %1303 = vmatmul.bf16.gmra.mxu0 %v690
  %v1304 = vpop.f32.mrf.mxu0
  %v1305 = vadd.f32 0.0, %v1304
  %v1306 = vpop.f32.mrf.mxu0
  %v1307 = vadd.f32 0.0, %v1306
  %1308 = vmatmul.bf16.gmra.mxu0 %v694
  %v1309 = vpop.f32.mrf.mxu0
  %v1310 = vadd.f32 0.0, %v1309
  %v1311 = vpop.f32.mrf.mxu0
  %v1312 = vadd.f32 0.0, %v1311
  %1313 = vmatmul.bf16.gmra.mxu0 %v698
  %v1314 = vpop.f32.mrf.mxu0
  %v1315 = vadd.f32 0.0, %v1314
  %v1316 = vpop.f32.mrf.mxu0
  %v1317 = vadd.f32 0.0, %v1316
  %1318 = vmatmul.bf16.gmra.mxu0 %v702
  %v1319 = vpop.f32.mrf.mxu0
  %v1320 = vadd.f32 0.0, %v1319
  %v1321 = vpop.f32.mrf.mxu0
  %v1322 = vadd.f32 0.0, %v1321
  %1323 = vmatmul.bf16.gmra.mxu0 %v706
  %v1324 = vpop.f32.mrf.mxu0
  %v1325 = vadd.f32 0.0, %v1324
  %v1326 = vpop.f32.mrf.mxu0
  %v1327 = vadd.f32 0.0, %v1326
  %1328 = vmatmul.bf16.gmra.mxu0 %v710
  %v1329 = vpop.f32.mrf.mxu0
  %v1330 = vadd.f32 0.0, %v1329
  %v1331 = vpop.f32.mrf.mxu0
  %v1332 = vadd.f32 0.0, %v1331
  %1333 = vmatmul.bf16.gmra.mxu0 %v714
  %v1334 = vpop.f32.mrf.mxu0
  %v1335 = vadd.f32 0.0, %v1334
  %v1336 = vpop.f32.mrf.mxu0
  %v1337 = vadd.f32 0.0, %v1336
  %1338 = vmatmul.bf16.gmra.mxu0 %v718
  %v1339 = vpop.f32.mrf.mxu0
  %v1340 = vadd.f32 0.0, %v1339
  %v1341 = vpop.f32.mrf.mxu0
  %v1342 = vadd.f32 0.0, %v1341
  %1343 = vmatmul.bf16.gmra.mxu0 %v722
  %v1344 = vpop.f32.mrf.mxu0
  %v1345 = vadd.f32 0.0, %v1344
  %v1346 = vpop.f32.mrf.mxu0
  %v1347 = vadd.f32 0.0, %v1346
  %1348 = vmatmul.bf16.gmra.mxu0 %v726
  %v1349 = vpop.f32.mrf.mxu0
  %v1350 = vadd.f32 0.0, %v1349
  %v1351 = vpop.f32.mrf.mxu0
  %v1352 = vadd.f32 0.0, %v1351
  %1353 = vmatmul.bf16.gmra.mxu0 %v730
  %v1354 = vpop.f32.mrf.mxu0
  %v1355 = vadd.f32 0.0, %v1354
  %v1356 = vpop.f32.mrf.mxu0
  %v1357 = vadd.f32 0.0, %v1356
  %1358 = vmatmul.bf16.gmra.mxu0 %v734
  %v1359 = vpop.f32.mrf.mxu0
  %v1360 = vadd.f32 0.0, %v1359
  %v1361 = vpop.f32.mrf.mxu0
  %v1362 = vadd.f32 0.0, %v1361
  %1363 = vdwg.mxu0
  %1364 = vmatpush.bf16.msra.mxu0 %v1092
  %1365 = vmatpush.bf16.msra.mxu0 %v1090
  %1366 = vmatpush.bf16.msra.mxu0 %v1088
  %1367 = vmatpush.bf16.msra.mxu0 %v1086
  %1368 = vmatpush.bf16.msra.mxu0 %v1084
  %1369 = vmatpush.bf16.msra.mxu0 %v1082
  %1370 = vmatpush.bf16.msra.mxu0 %v1080
  %1371 = vmatpush.bf16.msra.mxu0 %v1078
  %1372 = vmatmul.bf16.gmra.mxu0 %v607
  %v1373 = vpop.f32.mrf.mxu0
  %v1374 = vadd.f32 %v1200, %v1373
  %v1375 = vpop.f32.mrf.mxu0
  %v1376 = vadd.f32 %v1202, %v1375
  %1377 = vmatmul.bf16.gmra.mxu0 %v611
  %v1378 = vpop.f32.mrf.mxu0
  %v1379 = vadd.f32 %v1205, %v1378
  %v1380 = vpop.f32.mrf.mxu0
  %v1381 = vadd.f32 %v1207, %v1380
  %1382 = vmatmul.bf16.gmra.mxu0 %v615
  %v1383 = vpop.f32.mrf.mxu0
  %v1384 = vadd.f32 %v1210, %v1383
  %v1385 = vpop.f32.mrf.mxu0
  %v1386 = vadd.f32 %v1212, %v1385
  %1387 = vmatmul.bf16.gmra.mxu0 %v619
  %v1388 = vpop.f32.mrf.mxu0
  %v1389 = vadd.f32 %v1215, %v1388
  %v1390 = vpop.f32.mrf.mxu0
  %v1391 = vadd.f32 %v1217, %v1390
  %1392 = vmatmul.bf16.gmra.mxu0 %v623
  %v1393 = vpop.f32.mrf.mxu0
  %v1394 = vadd.f32 %v1220, %v1393
  %v1395 = vpop.f32.mrf.mxu0
  %v1396 = vadd.f32 %v1222, %v1395
  %1397 = vmatmul.bf16.gmra.mxu0 %v627
  %v1398 = vpop.f32.mrf.mxu0
  %v1399 = vadd.f32 %v1225, %v1398
  %v1400 = vpop.f32.mrf.mxu0
  %v1401 = vadd.f32 %v1227, %v1400
  %1402 = vmatmul.bf16.gmra.mxu0 %v631
  %v1403 = vpop.f32.mrf.mxu0
  %v1404 = vadd.f32 %v1230, %v1403
  %v1405 = vpop.f32.mrf.mxu0
  %v1406 = vadd.f32 %v1232, %v1405
  %1407 = vmatmul.bf16.gmra.mxu0 %v635
  %v1408 = vpop.f32.mrf.mxu0
  %v1409 = vadd.f32 %v1235, %v1408
  %v1410 = vpop.f32.mrf.mxu0
  %v1411 = vadd.f32 %v1237, %v1410
  %1412 = vmatmul.bf16.gmra.mxu0 %v639
  %v1413 = vpop.f32.mrf.mxu0
  %v1414 = vadd.f32 %v1240, %v1413
  %v1415 = vpop.f32.mrf.mxu0
  %v1416 = vadd.f32 %v1242, %v1415
  %1417 = vmatmul.bf16.gmra.mxu0 %v643
  %v1418 = vpop.f32.mrf.mxu0
  %v1419 = vadd.f32 %v1245, %v1418
  %v1420 = vpop.f32.mrf.mxu0
  %v1421 = vadd.f32 %v1247, %v1420
  %1422 = vmatmul.bf16.gmra.mxu0 %v647
  %v1423 = vpop.f32.mrf.mxu0
  %v1424 = vadd.f32 %v1250, %v1423
  %v1425 = vpop.f32.mrf.mxu0
  %v1426 = vadd.f32 %v1252, %v1425
  %1427 = vmatmul.bf16.gmra.mxu0 %v651
  %v1428 = vpop.f32.mrf.mxu0
  %v1429 = vadd.f32 %v1255, %v1428
  %v1430 = vpop.f32.mrf.mxu0
  %v1431 = vadd.f32 %v1257, %v1430
  %1432 = vmatmul.bf16.gmra.mxu0 %v655
  %v1433 = vpop.f32.mrf.mxu0
  %v1434 = vadd.f32 %v1260, %v1433
  %v1435 = vpop.f32.mrf.mxu0
  %v1436 = vadd.f32 %v1262, %v1435
  %1437 = vmatmul.bf16.gmra.mxu0 %v659
  %v1438 = vpop.f32.mrf.mxu0
  %v1439 = vadd.f32 %v1265, %v1438
  %v1440 = vpop.f32.mrf.mxu0
  %v1441 = vadd.f32 %v1267, %v1440
  %1442 = vmatmul.bf16.gmra.mxu0 %v663
  %v1443 = vpop.f32.mrf.mxu0
  %v1444 = vadd.f32 %v1270, %v1443
  %v1445 = vpop.f32.mrf.mxu0
  %v1446 = vadd.f32 %v1272, %v1445
  %1447 = vmatmul.bf16.gmra.mxu0 %v667
  %v1448 = vpop.f32.mrf.mxu0
  %v1449 = vadd.f32 %v1275, %v1448
  %v1450 = vpop.f32.mrf.mxu0
  %v1451 = vadd.f32 %v1277, %v1450
  %1452 = vmatmul.bf16.gmra.mxu0 %v671
  %v1453 = vpop.f32.mrf.mxu0
  %v1454 = vadd.f32 %v1280, %v1453
  %v1455 = vpop.f32.mrf.mxu0
  %v1456 = vadd.f32 %v1282, %v1455
  %1457 = vmatmul.bf16.gmra.mxu0 %v675
  %v1458 = vpop.f32.mrf.mxu0
  %v1459 = vadd.f32 %v1285, %v1458
  %v1460 = vpop.f32.mrf.mxu0
  %v1461 = vadd.f32 %v1287, %v1460
  %1462 = vmatmul.bf16.gmra.mxu0 %v679
  %v1463 = vpop.f32.mrf.mxu0
  %v1464 = vadd.f32 %v1290, %v1463
  %v1465 = vpop.f32.mrf.mxu0
  %v1466 = vadd.f32 %v1292, %v1465
  %1467 = vmatmul.bf16.gmra.mxu0 %v683
  %v1468 = vpop.f32.mrf.mxu0
  %v1469 = vadd.f32 %v1295, %v1468
  %v1470 = vpop.f32.mrf.mxu0
  %v1471 = vadd.f32 %v1297, %v1470
  %1472 = vmatmul.bf16.gmra.mxu0 %v687
  %v1473 = vpop.f32.mrf.mxu0
  %v1474 = vadd.f32 %v1300, %v1473
  %v1475 = vpop.f32.mrf.mxu0
  %v1476 = vadd.f32 %v1302, %v1475
  %1477 = vmatmul.bf16.gmra.mxu0 %v691
  %v1478 = vpop.f32.mrf.mxu0
  %v1479 = vadd.f32 %v1305, %v1478
  %v1480 = vpop.f32.mrf.mxu0
  %v1481 = vadd.f32 %v1307, %v1480
  %1482 = vmatmul.bf16.gmra.mxu0 %v695
  %v1483 = vpop.f32.mrf.mxu0
  %v1484 = vadd.f32 %v1310, %v1483
  %v1485 = vpop.f32.mrf.mxu0
  %v1486 = vadd.f32 %v1312, %v1485
  %1487 = vmatmul.bf16.gmra.mxu0 %v699
  %v1488 = vpop.f32.mrf.mxu0
  %v1489 = vadd.f32 %v1315, %v1488
  %v1490 = vpop.f32.mrf.mxu0
  %v1491 = vadd.f32 %v1317, %v1490
  %1492 = vmatmul.bf16.gmra.mxu0 %v703
  %v1493 = vpop.f32.mrf.mxu0
  %v1494 = vadd.f32 %v1320, %v1493
  %v1495 = vpop.f32.mrf.mxu0
  %v1496 = vadd.f32 %v1322, %v1495
  %1497 = vmatmul.bf16.gmra.mxu0 %v707
  %v1498 = vpop.f32.mrf.mxu0
  %v1499 = vadd.f32 %v1325, %v1498
  %v1500 = vpop.f32.mrf.mxu0
  %v1501 = vadd.f32 %v1327, %v1500
  %1502 = vmatmul.bf16.gmra.mxu0 %v711
  %v1503 = vpop.f32.mrf.mxu0
  %v1504 = vadd.f32 %v1330, %v1503
  %v1505 = vpop.f32.mrf.mxu0
  %v1506 = vadd.f32 %v1332, %v1505
  %1507 = vmatmul.bf16.gmra.mxu0 %v715
  %v1508 = vpop.f32.mrf.mxu0
  %v1509 = vadd.f32 %v1335, %v1508
  %v1510 = vpop.f32.mrf.mxu0
  %v1511 = vadd.f32 %v1337, %v1510
  %1512 = vmatmul.bf16.gmra.mxu0 %v719
  %v1513 = vpop.f32.mrf.mxu0
  %v1514 = vadd.f32 %v1340, %v1513
  %v1515 = vpop.f32.mrf.mxu0
  %v1516 = vadd.f32 %v1342, %v1515
  %1517 = vmatmul.bf16.gmra.mxu0 %v723
  %v1518 = vpop.f32.mrf.mxu0
  %v1519 = vadd.f32 %v1345, %v1518
  %v1520 = vpop.f32.mrf.mxu0
  %v1521 = vadd.f32 %v1347, %v1520
  %1522 = vmatmul.bf16.gmra.mxu0 %v727
  %v1523 = vpop.f32.mrf.mxu0
  %v1524 = vadd.f32 %v1350, %v1523
  %v1525 = vpop.f32.mrf.mxu0
  %v1526 = vadd.f32 %v1352, %v1525
  %1527 = vmatmul.bf16.gmra.mxu0 %v731
  %v1528 = vpop.f32.mrf.mxu0
  %v1529 = vadd.f32 %v1355, %v1528
  %v1530 = vpop.f32.mrf.mxu0
  %v1531 = vadd.f32 %v1357, %v1530
  %1532 = vmatmul.bf16.gmra.mxu0 %v735
  %v1533 = vpop.f32.mrf.mxu0
  %v1534 = vadd.f32 %v1360, %v1533
  %v1535 = vpop.f32.mrf.mxu0
  %v1536 = vadd.f32 %v1362, %v1535
  %1537 = vdwg.mxu0
  %1538 = vmatpush.bf16.msra.mxu0 %v1108
  %1539 = vmatpush.bf16.msra.mxu0 %v1106
  %1540 = vmatpush.bf16.msra.mxu0 %v1104
  %1541 = vmatpush.bf16.msra.mxu0 %v1102
  %1542 = vmatpush.bf16.msra.mxu0 %v1100
  %1543 = vmatpush.bf16.msra.mxu0 %v1098
  %1544 = vmatpush.bf16.msra.mxu0 %v1096
  %1545 = vmatpush.bf16.msra.mxu0 %v1094
  %1546 = vmatmul.bf16.gmra.mxu0 %v608
  %v1547 = vpop.f32.mrf.mxu0
  %v1548 = vadd.f32 %v1374, %v1547
  %v1549 = vpop.f32.mrf.mxu0
  %v1550 = vadd.f32 %v1376, %v1549
  %1551 = vmatmul.bf16.gmra.mxu0 %v612
  %v1552 = vpop.f32.mrf.mxu0
  %v1553 = vadd.f32 %v1379, %v1552
  %v1554 = vpop.f32.mrf.mxu0
  %v1555 = vadd.f32 %v1381, %v1554
  %1556 = vmatmul.bf16.gmra.mxu0 %v616
  %v1557 = vpop.f32.mrf.mxu0
  %v1558 = vadd.f32 %v1384, %v1557
  %v1559 = vpop.f32.mrf.mxu0
  %v1560 = vadd.f32 %v1386, %v1559
  %1561 = vmatmul.bf16.gmra.mxu0 %v620
  %v1562 = vpop.f32.mrf.mxu0
  %v1563 = vadd.f32 %v1389, %v1562
  %v1564 = vpop.f32.mrf.mxu0
  %v1565 = vadd.f32 %v1391, %v1564
  %1566 = vmatmul.bf16.gmra.mxu0 %v624
  %v1567 = vpop.f32.mrf.mxu0
  %v1568 = vadd.f32 %v1394, %v1567
  %v1569 = vpop.f32.mrf.mxu0
  %v1570 = vadd.f32 %v1396, %v1569
  %1571 = vmatmul.bf16.gmra.mxu0 %v628
  %v1572 = vpop.f32.mrf.mxu0
  %v1573 = vadd.f32 %v1399, %v1572
  %v1574 = vpop.f32.mrf.mxu0
  %v1575 = vadd.f32 %v1401, %v1574
  %1576 = vmatmul.bf16.gmra.mxu0 %v632
  %v1577 = vpop.f32.mrf.mxu0
  %v1578 = vadd.f32 %v1404, %v1577
  %v1579 = vpop.f32.mrf.mxu0
  %v1580 = vadd.f32 %v1406, %v1579
  %1581 = vmatmul.bf16.gmra.mxu0 %v636
  %v1582 = vpop.f32.mrf.mxu0
  %v1583 = vadd.f32 %v1409, %v1582
  %v1584 = vpop.f32.mrf.mxu0
  %v1585 = vadd.f32 %v1411, %v1584
  %1586 = vmatmul.bf16.gmra.mxu0 %v640
  %v1587 = vpop.f32.mrf.mxu0
  %v1588 = vadd.f32 %v1414, %v1587
  %v1589 = vpop.f32.mrf.mxu0
  %v1590 = vadd.f32 %v1416, %v1589
  %1591 = vmatmul.bf16.gmra.mxu0 %v644
  %v1592 = vpop.f32.mrf.mxu0
  %v1593 = vadd.f32 %v1419, %v1592
  %v1594 = vpop.f32.mrf.mxu0
  %v1595 = vadd.f32 %v1421, %v1594
  %1596 = vmatmul.bf16.gmra.mxu0 %v648
  %v1597 = vpop.f32.mrf.mxu0
  %v1598 = vadd.f32 %v1424, %v1597
  %v1599 = vpop.f32.mrf.mxu0
  %v1600 = vadd.f32 %v1426, %v1599
  %1601 = vmatmul.bf16.gmra.mxu0 %v652
  %v1602 = vpop.f32.mrf.mxu0
  %v1603 = vadd.f32 %v1429, %v1602
  %v1604 = vpop.f32.mrf.mxu0
  %v1605 = vadd.f32 %v1431, %v1604
  %1606 = vmatmul.bf16.gmra.mxu0 %v656
  %v1607 = vpop.f32.mrf.mxu0
  %v1608 = vadd.f32 %v1434, %v1607
  %v1609 = vpop.f32.mrf.mxu0
  %v1610 = vadd.f32 %v1436, %v1609
  %1611 = vmatmul.bf16.gmra.mxu0 %v660
  %v1612 = vpop.f32.mrf.mxu0
  %v1613 = vadd.f32 %v1439, %v1612
  %v1614 = vpop.f32.mrf.mxu0
  %v1615 = vadd.f32 %v1441, %v1614
  %1616 = vmatmul.bf16.gmra.mxu0 %v664
  %v1617 = vpop.f32.mrf.mxu0
  %v1618 = vadd.f32 %v1444, %v1617
  %v1619 = vpop.f32.mrf.mxu0
  %v1620 = vadd.f32 %v1446, %v1619
  %1621 = vmatmul.bf16.gmra.mxu0 %v668
  %v1622 = vpop.f32.mrf.mxu0
  %v1623 = vadd.f32 %v1449, %v1622
  %v1624 = vpop.f32.mrf.mxu0
  %v1625 = vadd.f32 %v1451, %v1624
  %1626 = vmatmul.bf16.gmra.mxu0 %v672
  %v1627 = vpop.f32.mrf.mxu0
  %v1628 = vadd.f32 %v1454, %v1627
  %v1629 = vpop.f32.mrf.mxu0
  %v1630 = vadd.f32 %v1456, %v1629
  %1631 = vmatmul.bf16.gmra.mxu0 %v676
  %v1632 = vpop.f32.mrf.mxu0
  %v1633 = vadd.f32 %v1459, %v1632
  %v1634 = vpop.f32.mrf.mxu0
  %v1635 = vadd.f32 %v1461, %v1634
  %1636 = vmatmul.bf16.gmra.mxu0 %v680
  %v1637 = vpop.f32.mrf.mxu0
  %v1638 = vadd.f32 %v1464, %v1637
  %v1639 = vpop.f32.mrf.mxu0
  %v1640 = vadd.f32 %v1466, %v1639
  %1641 = vmatmul.bf16.gmra.mxu0 %v684
  %v1642 = vpop.f32.mrf.mxu0
  %v1643 = vadd.f32 %v1469, %v1642
  %v1644 = vpop.f32.mrf.mxu0
  %v1645 = vadd.f32 %v1471, %v1644
  %1646 = vmatmul.bf16.gmra.mxu0 %v688
  %v1647 = vpop.f32.mrf.mxu0
  %v1648 = vadd.f32 %v1474, %v1647
  %v1649 = vpop.f32.mrf.mxu0
  %v1650 = vadd.f32 %v1476, %v1649
  %1651 = vmatmul.bf16.gmra.mxu0 %v692
  %v1652 = vpop.f32.mrf.mxu0
  %v1653 = vadd.f32 %v1479, %v1652
  %v1654 = vpop.f32.mrf.mxu0
  %v1655 = vadd.f32 %v1481, %v1654
  %1656 = vmatmul.bf16.gmra.mxu0 %v696
  %v1657 = vpop.f32.mrf.mxu0
  %v1658 = vadd.f32 %v1484, %v1657
  %v1659 = vpop.f32.mrf.mxu0
  %v1660 = vadd.f32 %v1486, %v1659
  %1661 = vmatmul.bf16.gmra.mxu0 %v700
  %v1662 = vpop.f32.mrf.mxu0
  %v1663 = vadd.f32 %v1489, %v1662
  %v1664 = vpop.f32.mrf.mxu0
  %v1665 = vadd.f32 %v1491, %v1664
  %1666 = vmatmul.bf16.gmra.mxu0 %v704
  %v1667 = vpop.f32.mrf.mxu0
  %v1668 = vadd.f32 %v1494, %v1667
  %v1669 = vpop.f32.mrf.mxu0
  %v1670 = vadd.f32 %v1496, %v1669
  %1671 = vmatmul.bf16.gmra.mxu0 %v708
  %v1672 = vpop.f32.mrf.mxu0
  %v1673 = vadd.f32 %v1499, %v1672
  %v1674 = vpop.f32.mrf.mxu0
  %v1675 = vadd.f32 %v1501, %v1674
  %1676 = vmatmul.bf16.gmra.mxu0 %v712
  %v1677 = vpop.f32.mrf.mxu0
  %v1678 = vadd.f32 %v1504, %v1677
  %v1679 = vpop.f32.mrf.mxu0
  %v1680 = vadd.f32 %v1506, %v1679
  %1681 = vmatmul.bf16.gmra.mxu0 %v716
  %v1682 = vpop.f32.mrf.mxu0
  %v1683 = vadd.f32 %v1509, %v1682
  %v1684 = vpop.f32.mrf.mxu0
  %v1685 = vadd.f32 %v1511, %v1684
  %1686 = vmatmul.bf16.gmra.mxu0 %v720
  %v1687 = vpop.f32.mrf.mxu0
  %v1688 = vadd.f32 %v1514, %v1687
  %v1689 = vpop.f32.mrf.mxu0
  %v1690 = vadd.f32 %v1516, %v1689
  %1691 = vmatmul.bf16.gmra.mxu0 %v724
  %v1692 = vpop.f32.mrf.mxu0
  %v1693 = vadd.f32 %v1519, %v1692
  %v1694 = vpop.f32.mrf.mxu0
  %v1695 = vadd.f32 %v1521, %v1694
  %1696 = vmatmul.bf16.gmra.mxu0 %v728
  %v1697 = vpop.f32.mrf.mxu0
  %v1698 = vadd.f32 %v1524, %v1697
  %v1699 = vpop.f32.mrf.mxu0
  %v1700 = vadd.f32 %v1526, %v1699
  %1701 = vmatmul.bf16.gmra.mxu0 %v732
  %v1702 = vpop.f32.mrf.mxu0
  %v1703 = vadd.f32 %v1529, %v1702
  %v1704 = vpop.f32.mrf.mxu0
  %v1705 = vadd.f32 %v1531, %v1704
  %1706 = vmatmul.bf16.gmra.mxu0 %v736
  %v1707 = vpop.f32.mrf.mxu0
  %v1708 = vadd.f32 %v1534, %v1707
  %v1709 = vpop.f32.mrf.mxu0
  %v1710 = vadd.f32 %v1536, %v1709
  %1711 = vdwg.mxu0
  %1712 = vmatpush.bf16.msra.mxu0 %v1124
  %1713 = vmatpush.bf16.msra.mxu0 %v1122
  %1714 = vmatpush.bf16.msra.mxu0 %v1120
  %1715 = vmatpush.bf16.msra.mxu0 %v1118
  %1716 = vmatpush.bf16.msra.mxu0 %v1116
  %1717 = vmatpush.bf16.msra.mxu0 %v1114
  %1718 = vmatpush.bf16.msra.mxu0 %v1112
  %1719 = vmatpush.bf16.msra.mxu0 %v1110
  %1720 = vmatmul.bf16.gmra.mxu0 %v609
  %v1721 = vpop.f32.mrf.mxu0
  %v1722 = vadd.f32 %v1548, %v1721
  %v1723 = vpop.f32.mrf.mxu0
  %v1724 = vadd.f32 %v1550, %v1723
  %1725 = vmatmul.bf16.gmra.mxu0 %v613
  %v1726 = vpop.f32.mrf.mxu0
  %v1727 = vadd.f32 %v1553, %v1726
  %v1728 = vpop.f32.mrf.mxu0
  %v1729 = vadd.f32 %v1555, %v1728
  %1730 = vmatmul.bf16.gmra.mxu0 %v617
  %v1731 = vpop.f32.mrf.mxu0
  %v1732 = vadd.f32 %v1558, %v1731
  %v1733 = vpop.f32.mrf.mxu0
  %v1734 = vadd.f32 %v1560, %v1733
  %1735 = vmatmul.bf16.gmra.mxu0 %v621
  %v1736 = vpop.f32.mrf.mxu0
  %v1737 = vadd.f32 %v1563, %v1736
  %v1738 = vpop.f32.mrf.mxu0
  %v1739 = vadd.f32 %v1565, %v1738
  %1740 = vmatmul.bf16.gmra.mxu0 %v625
  %v1741 = vpop.f32.mrf.mxu0
  %v1742 = vadd.f32 %v1568, %v1741
  %v1743 = vpop.f32.mrf.mxu0
  %v1744 = vadd.f32 %v1570, %v1743
  %1745 = vmatmul.bf16.gmra.mxu0 %v629
  %v1746 = vpop.f32.mrf.mxu0
  %v1747 = vadd.f32 %v1573, %v1746
  %v1748 = vpop.f32.mrf.mxu0
  %v1749 = vadd.f32 %v1575, %v1748
  %1750 = vmatmul.bf16.gmra.mxu0 %v633
  %v1751 = vpop.f32.mrf.mxu0
  %v1752 = vadd.f32 %v1578, %v1751
  %v1753 = vpop.f32.mrf.mxu0
  %v1754 = vadd.f32 %v1580, %v1753
  %1755 = vmatmul.bf16.gmra.mxu0 %v637
  %v1756 = vpop.f32.mrf.mxu0
  %v1757 = vadd.f32 %v1583, %v1756
  %v1758 = vpop.f32.mrf.mxu0
  %v1759 = vadd.f32 %v1585, %v1758
  %1760 = vmatmul.bf16.gmra.mxu0 %v641
  %v1761 = vpop.f32.mrf.mxu0
  %v1762 = vadd.f32 %v1588, %v1761
  %v1763 = vpop.f32.mrf.mxu0
  %v1764 = vadd.f32 %v1590, %v1763
  %1765 = vmatmul.bf16.gmra.mxu0 %v645
  %v1766 = vpop.f32.mrf.mxu0
  %v1767 = vadd.f32 %v1593, %v1766
  %v1768 = vpop.f32.mrf.mxu0
  %v1769 = vadd.f32 %v1595, %v1768
  %1770 = vmatmul.bf16.gmra.mxu0 %v649
  %v1771 = vpop.f32.mrf.mxu0
  %v1772 = vadd.f32 %v1598, %v1771
  %v1773 = vpop.f32.mrf.mxu0
  %v1774 = vadd.f32 %v1600, %v1773
  %1775 = vmatmul.bf16.gmra.mxu0 %v653
  %v1776 = vpop.f32.mrf.mxu0
  %v1777 = vadd.f32 %v1603, %v1776
  %v1778 = vpop.f32.mrf.mxu0
  %v1779 = vadd.f32 %v1605, %v1778
  %1780 = vmatmul.bf16.gmra.mxu0 %v657
  %v1781 = vpop.f32.mrf.mxu0
  %v1782 = vadd.f32 %v1608, %v1781
  %v1783 = vpop.f32.mrf.mxu0
  %v1784 = vadd.f32 %v1610, %v1783
  %1785 = vmatmul.bf16.gmra.mxu0 %v661
  %v1786 = vpop.f32.mrf.mxu0
  %v1787 = vadd.f32 %v1613, %v1786
  %v1788 = vpop.f32.mrf.mxu0
  %v1789 = vadd.f32 %v1615, %v1788
  %1790 = vmatmul.bf16.gmra.mxu0 %v665
  %v1791 = vpop.f32.mrf.mxu0
  %v1792 = vadd.f32 %v1618, %v1791
  %v1793 = vpop.f32.mrf.mxu0
  %v1794 = vadd.f32 %v1620, %v1793
  %1795 = vmatmul.bf16.gmra.mxu0 %v669
  %v1796 = vpop.f32.mrf.mxu0
  %v1797 = vadd.f32 %v1623, %v1796
  %v1798 = vpop.f32.mrf.mxu0
  %v1799 = vadd.f32 %v1625, %v1798
  %1800 = vmatmul.bf16.gmra.mxu0 %v673
  %v1801 = vpop.f32.mrf.mxu0
  %v1802 = vadd.f32 %v1628, %v1801
  %v1803 = vpop.f32.mrf.mxu0
  %v1804 = vadd.f32 %v1630, %v1803
  %1805 = vmatmul.bf16.gmra.mxu0 %v677
  %v1806 = vpop.f32.mrf.mxu0
  %v1807 = vadd.f32 %v1633, %v1806
  %v1808 = vpop.f32.mrf.mxu0
  %v1809 = vadd.f32 %v1635, %v1808
  %1810 = vmatmul.bf16.gmra.mxu0 %v681
  %v1811 = vpop.f32.mrf.mxu0
  %v1812 = vadd.f32 %v1638, %v1811
  %v1813 = vpop.f32.mrf.mxu0
  %v1814 = vadd.f32 %v1640, %v1813
  %1815 = vmatmul.bf16.gmra.mxu0 %v685
  %v1816 = vpop.f32.mrf.mxu0
  %v1817 = vadd.f32 %v1643, %v1816
  %v1818 = vpop.f32.mrf.mxu0
  %v1819 = vadd.f32 %v1645, %v1818
  %1820 = vmatmul.bf16.gmra.mxu0 %v689
  %v1821 = vpop.f32.mrf.mxu0
  %v1822 = vadd.f32 %v1648, %v1821
  %v1823 = vpop.f32.mrf.mxu0
  %v1824 = vadd.f32 %v1650, %v1823
  %1825 = vmatmul.bf16.gmra.mxu0 %v693
  %v1826 = vpop.f32.mrf.mxu0
  %v1827 = vadd.f32 %v1653, %v1826
  %v1828 = vpop.f32.mrf.mxu0
  %v1829 = vadd.f32 %v1655, %v1828
  %1830 = vmatmul.bf16.gmra.mxu0 %v697
  %v1831 = vpop.f32.mrf.mxu0
  %v1832 = vadd.f32 %v1658, %v1831
  %v1833 = vpop.f32.mrf.mxu0
  %v1834 = vadd.f32 %v1660, %v1833
  %1835 = vmatmul.bf16.gmra.mxu0 %v701
  %v1836 = vpop.f32.mrf.mxu0
  %v1837 = vadd.f32 %v1663, %v1836
  %v1838 = vpop.f32.mrf.mxu0
  %v1839 = vadd.f32 %v1665, %v1838
  %1840 = vmatmul.bf16.gmra.mxu0 %v705
  %v1841 = vpop.f32.mrf.mxu0
  %v1842 = vadd.f32 %v1668, %v1841
  %v1843 = vpop.f32.mrf.mxu0
  %v1844 = vadd.f32 %v1670, %v1843
  %1845 = vmatmul.bf16.gmra.mxu0 %v709
  %v1846 = vpop.f32.mrf.mxu0
  %v1847 = vadd.f32 %v1673, %v1846
  %v1848 = vpop.f32.mrf.mxu0
  %v1849 = vadd.f32 %v1675, %v1848
  %1850 = vmatmul.bf16.gmra.mxu0 %v713
  %v1851 = vpop.f32.mrf.mxu0
  %v1852 = vadd.f32 %v1678, %v1851
  %v1853 = vpop.f32.mrf.mxu0
  %v1854 = vadd.f32 %v1680, %v1853
  %1855 = vmatmul.bf16.gmra.mxu0 %v717
  %v1856 = vpop.f32.mrf.mxu0
  %v1857 = vadd.f32 %v1683, %v1856
  %v1858 = vpop.f32.mrf.mxu0
  %v1859 = vadd.f32 %v1685, %v1858
  %1860 = vmatmul.bf16.gmra.mxu0 %v721
  %v1861 = vpop.f32.mrf.mxu0
  %v1862 = vadd.f32 %v1688, %v1861
  %v1863 = vpop.f32.mrf.mxu0
  %v1864 = vadd.f32 %v1690, %v1863
  %1865 = vmatmul.bf16.gmra.mxu0 %v725
  %v1866 = vpop.f32.mrf.mxu0
  %v1867 = vadd.f32 %v1693, %v1866
  %v1868 = vpop.f32.mrf.mxu0
  %v1869 = vadd.f32 %v1695, %v1868
  %1870 = vmatmul.bf16.gmra.mxu0 %v729
  %v1871 = vpop.f32.mrf.mxu0
  %v1872 = vadd.f32 %v1698, %v1871
  %v1873 = vpop.f32.mrf.mxu0
  %v1874 = vadd.f32 %v1700, %v1873
  %1875 = vmatmul.bf16.gmra.mxu0 %v733
  %v1876 = vpop.f32.mrf.mxu0
  %v1877 = vadd.f32 %v1703, %v1876
  %v1878 = vpop.f32.mrf.mxu0
  %v1879 = vadd.f32 %v1705, %v1878
  %1880 = vmatmul.bf16.gmra.mxu0 %v737
  %v1881 = vpop.f32.mrf.mxu0
  %v1882 = vadd.f32 %v1708, %v1881
  %v1883 = vpop.f32.mrf.mxu0
  %v1884 = vadd.f32 %v1710, %v1883
  %1885 = vdwg.mxu0
  %1886 = vmatpush.bf16.msra.mxu0 %v1077
  %1887 = vmatpush.bf16.msra.mxu0 %v1075
  %1888 = vmatpush.bf16.msra.mxu0 %v1073
  %1889 = vmatpush.bf16.msra.mxu0 %v1071
  %1890 = vmatpush.bf16.msra.mxu0 %v1069
  %1891 = vmatpush.bf16.msra.mxu0 %v1067
  %1892 = vmatpush.bf16.msra.mxu0 %v1065
  %1893 = vmatpush.bf16.msra.mxu0 %v1063
  %1894 = vmatmul.bf16.gmra.mxu0 %v606
  %v1895 = vpop.f32.mrf.mxu0
  %v1896 = vadd.f32 0.0, %v1895
  %v1897 = vpop.f32.mrf.mxu0
  %v1898 = vadd.f32 0.0, %v1897
  %1899 = vmatmul.bf16.gmra.mxu0 %v610
  %v1900 = vpop.f32.mrf.mxu0
  %v1901 = vadd.f32 0.0, %v1900
  %v1902 = vpop.f32.mrf.mxu0
  %v1903 = vadd.f32 0.0, %v1902
  %1904 = vmatmul.bf16.gmra.mxu0 %v614
  %v1905 = vpop.f32.mrf.mxu0
  %v1906 = vadd.f32 0.0, %v1905
  %v1907 = vpop.f32.mrf.mxu0
  %v1908 = vadd.f32 0.0, %v1907
  %1909 = vmatmul.bf16.gmra.mxu0 %v618
  %v1910 = vpop.f32.mrf.mxu0
  %v1911 = vadd.f32 0.0, %v1910
  %v1912 = vpop.f32.mrf.mxu0
  %v1913 = vadd.f32 0.0, %v1912
  %1914 = vmatmul.bf16.gmra.mxu0 %v622
  %v1915 = vpop.f32.mrf.mxu0
  %v1916 = vadd.f32 0.0, %v1915
  %v1917 = vpop.f32.mrf.mxu0
  %v1918 = vadd.f32 0.0, %v1917
  %1919 = vmatmul.bf16.gmra.mxu0 %v626
  %v1920 = vpop.f32.mrf.mxu0
  %v1921 = vadd.f32 0.0, %v1920
  %v1922 = vpop.f32.mrf.mxu0
  %v1923 = vadd.f32 0.0, %v1922
  %1924 = vmatmul.bf16.gmra.mxu0 %v630
  %v1925 = vpop.f32.mrf.mxu0
  %v1926 = vadd.f32 0.0, %v1925
  %v1927 = vpop.f32.mrf.mxu0
  %v1928 = vadd.f32 0.0, %v1927
  %1929 = vmatmul.bf16.gmra.mxu0 %v634
  %v1930 = vpop.f32.mrf.mxu0
  %v1931 = vadd.f32 0.0, %v1930
  %v1932 = vpop.f32.mrf.mxu0
  %v1933 = vadd.f32 0.0, %v1932
  %1934 = vmatmul.bf16.gmra.mxu0 %v638
  %v1935 = vpop.f32.mrf.mxu0
  %v1936 = vadd.f32 0.0, %v1935
  %v1937 = vpop.f32.mrf.mxu0
  %v1938 = vadd.f32 0.0, %v1937
  %1939 = vmatmul.bf16.gmra.mxu0 %v642
  %v1940 = vpop.f32.mrf.mxu0
  %v1941 = vadd.f32 0.0, %v1940
  %v1942 = vpop.f32.mrf.mxu0
  %v1943 = vadd.f32 0.0, %v1942
  %1944 = vmatmul.bf16.gmra.mxu0 %v646
  %v1945 = vpop.f32.mrf.mxu0
  %v1946 = vadd.f32 0.0, %v1945
  %v1947 = vpop.f32.mrf.mxu0
  %v1948 = vadd.f32 0.0, %v1947
  %1949 = vmatmul.bf16.gmra.mxu0 %v650
  %v1950 = vpop.f32.mrf.mxu0
  %v1951 = vadd.f32 0.0, %v1950
  %v1952 = vpop.f32.mrf.mxu0
  %v1953 = vadd.f32 0.0, %v1952
  %1954 = vmatmul.bf16.gmra.mxu0 %v654
  %v1955 = vpop.f32.mrf.mxu0
  %v1956 = vadd.f32 0.0, %v1955
  %v1957 = vpop.f32.mrf.mxu0
  %v1958 = vadd.f32 0.0, %v1957
  %1959 = vmatmul.bf16.gmra.mxu0 %v658
  %v1960 = vpop.f32.mrf.mxu0
  %v1961 = vadd.f32 0.0, %v1960
  %v1962 = vpop.f32.mrf.mxu0
  %v1963 = vadd.f32 0.0, %v1962
  %1964 = vmatmul.bf16.gmra.mxu0 %v662
  %v1965 = vpop.f32.mrf.mxu0
  %v1966 = vadd.f32 0.0, %v1965
  %v1967 = vpop.f32.mrf.mxu0
  %v1968 = vadd.f32 0.0, %v1967
  %1969 = vmatmul.bf16.gmra.mxu0 %v666
  %v1970 = vpop.f32.mrf.mxu0
  %v1971 = vadd.f32 0.0, %v1970
  %v1972 = vpop.f32.mrf.mxu0
  %v1973 = vadd.f32 0.0, %v1972
  %1974 = vmatmul.bf16.gmra.mxu0 %v670
  %v1975 = vpop.f32.mrf.mxu0
  %v1976 = vadd.f32 0.0, %v1975
  %v1977 = vpop.f32.mrf.mxu0
  %v1978 = vadd.f32 0.0, %v1977
  %1979 = vmatmul.bf16.gmra.mxu0 %v674
  %v1980 = vpop.f32.mrf.mxu0
  %v1981 = vadd.f32 0.0, %v1980
  %v1982 = vpop.f32.mrf.mxu0
  %v1983 = vadd.f32 0.0, %v1982
  %1984 = vmatmul.bf16.gmra.mxu0 %v678
  %v1985 = vpop.f32.mrf.mxu0
  %v1986 = vadd.f32 0.0, %v1985
  %v1987 = vpop.f32.mrf.mxu0
  %v1988 = vadd.f32 0.0, %v1987
  %1989 = vmatmul.bf16.gmra.mxu0 %v682
  %v1990 = vpop.f32.mrf.mxu0
  %v1991 = vadd.f32 0.0, %v1990
  %v1992 = vpop.f32.mrf.mxu0
  %v1993 = vadd.f32 0.0, %v1992
  %1994 = vmatmul.bf16.gmra.mxu0 %v686
  %v1995 = vpop.f32.mrf.mxu0
  %v1996 = vadd.f32 0.0, %v1995
  %v1997 = vpop.f32.mrf.mxu0
  %v1998 = vadd.f32 0.0, %v1997
  %1999 = vmatmul.bf16.gmra.mxu0 %v690
  %v2000 = vpop.f32.mrf.mxu0
  %v2001 = vadd.f32 0.0, %v2000
  %v2002 = vpop.f32.mrf.mxu0
  %v2003 = vadd.f32 0.0, %v2002
  %2004 = vmatmul.bf16.gmra.mxu0 %v694
  %v2005 = vpop.f32.mrf.mxu0
  %v2006 = vadd.f32 0.0, %v2005
  %v2007 = vpop.f32.mrf.mxu0
  %v2008 = vadd.f32 0.0, %v2007
  %2009 = vmatmul.bf16.gmra.mxu0 %v698
  %v2010 = vpop.f32.mrf.mxu0
  %v2011 = vadd.f32 0.0, %v2010
  %v2012 = vpop.f32.mrf.mxu0
  %v2013 = vadd.f32 0.0, %v2012
  %2014 = vmatmul.bf16.gmra.mxu0 %v702
  %v2015 = vpop.f32.mrf.mxu0
  %v2016 = vadd.f32 0.0, %v2015
  %v2017 = vpop.f32.mrf.mxu0
  %v2018 = vadd.f32 0.0, %v2017
  %2019 = vmatmul.bf16.gmra.mxu0 %v706
  %v2020 = vpop.f32.mrf.mxu0
  %v2021 = vadd.f32 0.0, %v2020
  %v2022 = vpop.f32.mrf.mxu0
  %v2023 = vadd.f32 0.0, %v2022
  %2024 = vmatmul.bf16.gmra.mxu0 %v710
  %v2025 = vpop.f32.mrf.mxu0
  %v2026 = vadd.f32 0.0, %v2025
  %v2027 = vpop.f32.mrf.mxu0
  %v2028 = vadd.f32 0.0, %v2027
  %2029 = vmatmul.bf16.gmra.mxu0 %v714
  %v2030 = vpop.f32.mrf.mxu0
  %v2031 = vadd.f32 0.0, %v2030
  %v2032 = vpop.f32.mrf.mxu0
  %v2033 = vadd.f32 0.0, %v2032
  %2034 = vmatmul.bf16.gmra.mxu0 %v718
  %v2035 = vpop.f32.mrf.mxu0
  %v2036 = vadd.f32 0.0, %v2035
  %v2037 = vpop.f32.mrf.mxu0
  %v2038 = vadd.f32 0.0, %v2037
  %2039 = vmatmul.bf16.gmra.mxu0 %v722
  %v2040 = vpop.f32.mrf.mxu0
  %v2041 = vadd.f32 0.0, %v2040
  %v2042 = vpop.f32.mrf.mxu0
  %v2043 = vadd.f32 0.0, %v2042
  %2044 = vmatmul.bf16.gmra.mxu0 %v726
  %v2045 = vpop.f32.mrf.mxu0
  %v2046 = vadd.f32 0.0, %v2045
  %v2047 = vpop.f32.mrf.mxu0
  %v2048 = vadd.f32 0.0, %v2047
  %2049 = vmatmul.bf16.gmra.mxu0 %v730
  %v2050 = vpop.f32.mrf.mxu0
  %v2051 = vadd.f32 0.0, %v2050
  %v2052 = vpop.f32.mrf.mxu0
  %v2053 = vadd.f32 0.0, %v2052
  %2054 = vmatmul.bf16.gmra.mxu0 %v734
  %v2055 = vpop.f32.mrf.mxu0
  %v2056 = vadd.f32 0.0, %v2055
  %v2057 = vpop.f32.mrf.mxu0
  %v2058 = vadd.f32 0.0, %v2057
  %2059 = vdwg.mxu0
  %2060 = vmatpush.bf16.msra.mxu0 %v1093
  %2061 = vmatpush.bf16.msra.mxu0 %v1091
  %2062 = vmatpush.bf16.msra.mxu0 %v1089
  %2063 = vmatpush.bf16.msra.mxu0 %v1087
  %2064 = vmatpush.bf16.msra.mxu0 %v1085
  %2065 = vmatpush.bf16.msra.mxu0 %v1083
  %2066 = vmatpush.bf16.msra.mxu0 %v1081
  %2067 = vmatpush.bf16.msra.mxu0 %v1079
  %2068 = vmatmul.bf16.gmra.mxu0 %v607
  %v2069 = vpop.f32.mrf.mxu0
  %v2070 = vadd.f32 %v1896, %v2069
  %v2071 = vpop.f32.mrf.mxu0
  %v2072 = vadd.f32 %v1898, %v2071
  %2073 = vmatmul.bf16.gmra.mxu0 %v611
  %v2074 = vpop.f32.mrf.mxu0
  %v2075 = vadd.f32 %v1901, %v2074
  %v2076 = vpop.f32.mrf.mxu0
  %v2077 = vadd.f32 %v1903, %v2076
  %2078 = vmatmul.bf16.gmra.mxu0 %v615
  %v2079 = vpop.f32.mrf.mxu0
  %v2080 = vadd.f32 %v1906, %v2079
  %v2081 = vpop.f32.mrf.mxu0
  %v2082 = vadd.f32 %v1908, %v2081
  %2083 = vmatmul.bf16.gmra.mxu0 %v619
  %v2084 = vpop.f32.mrf.mxu0
  %v2085 = vadd.f32 %v1911, %v2084
  %v2086 = vpop.f32.mrf.mxu0
  %v2087 = vadd.f32 %v1913, %v2086
  %2088 = vmatmul.bf16.gmra.mxu0 %v623
  %v2089 = vpop.f32.mrf.mxu0
  %v2090 = vadd.f32 %v1916, %v2089
  %v2091 = vpop.f32.mrf.mxu0
  %v2092 = vadd.f32 %v1918, %v2091
  %2093 = vmatmul.bf16.gmra.mxu0 %v627
  %v2094 = vpop.f32.mrf.mxu0
  %v2095 = vadd.f32 %v1921, %v2094
  %v2096 = vpop.f32.mrf.mxu0
  %v2097 = vadd.f32 %v1923, %v2096
  %2098 = vmatmul.bf16.gmra.mxu0 %v631
  %v2099 = vpop.f32.mrf.mxu0
  %v2100 = vadd.f32 %v1926, %v2099
  %v2101 = vpop.f32.mrf.mxu0
  %v2102 = vadd.f32 %v1928, %v2101
  %2103 = vmatmul.bf16.gmra.mxu0 %v635
  %v2104 = vpop.f32.mrf.mxu0
  %v2105 = vadd.f32 %v1931, %v2104
  %v2106 = vpop.f32.mrf.mxu0
  %v2107 = vadd.f32 %v1933, %v2106
  %2108 = vmatmul.bf16.gmra.mxu0 %v639
  %v2109 = vpop.f32.mrf.mxu0
  %v2110 = vadd.f32 %v1936, %v2109
  %v2111 = vpop.f32.mrf.mxu0
  %v2112 = vadd.f32 %v1938, %v2111
  %2113 = vmatmul.bf16.gmra.mxu0 %v643
  %v2114 = vpop.f32.mrf.mxu0
  %v2115 = vadd.f32 %v1941, %v2114
  %v2116 = vpop.f32.mrf.mxu0
  %v2117 = vadd.f32 %v1943, %v2116
  %2118 = vmatmul.bf16.gmra.mxu0 %v647
  %v2119 = vpop.f32.mrf.mxu0
  %v2120 = vadd.f32 %v1946, %v2119
  %v2121 = vpop.f32.mrf.mxu0
  %v2122 = vadd.f32 %v1948, %v2121
  %2123 = vmatmul.bf16.gmra.mxu0 %v651
  %v2124 = vpop.f32.mrf.mxu0
  %v2125 = vadd.f32 %v1951, %v2124
  %v2126 = vpop.f32.mrf.mxu0
  %v2127 = vadd.f32 %v1953, %v2126
  %2128 = vmatmul.bf16.gmra.mxu0 %v655
  %v2129 = vpop.f32.mrf.mxu0
  %v2130 = vadd.f32 %v1956, %v2129
  %v2131 = vpop.f32.mrf.mxu0
  %v2132 = vadd.f32 %v1958, %v2131
  %2133 = vmatmul.bf16.gmra.mxu0 %v659
  %v2134 = vpop.f32.mrf.mxu0
  %v2135 = vadd.f32 %v1961, %v2134
  %v2136 = vpop.f32.mrf.mxu0
  %v2137 = vadd.f32 %v1963, %v2136
  %2138 = vmatmul.bf16.gmra.mxu0 %v663
  %v2139 = vpop.f32.mrf.mxu0
  %v2140 = vadd.f32 %v1966, %v2139
  %v2141 = vpop.f32.mrf.mxu0
  %v2142 = vadd.f32 %v1968, %v2141
  %2143 = vmatmul.bf16.gmra.mxu0 %v667
  %v2144 = vpop.f32.mrf.mxu0
  %v2145 = vadd.f32 %v1971, %v2144
  %v2146 = vpop.f32.mrf.mxu0
  %v2147 = vadd.f32 %v1973, %v2146
  %2148 = vmatmul.bf16.gmra.mxu0 %v671
  %v2149 = vpop.f32.mrf.mxu0
  %v2150 = vadd.f32 %v1976, %v2149
  %v2151 = vpop.f32.mrf.mxu0
  %v2152 = vadd.f32 %v1978, %v2151
  %2153 = vmatmul.bf16.gmra.mxu0 %v675
  %v2154 = vpop.f32.mrf.mxu0
  %v2155 = vadd.f32 %v1981, %v2154
  %v2156 = vpop.f32.mrf.mxu0
  %v2157 = vadd.f32 %v1983, %v2156
  %2158 = vmatmul.bf16.gmra.mxu0 %v679
  %v2159 = vpop.f32.mrf.mxu0
  %v2160 = vadd.f32 %v1986, %v2159
  %v2161 = vpop.f32.mrf.mxu0
  %v2162 = vadd.f32 %v1988, %v2161
  %2163 = vmatmul.bf16.gmra.mxu0 %v683
  %v2164 = vpop.f32.mrf.mxu0
  %v2165 = vadd.f32 %v1991, %v2164
  %v2166 = vpop.f32.mrf.mxu0
  %v2167 = vadd.f32 %v1993, %v2166
  %2168 = vmatmul.bf16.gmra.mxu0 %v687
  %v2169 = vpop.f32.mrf.mxu0
  %v2170 = vadd.f32 %v1996, %v2169
  %v2171 = vpop.f32.mrf.mxu0
  %v2172 = vadd.f32 %v1998, %v2171
  %2173 = vmatmul.bf16.gmra.mxu0 %v691
  %v2174 = vpop.f32.mrf.mxu0
  %v2175 = vadd.f32 %v2001, %v2174
  %v2176 = vpop.f32.mrf.mxu0
  %v2177 = vadd.f32 %v2003, %v2176
  %2178 = vmatmul.bf16.gmra.mxu0 %v695
  %v2179 = vpop.f32.mrf.mxu0
  %v2180 = vadd.f32 %v2006, %v2179
  %v2181 = vpop.f32.mrf.mxu0
  %v2182 = vadd.f32 %v2008, %v2181
  %2183 = vmatmul.bf16.gmra.mxu0 %v699
  %v2184 = vpop.f32.mrf.mxu0
  %v2185 = vadd.f32 %v2011, %v2184
  %v2186 = vpop.f32.mrf.mxu0
  %v2187 = vadd.f32 %v2013, %v2186
  %2188 = vmatmul.bf16.gmra.mxu0 %v703
  %v2189 = vpop.f32.mrf.mxu0
  %v2190 = vadd.f32 %v2016, %v2189
  %v2191 = vpop.f32.mrf.mxu0
  %v2192 = vadd.f32 %v2018, %v2191
  %2193 = vmatmul.bf16.gmra.mxu0 %v707
  %v2194 = vpop.f32.mrf.mxu0
  %v2195 = vadd.f32 %v2021, %v2194
  %v2196 = vpop.f32.mrf.mxu0
  %v2197 = vadd.f32 %v2023, %v2196
  %2198 = vmatmul.bf16.gmra.mxu0 %v711
  %v2199 = vpop.f32.mrf.mxu0
  %v2200 = vadd.f32 %v2026, %v2199
  %v2201 = vpop.f32.mrf.mxu0
  %v2202 = vadd.f32 %v2028, %v2201
  %2203 = vmatmul.bf16.gmra.mxu0 %v715
  %v2204 = vpop.f32.mrf.mxu0
  %v2205 = vadd.f32 %v2031, %v2204
  %v2206 = vpop.f32.mrf.mxu0
  %v2207 = vadd.f32 %v2033, %v2206
  %2208 = vmatmul.bf16.gmra.mxu0 %v719
  %v2209 = vpop.f32.mrf.mxu0
  %v2210 = vadd.f32 %v2036, %v2209
  %v2211 = vpop.f32.mrf.mxu0
  %v2212 = vadd.f32 %v2038, %v2211
  %2213 = vmatmul.bf16.gmra.mxu0 %v723
  %v2214 = vpop.f32.mrf.mxu0
  %v2215 = vadd.f32 %v2041, %v2214
  %v2216 = vpop.f32.mrf.mxu0
  %v2217 = vadd.f32 %v2043, %v2216
  %2218 = vmatmul.bf16.gmra.mxu0 %v727
  %v2219 = vpop.f32.mrf.mxu0
  %v2220 = vadd.f32 %v2046, %v2219
  %v2221 = vpop.f32.mrf.mxu0
  %v2222 = vadd.f32 %v2048, %v2221
  %2223 = vmatmul.bf16.gmra.mxu0 %v731
  %v2224 = vpop.f32.mrf.mxu0
  %v2225 = vadd.f32 %v2051, %v2224
  %v2226 = vpop.f32.mrf.mxu0
  %v2227 = vadd.f32 %v2053, %v2226
  %2228 = vmatmul.bf16.gmra.mxu0 %v735
  %v2229 = vpop.f32.mrf.mxu0
  %v2230 = vadd.f32 %v2056, %v2229
  %v2231 = vpop.f32.mrf.mxu0
  %v2232 = vadd.f32 %v2058, %v2231
  %2233 = vdwg.mxu0
  %2234 = vmatpush.bf16.msra.mxu0 %v1109
  %2235 = vmatpush.bf16.msra.mxu0 %v1107
  %2236 = vmatpush.bf16.msra.mxu0 %v1105
  %2237 = vmatpush.bf16.msra.mxu0 %v1103
  %2238 = vmatpush.bf16.msra.mxu0 %v1101
  %2239 = vmatpush.bf16.msra.mxu0 %v1099
  %2240 = vmatpush.bf16.msra.mxu0 %v1097
  %2241 = vmatpush.bf16.msra.mxu0 %v1095
  %2242 = vmatmul.bf16.gmra.mxu0 %v608
  %v2243 = vpop.f32.mrf.mxu0
  %v2244 = vadd.f32 %v2070, %v2243
  %v2245 = vpop.f32.mrf.mxu0
  %v2246 = vadd.f32 %v2072, %v2245
  %2247 = vmatmul.bf16.gmra.mxu0 %v612
  %v2248 = vpop.f32.mrf.mxu0
  %v2249 = vadd.f32 %v2075, %v2248
  %v2250 = vpop.f32.mrf.mxu0
  %v2251 = vadd.f32 %v2077, %v2250
  %2252 = vmatmul.bf16.gmra.mxu0 %v616
  %v2253 = vpop.f32.mrf.mxu0
  %v2254 = vadd.f32 %v2080, %v2253
  %v2255 = vpop.f32.mrf.mxu0
  %v2256 = vadd.f32 %v2082, %v2255
  %2257 = vmatmul.bf16.gmra.mxu0 %v620
  %v2258 = vpop.f32.mrf.mxu0
  %v2259 = vadd.f32 %v2085, %v2258
  %v2260 = vpop.f32.mrf.mxu0
  %v2261 = vadd.f32 %v2087, %v2260
  %2262 = vmatmul.bf16.gmra.mxu0 %v624
  %v2263 = vpop.f32.mrf.mxu0
  %v2264 = vadd.f32 %v2090, %v2263
  %v2265 = vpop.f32.mrf.mxu0
  %v2266 = vadd.f32 %v2092, %v2265
  %2267 = vmatmul.bf16.gmra.mxu0 %v628
  %v2268 = vpop.f32.mrf.mxu0
  %v2269 = vadd.f32 %v2095, %v2268
  %v2270 = vpop.f32.mrf.mxu0
  %v2271 = vadd.f32 %v2097, %v2270
  %2272 = vmatmul.bf16.gmra.mxu0 %v632
  %v2273 = vpop.f32.mrf.mxu0
  %v2274 = vadd.f32 %v2100, %v2273
  %v2275 = vpop.f32.mrf.mxu0
  %v2276 = vadd.f32 %v2102, %v2275
  %2277 = vmatmul.bf16.gmra.mxu0 %v636
  %v2278 = vpop.f32.mrf.mxu0
  %v2279 = vadd.f32 %v2105, %v2278
  %v2280 = vpop.f32.mrf.mxu0
  %v2281 = vadd.f32 %v2107, %v2280
  %2282 = vmatmul.bf16.gmra.mxu0 %v640
  %v2283 = vpop.f32.mrf.mxu0
  %v2284 = vadd.f32 %v2110, %v2283
  %v2285 = vpop.f32.mrf.mxu0
  %v2286 = vadd.f32 %v2112, %v2285
  %2287 = vmatmul.bf16.gmra.mxu0 %v644
  %v2288 = vpop.f32.mrf.mxu0
  %v2289 = vadd.f32 %v2115, %v2288
  %v2290 = vpop.f32.mrf.mxu0
  %v2291 = vadd.f32 %v2117, %v2290
  %2292 = vmatmul.bf16.gmra.mxu0 %v648
  %v2293 = vpop.f32.mrf.mxu0
  %v2294 = vadd.f32 %v2120, %v2293
  %v2295 = vpop.f32.mrf.mxu0
  %v2296 = vadd.f32 %v2122, %v2295
  %2297 = vmatmul.bf16.gmra.mxu0 %v652
  %v2298 = vpop.f32.mrf.mxu0
  %v2299 = vadd.f32 %v2125, %v2298
  %v2300 = vpop.f32.mrf.mxu0
  %v2301 = vadd.f32 %v2127, %v2300
  %2302 = vmatmul.bf16.gmra.mxu0 %v656
  %v2303 = vpop.f32.mrf.mxu0
  %v2304 = vadd.f32 %v2130, %v2303
  %v2305 = vpop.f32.mrf.mxu0
  %v2306 = vadd.f32 %v2132, %v2305
  %2307 = vmatmul.bf16.gmra.mxu0 %v660
  %v2308 = vpop.f32.mrf.mxu0
  %v2309 = vadd.f32 %v2135, %v2308
  %v2310 = vpop.f32.mrf.mxu0
  %v2311 = vadd.f32 %v2137, %v2310
  %2312 = vmatmul.bf16.gmra.mxu0 %v664
  %v2313 = vpop.f32.mrf.mxu0
  %v2314 = vadd.f32 %v2140, %v2313
  %v2315 = vpop.f32.mrf.mxu0
  %v2316 = vadd.f32 %v2142, %v2315
  %2317 = vmatmul.bf16.gmra.mxu0 %v668
  %v2318 = vpop.f32.mrf.mxu0
  %v2319 = vadd.f32 %v2145, %v2318
  %v2320 = vpop.f32.mrf.mxu0
  %v2321 = vadd.f32 %v2147, %v2320
  %2322 = vmatmul.bf16.gmra.mxu0 %v672
  %v2323 = vpop.f32.mrf.mxu0
  %v2324 = vadd.f32 %v2150, %v2323
  %v2325 = vpop.f32.mrf.mxu0
  %v2326 = vadd.f32 %v2152, %v2325
  %2327 = vmatmul.bf16.gmra.mxu0 %v676
  %v2328 = vpop.f32.mrf.mxu0
  %v2329 = vadd.f32 %v2155, %v2328
  %v2330 = vpop.f32.mrf.mxu0
  %v2331 = vadd.f32 %v2157, %v2330
  %2332 = vmatmul.bf16.gmra.mxu0 %v680
  %v2333 = vpop.f32.mrf.mxu0
  %v2334 = vadd.f32 %v2160, %v2333
  %v2335 = vpop.f32.mrf.mxu0
  %v2336 = vadd.f32 %v2162, %v2335
  %2337 = vmatmul.bf16.gmra.mxu0 %v684
  %v2338 = vpop.f32.mrf.mxu0
  %v2339 = vadd.f32 %v2165, %v2338
  %v2340 = vpop.f32.mrf.mxu0
  %v2341 = vadd.f32 %v2167, %v2340
  %2342 = vmatmul.bf16.gmra.mxu0 %v688
  %v2343 = vpop.f32.mrf.mxu0
  %v2344 = vadd.f32 %v2170, %v2343
  %v2345 = vpop.f32.mrf.mxu0
  %v2346 = vadd.f32 %v2172, %v2345
  %2347 = vmatmul.bf16.gmra.mxu0 %v692
  %v2348 = vpop.f32.mrf.mxu0
  %v2349 = vadd.f32 %v2175, %v2348
  %v2350 = vpop.f32.mrf.mxu0
  %v2351 = vadd.f32 %v2177, %v2350
  %2352 = vmatmul.bf16.gmra.mxu0 %v696
  %v2353 = vpop.f32.mrf.mxu0
  %v2354 = vadd.f32 %v2180, %v2353
  %v2355 = vpop.f32.mrf.mxu0
  %v2356 = vadd.f32 %v2182, %v2355
  %2357 = vmatmul.bf16.gmra.mxu0 %v700
  %v2358 = vpop.f32.mrf.mxu0
  %v2359 = vadd.f32 %v2185, %v2358
  %v2360 = vpop.f32.mrf.mxu0
  %v2361 = vadd.f32 %v2187, %v2360
  %2362 = vmatmul.bf16.gmra.mxu0 %v704
  %v2363 = vpop.f32.mrf.mxu0
  %v2364 = vadd.f32 %v2190, %v2363
  %v2365 = vpop.f32.mrf.mxu0
  %v2366 = vadd.f32 %v2192, %v2365
  %2367 = vmatmul.bf16.gmra.mxu0 %v708
  %v2368 = vpop.f32.mrf.mxu0
  %v2369 = vadd.f32 %v2195, %v2368
  %v2370 = vpop.f32.mrf.mxu0
  %v2371 = vadd.f32 %v2197, %v2370
  %2372 = vmatmul.bf16.gmra.mxu0 %v712
  %v2373 = vpop.f32.mrf.mxu0
  %v2374 = vadd.f32 %v2200, %v2373
  %v2375 = vpop.f32.mrf.mxu0
  %v2376 = vadd.f32 %v2202, %v2375
  %2377 = vmatmul.bf16.gmra.mxu0 %v716
  %v2378 = vpop.f32.mrf.mxu0
  %v2379 = vadd.f32 %v2205, %v2378
  %v2380 = vpop.f32.mrf.mxu0
  %v2381 = vadd.f32 %v2207, %v2380
  %2382 = vmatmul.bf16.gmra.mxu0 %v720
  %v2383 = vpop.f32.mrf.mxu0
  %v2384 = vadd.f32 %v2210, %v2383
  %v2385 = vpop.f32.mrf.mxu0
  %v2386 = vadd.f32 %v2212, %v2385
  %2387 = vmatmul.bf16.gmra.mxu0 %v724
  %v2388 = vpop.f32.mrf.mxu0
  %v2389 = vadd.f32 %v2215, %v2388
  %v2390 = vpop.f32.mrf.mxu0
  %v2391 = vadd.f32 %v2217, %v2390
  %2392 = vmatmul.bf16.gmra.mxu0 %v728
  %v2393 = vpop.f32.mrf.mxu0
  %v2394 = vadd.f32 %v2220, %v2393
  %v2395 = vpop.f32.mrf.mxu0
  %v2396 = vadd.f32 %v2222, %v2395
  %2397 = vmatmul.bf16.gmra.mxu0 %v732
  %v2398 = vpop.f32.mrf.mxu0
  %v2399 = vadd.f32 %v2225, %v2398
  %v2400 = vpop.f32.mrf.mxu0
  %v2401 = vadd.f32 %v2227, %v2400
  %2402 = vmatmul.bf16.gmra.mxu0 %v736
  %v2403 = vpop.f32.mrf.mxu0
  %v2404 = vadd.f32 %v2230, %v2403
  %v2405 = vpop.f32.mrf.mxu0
  %v2406 = vadd.f32 %v2232, %v2405
  %2407 = vdwg.mxu0
  %2408 = vmatpush.bf16.msra.mxu0 %v1125
  %2409 = vmatpush.bf16.msra.mxu0 %v1123
  %2410 = vmatpush.bf16.msra.mxu0 %v1121
  %2411 = vmatpush.bf16.msra.mxu0 %v1119
  %2412 = vmatpush.bf16.msra.mxu0 %v1117
  %2413 = vmatpush.bf16.msra.mxu0 %v1115
  %2414 = vmatpush.bf16.msra.mxu0 %v1113
  %2415 = vmatpush.bf16.msra.mxu0 %v1111
  %2416 = vmatmul.bf16.gmra.mxu0 %v609
  %v2417 = vpop.f32.mrf.mxu0
  %v2418 = vadd.f32 %v2244, %v2417
  %v2419 = vpop.f32.mrf.mxu0
  %v2420 = vadd.f32 %v2246, %v2419
  %2421 = vmatmul.bf16.gmra.mxu0 %v613
  %v2422 = vpop.f32.mrf.mxu0
  %v2423 = vadd.f32 %v2249, %v2422
  %v2424 = vpop.f32.mrf.mxu0
  %v2425 = vadd.f32 %v2251, %v2424
  %2426 = vmatmul.bf16.gmra.mxu0 %v617
  %v2427 = vpop.f32.mrf.mxu0
  %v2428 = vadd.f32 %v2254, %v2427
  %v2429 = vpop.f32.mrf.mxu0
  %v2430 = vadd.f32 %v2256, %v2429
  %2431 = vmatmul.bf16.gmra.mxu0 %v621
  %v2432 = vpop.f32.mrf.mxu0
  %v2433 = vadd.f32 %v2259, %v2432
  %v2434 = vpop.f32.mrf.mxu0
  %v2435 = vadd.f32 %v2261, %v2434
  %2436 = vmatmul.bf16.gmra.mxu0 %v625
  %v2437 = vpop.f32.mrf.mxu0
  %v2438 = vadd.f32 %v2264, %v2437
  %v2439 = vpop.f32.mrf.mxu0
  %v2440 = vadd.f32 %v2266, %v2439
  %2441 = vmatmul.bf16.gmra.mxu0 %v629
  %v2442 = vpop.f32.mrf.mxu0
  %v2443 = vadd.f32 %v2269, %v2442
  %v2444 = vpop.f32.mrf.mxu0
  %v2445 = vadd.f32 %v2271, %v2444
  %2446 = vmatmul.bf16.gmra.mxu0 %v633
  %v2447 = vpop.f32.mrf.mxu0
  %v2448 = vadd.f32 %v2274, %v2447
  %v2449 = vpop.f32.mrf.mxu0
  %v2450 = vadd.f32 %v2276, %v2449
  %2451 = vmatmul.bf16.gmra.mxu0 %v637
  %v2452 = vpop.f32.mrf.mxu0
  %v2453 = vadd.f32 %v2279, %v2452
  %v2454 = vpop.f32.mrf.mxu0
  %v2455 = vadd.f32 %v2281, %v2454
  %2456 = vmatmul.bf16.gmra.mxu0 %v641
  %v2457 = vpop.f32.mrf.mxu0
  %v2458 = vadd.f32 %v2284, %v2457
  %v2459 = vpop.f32.mrf.mxu0
  %v2460 = vadd.f32 %v2286, %v2459
  %2461 = vmatmul.bf16.gmra.mxu0 %v645
  %v2462 = vpop.f32.mrf.mxu0
  %v2463 = vadd.f32 %v2289, %v2462
  %v2464 = vpop.f32.mrf.mxu0
  %v2465 = vadd.f32 %v2291, %v2464
  %2466 = vmatmul.bf16.gmra.mxu0 %v649
  %v2467 = vpop.f32.mrf.mxu0
  %v2468 = vadd.f32 %v2294, %v2467
  %v2469 = vpop.f32.mrf.mxu0
  %v2470 = vadd.f32 %v2296, %v2469
  %2471 = vmatmul.bf16.gmra.mxu0 %v653
  %v2472 = vpop.f32.mrf.mxu0
  %v2473 = vadd.f32 %v2299, %v2472
  %v2474 = vpop.f32.mrf.mxu0
  %v2475 = vadd.f32 %v2301, %v2474
  %2476 = vmatmul.bf16.gmra.mxu0 %v657
  %v2477 = vpop.f32.mrf.mxu0
  %v2478 = vadd.f32 %v2304, %v2477
  %v2479 = vpop.f32.mrf.mxu0
  %v2480 = vadd.f32 %v2306, %v2479
  %2481 = vmatmul.bf16.gmra.mxu0 %v661
  %v2482 = vpop.f32.mrf.mxu0
  %v2483 = vadd.f32 %v2309, %v2482
  %v2484 = vpop.f32.mrf.mxu0
  %v2485 = vadd.f32 %v2311, %v2484
  %2486 = vmatmul.bf16.gmra.mxu0 %v665
  %v2487 = vpop.f32.mrf.mxu0
  %v2488 = vadd.f32 %v2314, %v2487
  %v2489 = vpop.f32.mrf.mxu0
  %v2490 = vadd.f32 %v2316, %v2489
  %2491 = vmatmul.bf16.gmra.mxu0 %v669
  %v2492 = vpop.f32.mrf.mxu0
  %v2493 = vadd.f32 %v2319, %v2492
  %v2494 = vpop.f32.mrf.mxu0
  %v2495 = vadd.f32 %v2321, %v2494
  %2496 = vmatmul.bf16.gmra.mxu0 %v673
  %v2497 = vpop.f32.mrf.mxu0
  %v2498 = vadd.f32 %v2324, %v2497
  %v2499 = vpop.f32.mrf.mxu0
  %v2500 = vadd.f32 %v2326, %v2499
  %2501 = vmatmul.bf16.gmra.mxu0 %v677
  %v2502 = vpop.f32.mrf.mxu0
  %v2503 = vadd.f32 %v2329, %v2502
  %v2504 = vpop.f32.mrf.mxu0
  %v2505 = vadd.f32 %v2331, %v2504
  %2506 = vmatmul.bf16.gmra.mxu0 %v681
  %v2507 = vpop.f32.mrf.mxu0
  %v2508 = vadd.f32 %v2334, %v2507
  %v2509 = vpop.f32.mrf.mxu0
  %v2510 = vadd.f32 %v2336, %v2509
  %2511 = vmatmul.bf16.gmra.mxu0 %v685
  %v2512 = vpop.f32.mrf.mxu0
  %v2513 = vadd.f32 %v2339, %v2512
  %v2514 = vpop.f32.mrf.mxu0
  %v2515 = vadd.f32 %v2341, %v2514
  %2516 = vmatmul.bf16.gmra.mxu0 %v689
  %v2517 = vpop.f32.mrf.mxu0
  %v2518 = vadd.f32 %v2344, %v2517
  %v2519 = vpop.f32.mrf.mxu0
  %v2520 = vadd.f32 %v2346, %v2519
  %2521 = vmatmul.bf16.gmra.mxu0 %v693
  %v2522 = vpop.f32.mrf.mxu0
  %v2523 = vadd.f32 %v2349, %v2522
  %v2524 = vpop.f32.mrf.mxu0
  %v2525 = vadd.f32 %v2351, %v2524
  %2526 = vmatmul.bf16.gmra.mxu0 %v697
  %v2527 = vpop.f32.mrf.mxu0
  %v2528 = vadd.f32 %v2354, %v2527
  %v2529 = vpop.f32.mrf.mxu0
  %v2530 = vadd.f32 %v2356, %v2529
  %2531 = vmatmul.bf16.gmra.mxu0 %v701
  %v2532 = vpop.f32.mrf.mxu0
  %v2533 = vadd.f32 %v2359, %v2532
  %v2534 = vpop.f32.mrf.mxu0
  %v2535 = vadd.f32 %v2361, %v2534
  %2536 = vmatmul.bf16.gmra.mxu0 %v705
  %v2537 = vpop.f32.mrf.mxu0
  %v2538 = vadd.f32 %v2364, %v2537
  %v2539 = vpop.f32.mrf.mxu0
  %v2540 = vadd.f32 %v2366, %v2539
  %2541 = vmatmul.bf16.gmra.mxu0 %v709
  %v2542 = vpop.f32.mrf.mxu0
  %v2543 = vadd.f32 %v2369, %v2542
  %v2544 = vpop.f32.mrf.mxu0
  %v2545 = vadd.f32 %v2371, %v2544
  %2546 = vmatmul.bf16.gmra.mxu0 %v713
  %v2547 = vpop.f32.mrf.mxu0
  %v2548 = vadd.f32 %v2374, %v2547
  %v2549 = vpop.f32.mrf.mxu0
  %v2550 = vadd.f32 %v2376, %v2549
  %2551 = vmatmul.bf16.gmra.mxu0 %v717
  %v2552 = vpop.f32.mrf.mxu0
  %v2553 = vadd.f32 %v2379, %v2552
  %v2554 = vpop.f32.mrf.mxu0
  %v2555 = vadd.f32 %v2381, %v2554
  %2556 = vmatmul.bf16.gmra.mxu0 %v721
  %v2557 = vpop.f32.mrf.mxu0
  %v2558 = vadd.f32 %v2384, %v2557
  %v2559 = vpop.f32.mrf.mxu0
  %v2560 = vadd.f32 %v2386, %v2559
  %2561 = vmatmul.bf16.gmra.mxu0 %v725
  %v2562 = vpop.f32.mrf.mxu0
  %v2563 = vadd.f32 %v2389, %v2562
  %v2564 = vpop.f32.mrf.mxu0
  %v2565 = vadd.f32 %v2391, %v2564
  %2566 = vmatmul.bf16.gmra.mxu0 %v729
  %v2567 = vpop.f32.mrf.mxu0
  %v2568 = vadd.f32 %v2394, %v2567
  %v2569 = vpop.f32.mrf.mxu0
  %v2570 = vadd.f32 %v2396, %v2569
  %2571 = vmatmul.bf16.gmra.mxu0 %v733
  %v2572 = vpop.f32.mrf.mxu0
  %v2573 = vadd.f32 %v2399, %v2572
  %v2574 = vpop.f32.mrf.mxu0
  %v2575 = vadd.f32 %v2401, %v2574
  %2576 = vmatmul.bf16.gmra.mxu0 %v737
  %v2577 = vpop.f32.mrf.mxu0
  %v2578 = vadd.f32 %v2404, %v2577
  %v2579 = vpop.f32.mrf.mxu0
  %v2580 = vadd.f32 %v2406, %v2579
  %2581 = vdwg.mxu0
  %v2582 = vmul.f32 %v1722, %v1722
  %v2583 = vmul.f32 %v2418, %v2418
  %v2584 = vmul.f32 %v1724, %v1724
  %v2585 = vmul.f32 %v2420, %v2420
  %v2586 = vmul.f32 %v1727, %v1727
  %v2587 = vmul.f32 %v2423, %v2423
  %v2588 = vmul.f32 %v1729, %v1729
  %v2589 = vmul.f32 %v2425, %v2425
  %v2590 = vmul.f32 %v1732, %v1732
  %v2591 = vmul.f32 %v2428, %v2428
  %v2592 = vmul.f32 %v1734, %v1734
  %v2593 = vmul.f32 %v2430, %v2430
  %v2594 = vmul.f32 %v1737, %v1737
  %v2595 = vmul.f32 %v2433, %v2433
  %v2596 = vmul.f32 %v1739, %v1739
  %v2597 = vmul.f32 %v2435, %v2435
  %v2598 = vmul.f32 %v1742, %v1742
  %v2599 = vmul.f32 %v2438, %v2438
  %v2600 = vmul.f32 %v1744, %v1744
  %v2601 = vmul.f32 %v2440, %v2440
  %v2602 = vmul.f32 %v1747, %v1747
  %v2603 = vmul.f32 %v2443, %v2443
  %v2604 = vmul.f32 %v1749, %v1749
  %v2605 = vmul.f32 %v2445, %v2445
  %v2606 = vmul.f32 %v1752, %v1752
  %v2607 = vmul.f32 %v2448, %v2448
  %v2608 = vmul.f32 %v1754, %v1754
  %v2609 = vmul.f32 %v2450, %v2450
  %v2610 = vmul.f32 %v1757, %v1757
  %v2611 = vmul.f32 %v2453, %v2453
  %v2612 = vmul.f32 %v1759, %v1759
  %v2613 = vmul.f32 %v2455, %v2455
  %v2614 = vmul.f32 %v1762, %v1762
  %v2615 = vmul.f32 %v2458, %v2458
  %v2616 = vmul.f32 %v1764, %v1764
  %v2617 = vmul.f32 %v2460, %v2460
  %v2618 = vmul.f32 %v1767, %v1767
  %v2619 = vmul.f32 %v2463, %v2463
  %v2620 = vmul.f32 %v1769, %v1769
  %v2621 = vmul.f32 %v2465, %v2465
  %v2622 = vmul.f32 %v1772, %v1772
  %v2623 = vmul.f32 %v2468, %v2468
  %v2624 = vmul.f32 %v1774, %v1774
  %v2625 = vmul.f32 %v2470, %v2470
  %v2626 = vmul.f32 %v1777, %v1777
  %v2627 = vmul.f32 %v2473, %v2473
  %v2628 = vmul.f32 %v1779, %v1779
  %v2629 = vmul.f32 %v2475, %v2475
  %v2630 = vmul.f32 %v1782, %v1782
  %v2631 = vmul.f32 %v2478, %v2478
  %v2632 = vmul.f32 %v1784, %v1784
  %v2633 = vmul.f32 %v2480, %v2480
  %v2634 = vmul.f32 %v1787, %v1787
  %v2635 = vmul.f32 %v2483, %v2483
  %v2636 = vmul.f32 %v1789, %v1789
  %v2637 = vmul.f32 %v2485, %v2485
  %v2638 = vmul.f32 %v1792, %v1792
  %v2639 = vmul.f32 %v2488, %v2488
  %v2640 = vmul.f32 %v1794, %v1794
  %v2641 = vmul.f32 %v2490, %v2490
  %v2642 = vmul.f32 %v1797, %v1797
  %v2643 = vmul.f32 %v2493, %v2493
  %v2644 = vmul.f32 %v1799, %v1799
  %v2645 = vmul.f32 %v2495, %v2495
  %v2646 = vmul.f32 %v1802, %v1802
  %v2647 = vmul.f32 %v2498, %v2498
  %v2648 = vmul.f32 %v1804, %v1804
  %v2649 = vmul.f32 %v2500, %v2500
  %v2650 = vmul.f32 %v1807, %v1807
  %v2651 = vmul.f32 %v2503, %v2503
  %v2652 = vmul.f32 %v1809, %v1809
  %v2653 = vmul.f32 %v2505, %v2505
  %v2654 = vmul.f32 %v1812, %v1812
  %v2655 = vmul.f32 %v2508, %v2508
  %v2656 = vmul.f32 %v1814, %v1814
  %v2657 = vmul.f32 %v2510, %v2510
  %v2658 = vmul.f32 %v1817, %v1817
  %v2659 = vmul.f32 %v2513, %v2513
  %v2660 = vmul.f32 %v1819, %v1819
  %v2661 = vmul.f32 %v2515, %v2515
  %v2662 = vmul.f32 %v1822, %v1822
  %v2663 = vmul.f32 %v2518, %v2518
  %v2664 = vmul.f32 %v1824, %v1824
  %v2665 = vmul.f32 %v2520, %v2520
  %v2666 = vmul.f32 %v1827, %v1827
  %v2667 = vmul.f32 %v2523, %v2523
  %v2668 = vmul.f32 %v1829, %v1829
  %v2669 = vmul.f32 %v2525, %v2525
  %v2670 = vmul.f32 %v1832, %v1832
  %v2671 = vmul.f32 %v2528, %v2528
  %v2672 = vmul.f32 %v1834, %v1834
  %v2673 = vmul.f32 %v2530, %v2530
  %v2674 = vmul.f32 %v1837, %v1837
  %v2675 = vmul.f32 %v2533, %v2533
  %v2676 = vmul.f32 %v1839, %v1839
  %v2677 = vmul.f32 %v2535, %v2535
  %v2678 = vmul.f32 %v1842, %v1842
  %v2679 = vmul.f32 %v2538, %v2538
  %v2680 = vmul.f32 %v1844, %v1844
  %v2681 = vmul.f32 %v2540, %v2540
  %v2682 = vmul.f32 %v1847, %v1847
  %v2683 = vmul.f32 %v2543, %v2543
  %v2684 = vmul.f32 %v1849, %v1849
  %v2685 = vmul.f32 %v2545, %v2545
  %v2686 = vmul.f32 %v1852, %v1852
  %v2687 = vmul.f32 %v2548, %v2548
  %v2688 = vmul.f32 %v1854, %v1854
  %v2689 = vmul.f32 %v2550, %v2550
  %v2690 = vmul.f32 %v1857, %v1857
  %v2691 = vmul.f32 %v2553, %v2553
  %v2692 = vmul.f32 %v1859, %v1859
  %v2693 = vmul.f32 %v2555, %v2555
  %v2694 = vmul.f32 %v1862, %v1862
  %v2695 = vmul.f32 %v2558, %v2558
  %v2696 = vmul.f32 %v1864, %v1864
  %v2697 = vmul.f32 %v2560, %v2560
  %v2698 = vmul.f32 %v1867, %v1867
  %v2699 = vmul.f32 %v2563, %v2563
  %v2700 = vmul.f32 %v1869, %v1869
  %v2701 = vmul.f32 %v2565, %v2565
  %v2702 = vmul.f32 %v1872, %v1872
  %v2703 = vmul.f32 %v2568, %v2568
  %v2704 = vmul.f32 %v1874, %v1874
  %v2705 = vmul.f32 %v2570, %v2570
  %v2706 = vmul.f32 %v1877, %v1877
  %v2707 = vmul.f32 %v2573, %v2573
  %v2708 = vmul.f32 %v1879, %v1879
  %v2709 = vmul.f32 %v2575, %v2575
  %v2710 = vmul.f32 %v1882, %v1882
  %v2711 = vmul.f32 %v2578, %v2578
  %v2712 = vmul.f32 %v1884, %v1884
  %v2713 = vmul.f32 %v2580, %v2580
  %v2714 = vadd.f32 %v2582, %v2648
  %v2715 = vadd.f32 %v2583, %v2649
  %v2716 = vadd.f32 %v2584, %v2650
  %v2717 = vadd.f32 %v2585, %v2651
  %v2718 = vadd.f32 %v2586, %v2652
  %v2719 = vadd.f32 %v2587, %v2653
  %v2720 = vadd.f32 %v2588, %v2654
  %v2721 = vadd.f32 %v2589, %v2655
  %v2722 = vadd.f32 %v2590, %v2656
  %v2723 = vadd.f32 %v2591, %v2657
  %v2724 = vadd.f32 %v2592, %v2658
  %v2725 = vadd.f32 %v2593, %v2659
  %v2726 = vadd.f32 %v2594, %v2660
  %v2727 = vadd.f32 %v2595, %v2661
  %v2728 = vadd.f32 %v2596, %v2662
  %v2729 = vadd.f32 %v2597, %v2663
  %v2730 = vadd.f32 %v2598, %v2664
  %v2731 = vadd.f32 %v2599, %v2665
  %v2732 = vadd.f32 %v2600, %v2666
  %v2733 = vadd.f32 %v2601, %v2667
  %v2734 = vadd.f32 %v2602, %v2668
  %v2735 = vadd.f32 %v2603, %v2669
  %v2736 = vadd.f32 %v2604, %v2670
  %v2737 = vadd.f32 %v2605, %v2671
  %v2738 = vadd.f32 %v2606, %v2672
  %v2739 = vadd.f32 %v2607, %v2673
  %v2740 = vadd.f32 %v2608, %v2674
  %v2741 = vadd.f32 %v2609, %v2675
  %v2742 = vadd.f32 %v2610, %v2676
  %v2743 = vadd.f32 %v2611, %v2677
  %v2744 = vadd.f32 %v2612, %v2678
  %v2745 = vadd.f32 %v2613, %v2679
  %v2746 = vadd.f32 %v2614, %v2680
  %v2747 = vadd.f32 %v2615, %v2681
  %v2748 = vadd.f32 %v2616, %v2682
  %v2749 = vadd.f32 %v2617, %v2683
  %v2750 = vadd.f32 %v2618, %v2684
  %v2751 = vadd.f32 %v2619, %v2685
  %v2752 = vadd.f32 %v2620, %v2686
  %v2753 = vadd.f32 %v2621, %v2687
  %v2754 = vadd.f32 %v2622, %v2688
  %v2755 = vadd.f32 %v2623, %v2689
  %v2756 = vadd.f32 %v2624, %v2690
  %v2757 = vadd.f32 %v2625, %v2691
  %v2758 = vadd.f32 %v2626, %v2692
  %v2759 = vadd.f32 %v2627, %v2693
  %v2760 = vadd.f32 %v2628, %v2694
  %v2761 = vadd.f32 %v2629, %v2695
  %v2762 = vadd.f32 %v2630, %v2696
  %v2763 = vadd.f32 %v2631, %v2697
  %v2764 = vadd.f32 %v2632, %v2698
  %v2765 = vadd.f32 %v2633, %v2699
  %v2766 = vadd.f32 %v2634, %v2700
  %v2767 = vadd.f32 %v2635, %v2701
  %v2768 = vadd.f32 %v2636, %v2702
  %v2769 = vadd.f32 %v2637, %v2703
  %v2770 = vadd.f32 %v2638, %v2704
  %v2771 = vadd.f32 %v2639, %v2705
  %v2772 = vadd.f32 %v2640, %v2706
  %v2773 = vadd.f32 %v2641, %v2707
  %v2774 = vadd.f32 %v2642, %v2708
  %v2775 = vadd.f32 %v2643, %v2709
  %v2776 = vadd.f32 %v2644, %v2710
  %v2777 = vadd.f32 %v2645, %v2711
  %v2778 = vadd.f32 %v2646, %v2712
  %v2779 = vadd.f32 %v2647, %v2713
  %v2780 = vrsqrt.pop %v2714
  %v2781 = vmul.f32 %v2780, %v2714
  %v2782 = vmul.f32 %v2781, %v2780
  %v2783 = vmul.f32 0.5, %v2782
  %v2784 = vsub.f32 1.5, %v2783
  %v2785 = vmul.f32 %v2780, %v2784
  %v2786 = vmul.f32 %v2714, %v2785
  %vm2787 = vcmp.eq.f32.partialorder %v2714, inf
  %v2788 = vsel %vm2787, %v2714, %v2786
  %vm2789 = vcmp.eq.f32.partialorder %v2714, 0.0
  %v2790 = vand.u32 %v2714, 2147483648
  %v2791 = vsel %vm2789, %v2790, %v2788
  %v2792 = vrsqrt.pop %v2715
  %v2793 = vmul.f32 %v2792, %v2715
  %v2794 = vmul.f32 %v2793, %v2792
  %v2795 = vmul.f32 0.5, %v2794
  %v2796 = vsub.f32 1.5, %v2795
  %v2797 = vmul.f32 %v2792, %v2796
  %v2798 = vmul.f32 %v2715, %v2797
  %vm2799 = vcmp.eq.f32.partialorder %v2715, inf
  %v2800 = vsel %vm2799, %v2715, %v2798
  %vm2801 = vcmp.eq.f32.partialorder %v2715, 0.0
  %v2802 = vand.u32 %v2715, 2147483648
  %v2803 = vsel %vm2801, %v2802, %v2800
  %v2804 = vrsqrt.pop %v2716
  %v2805 = vmul.f32 %v2804, %v2716
  %v2806 = vmul.f32 %v2805, %v2804
  %v2807 = vmul.f32 0.5, %v2806
  %v2808 = vsub.f32 1.5, %v2807
  %v2809 = vmul.f32 %v2804, %v2808
  %v2810 = vmul.f32 %v2716, %v2809
  %vm2811 = vcmp.eq.f32.partialorder %v2716, inf
  %v2812 = vsel %vm2811, %v2716, %v2810
  %vm2813 = vcmp.eq.f32.partialorder %v2716, 0.0
  %v2814 = vand.u32 %v2716, 2147483648
  %v2815 = vsel %vm2813, %v2814, %v2812
  %v2816 = vrsqrt.pop %v2717
  %v2817 = vmul.f32 %v2816, %v2717
  %v2818 = vmul.f32 %v2817, %v2816
  %v2819 = vmul.f32 0.5, %v2818
  %v2820 = vsub.f32 1.5, %v2819
  %v2821 = vmul.f32 %v2816, %v2820
  %v2822 = vmul.f32 %v2717, %v2821
  %vm2823 = vcmp.eq.f32.partialorder %v2717, inf
  %v2824 = vsel %vm2823, %v2717, %v2822
  %vm2825 = vcmp.eq.f32.partialorder %v2717, 0.0
  %v2826 = vand.u32 %v2717, 2147483648
  %v2827 = vsel %vm2825, %v2826, %v2824
  %v2828 = vrsqrt.pop %v2718
  %v2829 = vmul.f32 %v2828, %v2718
  %v2830 = vmul.f32 %v2829, %v2828
  %v2831 = vmul.f32 0.5, %v2830
  %v2832 = vsub.f32 1.5, %v2831
  %v2833 = vmul.f32 %v2828, %v2832
  %v2834 = vmul.f32 %v2718, %v2833
  %vm2835 = vcmp.eq.f32.partialorder %v2718, inf
  %v2836 = vsel %vm2835, %v2718, %v2834
  %vm2837 = vcmp.eq.f32.partialorder %v2718, 0.0
  %v2838 = vand.u32 %v2718, 2147483648
  %v2839 = vsel %vm2837, %v2838, %v2836
  %v2840 = vrsqrt.pop %v2719
  %v2841 = vmul.f32 %v2840, %v2719
  %v2842 = vmul.f32 %v2841, %v2840
  %v2843 = vmul.f32 0.5, %v2842
  %v2844 = vsub.f32 1.5, %v2843
  %v2845 = vmul.f32 %v2840, %v2844
  %v2846 = vmul.f32 %v2719, %v2845
  %vm2847 = vcmp.eq.f32.partialorder %v2719, inf
  %v2848 = vsel %vm2847, %v2719, %v2846
  %vm2849 = vcmp.eq.f32.partialorder %v2719, 0.0
  %v2850 = vand.u32 %v2719, 2147483648
  %v2851 = vsel %vm2849, %v2850, %v2848
  %v2852 = vrsqrt.pop %v2720
  %v2853 = vmul.f32 %v2852, %v2720
  %v2854 = vmul.f32 %v2853, %v2852
  %v2855 = vmul.f32 0.5, %v2854
  %v2856 = vsub.f32 1.5, %v2855
  %v2857 = vmul.f32 %v2852, %v2856
  %v2858 = vmul.f32 %v2720, %v2857
  %vm2859 = vcmp.eq.f32.partialorder %v2720, inf
  %v2860 = vsel %vm2859, %v2720, %v2858
  %vm2861 = vcmp.eq.f32.partialorder %v2720, 0.0
  %v2862 = vand.u32 %v2720, 2147483648
  %v2863 = vsel %vm2861, %v2862, %v2860
  %v2864 = vrsqrt.pop %v2721
  %v2865 = vmul.f32 %v2864, %v2721
  %v2866 = vmul.f32 %v2865, %v2864
  %v2867 = vmul.f32 0.5, %v2866
  %v2868 = vsub.f32 1.5, %v2867
  %v2869 = vmul.f32 %v2864, %v2868
  %v2870 = vmul.f32 %v2721, %v2869
  %vm2871 = vcmp.eq.f32.partialorder %v2721, inf
  %v2872 = vsel %vm2871, %v2721, %v2870
  %vm2873 = vcmp.eq.f32.partialorder %v2721, 0.0
  %v2874 = vand.u32 %v2721, 2147483648
  %v2875 = vsel %vm2873, %v2874, %v2872
  %v2876 = vrsqrt.pop %v2722
  %v2877 = vmul.f32 %v2876, %v2722
  %v2878 = vmul.f32 %v2877, %v2876
  %v2879 = vmul.f32 0.5, %v2878
  %v2880 = vsub.f32 1.5, %v2879
  %v2881 = vmul.f32 %v2876, %v2880
  %v2882 = vmul.f32 %v2722, %v2881
  %vm2883 = vcmp.eq.f32.partialorder %v2722, inf
  %v2884 = vsel %vm2883, %v2722, %v2882
  %vm2885 = vcmp.eq.f32.partialorder %v2722, 0.0
  %v2886 = vand.u32 %v2722, 2147483648
  %v2887 = vsel %vm2885, %v2886, %v2884
  %v2888 = vrsqrt.pop %v2723
  %v2889 = vmul.f32 %v2888, %v2723
  %v2890 = vmul.f32 %v2889, %v2888
  %v2891 = vmul.f32 0.5, %v2890
  %v2892 = vsub.f32 1.5, %v2891
  %v2893 = vmul.f32 %v2888, %v2892
  %v2894 = vmul.f32 %v2723, %v2893
  %vm2895 = vcmp.eq.f32.partialorder %v2723, inf
  %v2896 = vsel %vm2895, %v2723, %v2894
  %vm2897 = vcmp.eq.f32.partialorder %v2723, 0.0
  %v2898 = vand.u32 %v2723, 2147483648
  %v2899 = vsel %vm2897, %v2898, %v2896
  %v2900 = vrsqrt.pop %v2724
  %v2901 = vmul.f32 %v2900, %v2724
  %v2902 = vmul.f32 %v2901, %v2900
  %v2903 = vmul.f32 0.5, %v2902
  %v2904 = vsub.f32 1.5, %v2903
  %v2905 = vmul.f32 %v2900, %v2904
  %v2906 = vmul.f32 %v2724, %v2905
  %vm2907 = vcmp.eq.f32.partialorder %v2724, inf
  %v2908 = vsel %vm2907, %v2724, %v2906
  %vm2909 = vcmp.eq.f32.partialorder %v2724, 0.0
  %v2910 = vand.u32 %v2724, 2147483648
  %v2911 = vsel %vm2909, %v2910, %v2908
  %v2912 = vrsqrt.pop %v2725
  %v2913 = vmul.f32 %v2912, %v2725
  %v2914 = vmul.f32 %v2913, %v2912
  %v2915 = vmul.f32 0.5, %v2914
  %v2916 = vsub.f32 1.5, %v2915
  %v2917 = vmul.f32 %v2912, %v2916
  %v2918 = vmul.f32 %v2725, %v2917
  %vm2919 = vcmp.eq.f32.partialorder %v2725, inf
  %v2920 = vsel %vm2919, %v2725, %v2918
  %vm2921 = vcmp.eq.f32.partialorder %v2725, 0.0
  %v2922 = vand.u32 %v2725, 2147483648
  %v2923 = vsel %vm2921, %v2922, %v2920
  %v2924 = vrsqrt.pop %v2726
  %v2925 = vmul.f32 %v2924, %v2726
  %v2926 = vmul.f32 %v2925, %v2924
  %v2927 = vmul.f32 0.5, %v2926
  %v2928 = vsub.f32 1.5, %v2927
  %v2929 = vmul.f32 %v2924, %v2928
  %v2930 = vmul.f32 %v2726, %v2929
  %vm2931 = vcmp.eq.f32.partialorder %v2726, inf
  %v2932 = vsel %vm2931, %v2726, %v2930
  %vm2933 = vcmp.eq.f32.partialorder %v2726, 0.0
  %v2934 = vand.u32 %v2726, 2147483648
  %v2935 = vsel %vm2933, %v2934, %v2932
  %v2936 = vrsqrt.pop %v2727
  %v2937 = vmul.f32 %v2936, %v2727
  %v2938 = vmul.f32 %v2937, %v2936
  %v2939 = vmul.f32 0.5, %v2938
  %v2940 = vsub.f32 1.5, %v2939
  %v2941 = vmul.f32 %v2936, %v2940
  %v2942 = vmul.f32 %v2727, %v2941
  %vm2943 = vcmp.eq.f32.partialorder %v2727, inf
  %v2944 = vsel %vm2943, %v2727, %v2942
  %vm2945 = vcmp.eq.f32.partialorder %v2727, 0.0
  %v2946 = vand.u32 %v2727, 2147483648
  %v2947 = vsel %vm2945, %v2946, %v2944
  %v2948 = vrsqrt.pop %v2728
  %v2949 = vmul.f32 %v2948, %v2728
  %v2950 = vmul.f32 %v2949, %v2948
  %v2951 = vmul.f32 0.5, %v2950
  %v2952 = vsub.f32 1.5, %v2951
  %v2953 = vmul.f32 %v2948, %v2952
  %v2954 = vmul.f32 %v2728, %v2953
  %vm2955 = vcmp.eq.f32.partialorder %v2728, inf
  %v2956 = vsel %vm2955, %v2728, %v2954
  %vm2957 = vcmp.eq.f32.partialorder %v2728, 0.0
  %v2958 = vand.u32 %v2728, 2147483648
  %v2959 = vsel %vm2957, %v2958, %v2956
  %v2960 = vrsqrt.pop %v2729
  %v2961 = vmul.f32 %v2960, %v2729
  %v2962 = vmul.f32 %v2961, %v2960
  %v2963 = vmul.f32 0.5, %v2962
  %v2964 = vsub.f32 1.5, %v2963
  %v2965 = vmul.f32 %v2960, %v2964
  %v2966 = vmul.f32 %v2729, %v2965
  %vm2967 = vcmp.eq.f32.partialorder %v2729, inf
  %v2968 = vsel %vm2967, %v2729, %v2966
  %vm2969 = vcmp.eq.f32.partialorder %v2729, 0.0
  %v2970 = vand.u32 %v2729, 2147483648
  %v2971 = vsel %vm2969, %v2970, %v2968
  %v2972 = vrsqrt.pop %v2730
  %v2973 = vmul.f32 %v2972, %v2730
  %v2974 = vmul.f32 %v2973, %v2972
  %v2975 = vmul.f32 0.5, %v2974
  %v2976 = vsub.f32 1.5, %v2975
  %v2977 = vmul.f32 %v2972, %v2976
  %v2978 = vmul.f32 %v2730, %v2977
  %vm2979 = vcmp.eq.f32.partialorder %v2730, inf
  %v2980 = vsel %vm2979, %v2730, %v2978
  %vm2981 = vcmp.eq.f32.partialorder %v2730, 0.0
  %v2982 = vand.u32 %v2730, 2147483648
  %v2983 = vsel %vm2981, %v2982, %v2980
  %v2984 = vrsqrt.pop %v2731
  %v2985 = vmul.f32 %v2984, %v2731
  %v2986 = vmul.f32 %v2985, %v2984
  %v2987 = vmul.f32 0.5, %v2986
  %v2988 = vsub.f32 1.5, %v2987
  %v2989 = vmul.f32 %v2984, %v2988
  %v2990 = vmul.f32 %v2731, %v2989
  %vm2991 = vcmp.eq.f32.partialorder %v2731, inf
  %v2992 = vsel %vm2991, %v2731, %v2990
  %vm2993 = vcmp.eq.f32.partialorder %v2731, 0.0
  %v2994 = vand.u32 %v2731, 2147483648
  %v2995 = vsel %vm2993, %v2994, %v2992
  %v2996 = vrsqrt.pop %v2732
  %v2997 = vmul.f32 %v2996, %v2732
  %v2998 = vmul.f32 %v2997, %v2996
  %v2999 = vmul.f32 0.5, %v2998
  %v3000 = vsub.f32 1.5, %v2999
  %v3001 = vmul.f32 %v2996, %v3000
  %v3002 = vmul.f32 %v2732, %v3001
  %vm3003 = vcmp.eq.f32.partialorder %v2732, inf
  %v3004 = vsel %vm3003, %v2732, %v3002
  %vm3005 = vcmp.eq.f32.partialorder %v2732, 0.0
  %v3006 = vand.u32 %v2732, 2147483648
  %v3007 = vsel %vm3005, %v3006, %v3004
  %v3008 = vrsqrt.pop %v2733
  %v3009 = vmul.f32 %v3008, %v2733
  %v3010 = vmul.f32 %v3009, %v3008
  %v3011 = vmul.f32 0.5, %v3010
  %v3012 = vsub.f32 1.5, %v3011
  %v3013 = vmul.f32 %v3008, %v3012
  %v3014 = vmul.f32 %v2733, %v3013
  %vm3015 = vcmp.eq.f32.partialorder %v2733, inf
  %v3016 = vsel %vm3015, %v2733, %v3014
  %vm3017 = vcmp.eq.f32.partialorder %v2733, 0.0
  %v3018 = vand.u32 %v2733, 2147483648
  %v3019 = vsel %vm3017, %v3018, %v3016
  %v3020 = vrsqrt.pop %v2734
  %v3021 = vmul.f32 %v3020, %v2734
  %v3022 = vmul.f32 %v3021, %v3020
  %v3023 = vmul.f32 0.5, %v3022
  %v3024 = vsub.f32 1.5, %v3023
  %v3025 = vmul.f32 %v3020, %v3024
  %v3026 = vmul.f32 %v2734, %v3025
  %vm3027 = vcmp.eq.f32.partialorder %v2734, inf
  %v3028 = vsel %vm3027, %v2734, %v3026
  %vm3029 = vcmp.eq.f32.partialorder %v2734, 0.0
  %v3030 = vand.u32 %v2734, 2147483648
  %v3031 = vsel %vm3029, %v3030, %v3028
  %v3032 = vrsqrt.pop %v2735
  %v3033 = vmul.f32 %v3032, %v2735
  %v3034 = vmul.f32 %v3033, %v3032
  %v3035 = vmul.f32 0.5, %v3034
  %v3036 = vsub.f32 1.5, %v3035
  %v3037 = vmul.f32 %v3032, %v3036
  %v3038 = vmul.f32 %v2735, %v3037
  %vm3039 = vcmp.eq.f32.partialorder %v2735, inf
  %v3040 = vsel %vm3039, %v2735, %v3038
  %vm3041 = vcmp.eq.f32.partialorder %v2735, 0.0
  %v3042 = vand.u32 %v2735, 2147483648
  %v3043 = vsel %vm3041, %v3042, %v3040
  %v3044 = vrsqrt.pop %v2736
  %v3045 = vmul.f32 %v3044, %v2736
  %v3046 = vmul.f32 %v3045, %v3044
  %v3047 = vmul.f32 0.5, %v3046
  %v3048 = vsub.f32 1.5, %v3047
  %v3049 = vmul.f32 %v3044, %v3048
  %v3050 = vmul.f32 %v2736, %v3049
  %vm3051 = vcmp.eq.f32.partialorder %v2736, inf
  %v3052 = vsel %vm3051, %v2736, %v3050
  %vm3053 = vcmp.eq.f32.partialorder %v2736, 0.0
  %v3054 = vand.u32 %v2736, 2147483648
  %v3055 = vsel %vm3053, %v3054, %v3052
  %v3056 = vrsqrt.pop %v2737
  %v3057 = vmul.f32 %v3056, %v2737
  %v3058 = vmul.f32 %v3057, %v3056
  %v3059 = vmul.f32 0.5, %v3058
  %v3060 = vsub.f32 1.5, %v3059
  %v3061 = vmul.f32 %v3056, %v3060
  %v3062 = vmul.f32 %v2737, %v3061
  %vm3063 = vcmp.eq.f32.partialorder %v2737, inf
  %v3064 = vsel %vm3063, %v2737, %v3062
  %vm3065 = vcmp.eq.f32.partialorder %v2737, 0.0
  %v3066 = vand.u32 %v2737, 2147483648
  %v3067 = vsel %vm3065, %v3066, %v3064
  %v3068 = vrsqrt.pop %v2738
  %v3069 = vmul.f32 %v3068, %v2738
  %v3070 = vmul.f32 %v3069, %v3068
  %v3071 = vmul.f32 0.5, %v3070
  %v3072 = vsub.f32 1.5, %v3071
  %v3073 = vmul.f32 %v3068, %v3072
  %v3074 = vmul.f32 %v2738, %v3073
  %vm3075 = vcmp.eq.f32.partialorder %v2738, inf
  %v3076 = vsel %vm3075, %v2738, %v3074
  %vm3077 = vcmp.eq.f32.partialorder %v2738, 0.0
  %v3078 = vand.u32 %v2738, 2147483648
  %v3079 = vsel %vm3077, %v3078, %v3076
  %v3080 = vrsqrt.pop %v2739
  %v3081 = vmul.f32 %v3080, %v2739
  %v3082 = vmul.f32 %v3081, %v3080
  %v3083 = vmul.f32 0.5, %v3082
  %v3084 = vsub.f32 1.5, %v3083
  %v3085 = vmul.f32 %v3080, %v3084
  %v3086 = vmul.f32 %v2739, %v3085
  %vm3087 = vcmp.eq.f32.partialorder %v2739, inf
  %v3088 = vsel %vm3087, %v2739, %v3086
  %vm3089 = vcmp.eq.f32.partialorder %v2739, 0.0
  %v3090 = vand.u32 %v2739, 2147483648
  %v3091 = vsel %vm3089, %v3090, %v3088
  %v3092 = vrsqrt.pop %v2740
  %v3093 = vmul.f32 %v3092, %v2740
  %v3094 = vmul.f32 %v3093, %v3092
  %v3095 = vmul.f32 0.5, %v3094
  %v3096 = vsub.f32 1.5, %v3095
  %v3097 = vmul.f32 %v3092, %v3096
  %v3098 = vmul.f32 %v2740, %v3097
  %vm3099 = vcmp.eq.f32.partialorder %v2740, inf
  %v3100 = vsel %vm3099, %v2740, %v3098
  %vm3101 = vcmp.eq.f32.partialorder %v2740, 0.0
  %v3102 = vand.u32 %v2740, 2147483648
  %v3103 = vsel %vm3101, %v3102, %v3100
  %v3104 = vrsqrt.pop %v2741
  %v3105 = vmul.f32 %v3104, %v2741
  %v3106 = vmul.f32 %v3105, %v3104
  %v3107 = vmul.f32 0.5, %v3106
  %v3108 = vsub.f32 1.5, %v3107
  %v3109 = vmul.f32 %v3104, %v3108
  %v3110 = vmul.f32 %v2741, %v3109
  %vm3111 = vcmp.eq.f32.partialorder %v2741, inf
  %v3112 = vsel %vm3111, %v2741, %v3110
  %vm3113 = vcmp.eq.f32.partialorder %v2741, 0.0
  %v3114 = vand.u32 %v2741, 2147483648
  %v3115 = vsel %vm3113, %v3114, %v3112
  %v3116 = vrsqrt.pop %v2742
  %v3117 = vmul.f32 %v3116, %v2742
  %v3118 = vmul.f32 %v3117, %v3116
  %v3119 = vmul.f32 0.5, %v3118
  %v3120 = vsub.f32 1.5, %v3119
  %v3121 = vmul.f32 %v3116, %v3120
  %v3122 = vmul.f32 %v2742, %v3121
  %vm3123 = vcmp.eq.f32.partialorder %v2742, inf
  %v3124 = vsel %vm3123, %v2742, %v3122
  %vm3125 = vcmp.eq.f32.partialorder %v2742, 0.0
  %v3126 = vand.u32 %v2742, 2147483648
  %v3127 = vsel %vm3125, %v3126, %v3124
  %v3128 = vrsqrt.pop %v2743
  %v3129 = vmul.f32 %v3128, %v2743
  %v3130 = vmul.f32 %v3129, %v3128
  %v3131 = vmul.f32 0.5, %v3130
  %v3132 = vsub.f32 1.5, %v3131
  %v3133 = vmul.f32 %v3128, %v3132
  %v3134 = vmul.f32 %v2743, %v3133
  %vm3135 = vcmp.eq.f32.partialorder %v2743, inf
  %v3136 = vsel %vm3135, %v2743, %v3134
  %vm3137 = vcmp.eq.f32.partialorder %v2743, 0.0
  %v3138 = vand.u32 %v2743, 2147483648
  %v3139 = vsel %vm3137, %v3138, %v3136
  %v3140 = vrsqrt.pop %v2744
  %v3141 = vmul.f32 %v3140, %v2744
  %v3142 = vmul.f32 %v3141, %v3140
  %v3143 = vmul.f32 0.5, %v3142
  %v3144 = vsub.f32 1.5, %v3143
  %v3145 = vmul.f32 %v3140, %v3144
  %v3146 = vmul.f32 %v2744, %v3145
  %vm3147 = vcmp.eq.f32.partialorder %v2744, inf
  %v3148 = vsel %vm3147, %v2744, %v3146
  %vm3149 = vcmp.eq.f32.partialorder %v2744, 0.0
  %v3150 = vand.u32 %v2744, 2147483648
  %v3151 = vsel %vm3149, %v3150, %v3148
  %v3152 = vrsqrt.pop %v2745
  %v3153 = vmul.f32 %v3152, %v2745
  %v3154 = vmul.f32 %v3153, %v3152
  %v3155 = vmul.f32 0.5, %v3154
  %v3156 = vsub.f32 1.5, %v3155
  %v3157 = vmul.f32 %v3152, %v3156
  %v3158 = vmul.f32 %v2745, %v3157
  %vm3159 = vcmp.eq.f32.partialorder %v2745, inf
  %v3160 = vsel %vm3159, %v2745, %v3158
  %vm3161 = vcmp.eq.f32.partialorder %v2745, 0.0
  %v3162 = vand.u32 %v2745, 2147483648
  %v3163 = vsel %vm3161, %v3162, %v3160
  %v3164 = vrsqrt.pop %v2746
  %v3165 = vmul.f32 %v3164, %v2746
  %v3166 = vmul.f32 %v3165, %v3164
  %v3167 = vmul.f32 0.5, %v3166
  %v3168 = vsub.f32 1.5, %v3167
  %v3169 = vmul.f32 %v3164, %v3168
  %v3170 = vmul.f32 %v2746, %v3169
  %vm3171 = vcmp.eq.f32.partialorder %v2746, inf
  %v3172 = vsel %vm3171, %v2746, %v3170
  %vm3173 = vcmp.eq.f32.partialorder %v2746, 0.0
  %v3174 = vand.u32 %v2746, 2147483648
  %v3175 = vsel %vm3173, %v3174, %v3172
  %v3176 = vrsqrt.pop %v2747
  %v3177 = vmul.f32 %v3176, %v2747
  %v3178 = vmul.f32 %v3177, %v3176
  %v3179 = vmul.f32 0.5, %v3178
  %v3180 = vsub.f32 1.5, %v3179
  %v3181 = vmul.f32 %v3176, %v3180
  %v3182 = vmul.f32 %v2747, %v3181
  %vm3183 = vcmp.eq.f32.partialorder %v2747, inf
  %v3184 = vsel %vm3183, %v2747, %v3182
  %vm3185 = vcmp.eq.f32.partialorder %v2747, 0.0
  %v3186 = vand.u32 %v2747, 2147483648
  %v3187 = vsel %vm3185, %v3186, %v3184
  %v3188 = vrsqrt.pop %v2748
  %v3189 = vmul.f32 %v3188, %v2748
  %v3190 = vmul.f32 %v3189, %v3188
  %v3191 = vmul.f32 0.5, %v3190
  %v3192 = vsub.f32 1.5, %v3191
  %v3193 = vmul.f32 %v3188, %v3192
  %v3194 = vmul.f32 %v2748, %v3193
  %vm3195 = vcmp.eq.f32.partialorder %v2748, inf
  %v3196 = vsel %vm3195, %v2748, %v3194
  %vm3197 = vcmp.eq.f32.partialorder %v2748, 0.0
  %v3198 = vand.u32 %v2748, 2147483648
  %v3199 = vsel %vm3197, %v3198, %v3196
  %v3200 = vrsqrt.pop %v2749
  %v3201 = vmul.f32 %v3200, %v2749
  %v3202 = vmul.f32 %v3201, %v3200
  %v3203 = vmul.f32 0.5, %v3202
  %v3204 = vsub.f32 1.5, %v3203
  %v3205 = vmul.f32 %v3200, %v3204
  %v3206 = vmul.f32 %v2749, %v3205
  %vm3207 = vcmp.eq.f32.partialorder %v2749, inf
  %v3208 = vsel %vm3207, %v2749, %v3206
  %vm3209 = vcmp.eq.f32.partialorder %v2749, 0.0
  %v3210 = vand.u32 %v2749, 2147483648
  %v3211 = vsel %vm3209, %v3210, %v3208
  %v3212 = vrsqrt.pop %v2750
  %v3213 = vmul.f32 %v3212, %v2750
  %v3214 = vmul.f32 %v3213, %v3212
  %v3215 = vmul.f32 0.5, %v3214
  %v3216 = vsub.f32 1.5, %v3215
  %v3217 = vmul.f32 %v3212, %v3216
  %v3218 = vmul.f32 %v2750, %v3217
  %vm3219 = vcmp.eq.f32.partialorder %v2750, inf
  %v3220 = vsel %vm3219, %v2750, %v3218
  %vm3221 = vcmp.eq.f32.partialorder %v2750, 0.0
  %v3222 = vand.u32 %v2750, 2147483648
  %v3223 = vsel %vm3221, %v3222, %v3220
  %v3224 = vrsqrt.pop %v2751
  %v3225 = vmul.f32 %v3224, %v2751
  %v3226 = vmul.f32 %v3225, %v3224
  %v3227 = vmul.f32 0.5, %v3226
  %v3228 = vsub.f32 1.5, %v3227
  %v3229 = vmul.f32 %v3224, %v3228
  %v3230 = vmul.f32 %v2751, %v3229
  %vm3231 = vcmp.eq.f32.partialorder %v2751, inf
  %v3232 = vsel %vm3231, %v2751, %v3230
  %vm3233 = vcmp.eq.f32.partialorder %v2751, 0.0
  %v3234 = vand.u32 %v2751, 2147483648
  %v3235 = vsel %vm3233, %v3234, %v3232
  %v3236 = vrsqrt.pop %v2752
  %v3237 = vmul.f32 %v3236, %v2752
  %v3238 = vmul.f32 %v3237, %v3236
  %v3239 = vmul.f32 0.5, %v3238
  %v3240 = vsub.f32 1.5, %v3239
  %v3241 = vmul.f32 %v3236, %v3240
  %v3242 = vmul.f32 %v2752, %v3241
  %vm3243 = vcmp.eq.f32.partialorder %v2752, inf
  %v3244 = vsel %vm3243, %v2752, %v3242
  %vm3245 = vcmp.eq.f32.partialorder %v2752, 0.0
  %v3246 = vand.u32 %v2752, 2147483648
  %v3247 = vsel %vm3245, %v3246, %v3244
  %v3248 = vrsqrt.pop %v2753
  %v3249 = vmul.f32 %v3248, %v2753
  %v3250 = vmul.f32 %v3249, %v3248
  %v3251 = vmul.f32 0.5, %v3250
  %v3252 = vsub.f32 1.5, %v3251
  %v3253 = vmul.f32 %v3248, %v3252
  %v3254 = vmul.f32 %v2753, %v3253
  %vm3255 = vcmp.eq.f32.partialorder %v2753, inf
  %v3256 = vsel %vm3255, %v2753, %v3254
  %vm3257 = vcmp.eq.f32.partialorder %v2753, 0.0
  %v3258 = vand.u32 %v2753, 2147483648
  %v3259 = vsel %vm3257, %v3258, %v3256
  %v3260 = vrsqrt.pop %v2754
  %v3261 = vmul.f32 %v3260, %v2754
  %v3262 = vmul.f32 %v3261, %v3260
  %v3263 = vmul.f32 0.5, %v3262
  %v3264 = vsub.f32 1.5, %v3263
  %v3265 = vmul.f32 %v3260, %v3264
  %v3266 = vmul.f32 %v2754, %v3265
  %vm3267 = vcmp.eq.f32.partialorder %v2754, inf
  %v3268 = vsel %vm3267, %v2754, %v3266
  %vm3269 = vcmp.eq.f32.partialorder %v2754, 0.0
  %v3270 = vand.u32 %v2754, 2147483648
  %v3271 = vsel %vm3269, %v3270, %v3268
  %v3272 = vrsqrt.pop %v2755
  %v3273 = vmul.f32 %v3272, %v2755
  %v3274 = vmul.f32 %v3273, %v3272
  %v3275 = vmul.f32 0.5, %v3274
  %v3276 = vsub.f32 1.5, %v3275
  %v3277 = vmul.f32 %v3272, %v3276
  %v3278 = vmul.f32 %v2755, %v3277
  %vm3279 = vcmp.eq.f32.partialorder %v2755, inf
  %v3280 = vsel %vm3279, %v2755, %v3278
  %vm3281 = vcmp.eq.f32.partialorder %v2755, 0.0
  %v3282 = vand.u32 %v2755, 2147483648
  %v3283 = vsel %vm3281, %v3282, %v3280
  %v3284 = vrsqrt.pop %v2756
  %v3285 = vmul.f32 %v3284, %v2756
  %v3286 = vmul.f32 %v3285, %v3284
  %v3287 = vmul.f32 0.5, %v3286
  %v3288 = vsub.f32 1.5, %v3287
  %v3289 = vmul.f32 %v3284, %v3288
  %v3290 = vmul.f32 %v2756, %v3289
  %vm3291 = vcmp.eq.f32.partialorder %v2756, inf
  %v3292 = vsel %vm3291, %v2756, %v3290
  %vm3293 = vcmp.eq.f32.partialorder %v2756, 0.0
  %v3294 = vand.u32 %v2756, 2147483648
  %v3295 = vsel %vm3293, %v3294, %v3292
  %v3296 = vrsqrt.pop %v2757
  %v3297 = vmul.f32 %v3296, %v2757
  %v3298 = vmul.f32 %v3297, %v3296
  %v3299 = vmul.f32 0.5, %v3298
  %v3300 = vsub.f32 1.5, %v3299
  %v3301 = vmul.f32 %v3296, %v3300
  %v3302 = vmul.f32 %v2757, %v3301
  %vm3303 = vcmp.eq.f32.partialorder %v2757, inf
  %v3304 = vsel %vm3303, %v2757, %v3302
  %vm3305 = vcmp.eq.f32.partialorder %v2757, 0.0
  %v3306 = vand.u32 %v2757, 2147483648
  %v3307 = vsel %vm3305, %v3306, %v3304
  %v3308 = vrsqrt.pop %v2758
  %v3309 = vmul.f32 %v3308, %v2758
  %v3310 = vmul.f32 %v3309, %v3308
  %v3311 = vmul.f32 0.5, %v3310
  %v3312 = vsub.f32 1.5, %v3311
  %v3313 = vmul.f32 %v3308, %v3312
  %v3314 = vmul.f32 %v2758, %v3313
  %vm3315 = vcmp.eq.f32.partialorder %v2758, inf
  %v3316 = vsel %vm3315, %v2758, %v3314
  %vm3317 = vcmp.eq.f32.partialorder %v2758, 0.0
  %v3318 = vand.u32 %v2758, 2147483648
  %v3319 = vsel %vm3317, %v3318, %v3316
  %v3320 = vrsqrt.pop %v2759
  %v3321 = vmul.f32 %v3320, %v2759
  %v3322 = vmul.f32 %v3321, %v3320
  %v3323 = vmul.f32 0.5, %v3322
  %v3324 = vsub.f32 1.5, %v3323
  %v3325 = vmul.f32 %v3320, %v3324
  %v3326 = vmul.f32 %v2759, %v3325
  %vm3327 = vcmp.eq.f32.partialorder %v2759, inf
  %v3328 = vsel %vm3327, %v2759, %v3326
  %vm3329 = vcmp.eq.f32.partialorder %v2759, 0.0
  %v3330 = vand.u32 %v2759, 2147483648
  %v3331 = vsel %vm3329, %v3330, %v3328
  %v3332 = vrsqrt.pop %v2760
  %v3333 = vmul.f32 %v3332, %v2760
  %v3334 = vmul.f32 %v3333, %v3332
  %v3335 = vmul.f32 0.5, %v3334
  %v3336 = vsub.f32 1.5, %v3335
  %v3337 = vmul.f32 %v3332, %v3336
  %v3338 = vmul.f32 %v2760, %v3337
  %vm3339 = vcmp.eq.f32.partialorder %v2760, inf
  %v3340 = vsel %vm3339, %v2760, %v3338
  %vm3341 = vcmp.eq.f32.partialorder %v2760, 0.0
  %v3342 = vand.u32 %v2760, 2147483648
  %v3343 = vsel %vm3341, %v3342, %v3340
  %v3344 = vrsqrt.pop %v2761
  %v3345 = vmul.f32 %v3344, %v2761
  %v3346 = vmul.f32 %v3345, %v3344
  %v3347 = vmul.f32 0.5, %v3346
  %v3348 = vsub.f32 1.5, %v3347
  %v3349 = vmul.f32 %v3344, %v3348
  %v3350 = vmul.f32 %v2761, %v3349
  %vm3351 = vcmp.eq.f32.partialorder %v2761, inf
  %v3352 = vsel %vm3351, %v2761, %v3350
  %vm3353 = vcmp.eq.f32.partialorder %v2761, 0.0
  %v3354 = vand.u32 %v2761, 2147483648
  %v3355 = vsel %vm3353, %v3354, %v3352
  %v3356 = vrsqrt.pop %v2762
  %v3357 = vmul.f32 %v3356, %v2762
  %v3358 = vmul.f32 %v3357, %v3356
  %v3359 = vmul.f32 0.5, %v3358
  %v3360 = vsub.f32 1.5, %v3359
  %v3361 = vmul.f32 %v3356, %v3360
  %v3362 = vmul.f32 %v2762, %v3361
  %vm3363 = vcmp.eq.f32.partialorder %v2762, inf
  %v3364 = vsel %vm3363, %v2762, %v3362
  %vm3365 = vcmp.eq.f32.partialorder %v2762, 0.0
  %v3366 = vand.u32 %v2762, 2147483648
  %v3367 = vsel %vm3365, %v3366, %v3364
  %v3368 = vrsqrt.pop %v2763
  %v3369 = vmul.f32 %v3368, %v2763
  %v3370 = vmul.f32 %v3369, %v3368
  %v3371 = vmul.f32 0.5, %v3370
  %v3372 = vsub.f32 1.5, %v3371
  %v3373 = vmul.f32 %v3368, %v3372
  %v3374 = vmul.f32 %v2763, %v3373
  %vm3375 = vcmp.eq.f32.partialorder %v2763, inf
  %v3376 = vsel %vm3375, %v2763, %v3374
  %vm3377 = vcmp.eq.f32.partialorder %v2763, 0.0
  %v3378 = vand.u32 %v2763, 2147483648
  %v3379 = vsel %vm3377, %v3378, %v3376
  %v3380 = vrsqrt.pop %v2764
  %v3381 = vmul.f32 %v3380, %v2764
  %v3382 = vmul.f32 %v3381, %v3380
  %v3383 = vmul.f32 0.5, %v3382
  %v3384 = vsub.f32 1.5, %v3383
  %v3385 = vmul.f32 %v3380, %v3384
  %v3386 = vmul.f32 %v2764, %v3385
  %vm3387 = vcmp.eq.f32.partialorder %v2764, inf
  %v3388 = vsel %vm3387, %v2764, %v3386
  %vm3389 = vcmp.eq.f32.partialorder %v2764, 0.0
  %v3390 = vand.u32 %v2764, 2147483648
  %v3391 = vsel %vm3389, %v3390, %v3388
  %v3392 = vrsqrt.pop %v2765
  %v3393 = vmul.f32 %v3392, %v2765
  %v3394 = vmul.f32 %v3393, %v3392
  %v3395 = vmul.f32 0.5, %v3394
  %v3396 = vsub.f32 1.5, %v3395
  %v3397 = vmul.f32 %v3392, %v3396
  %v3398 = vmul.f32 %v2765, %v3397
  %vm3399 = vcmp.eq.f32.partialorder %v2765, inf
  %v3400 = vsel %vm3399, %v2765, %v3398
  %vm3401 = vcmp.eq.f32.partialorder %v2765, 0.0
  %v3402 = vand.u32 %v2765, 2147483648
  %v3403 = vsel %vm3401, %v3402, %v3400
  %v3404 = vrsqrt.pop %v2766
  %v3405 = vmul.f32 %v3404, %v2766
  %v3406 = vmul.f32 %v3405, %v3404
  %v3407 = vmul.f32 0.5, %v3406
  %v3408 = vsub.f32 1.5, %v3407
  %v3409 = vmul.f32 %v3404, %v3408
  %v3410 = vmul.f32 %v2766, %v3409
  %vm3411 = vcmp.eq.f32.partialorder %v2766, inf
  %v3412 = vsel %vm3411, %v2766, %v3410
  %vm3413 = vcmp.eq.f32.partialorder %v2766, 0.0
  %v3414 = vand.u32 %v2766, 2147483648
  %v3415 = vsel %vm3413, %v3414, %v3412
  %v3416 = vrsqrt.pop %v2767
  %v3417 = vmul.f32 %v3416, %v2767
  %v3418 = vmul.f32 %v3417, %v3416
  %v3419 = vmul.f32 0.5, %v3418
  %v3420 = vsub.f32 1.5, %v3419
  %v3421 = vmul.f32 %v3416, %v3420
  %v3422 = vmul.f32 %v2767, %v3421
  %vm3423 = vcmp.eq.f32.partialorder %v2767, inf
  %v3424 = vsel %vm3423, %v2767, %v3422
  %vm3425 = vcmp.eq.f32.partialorder %v2767, 0.0
  %v3426 = vand.u32 %v2767, 2147483648
  %v3427 = vsel %vm3425, %v3426, %v3424
  %v3428 = vrsqrt.pop %v2768
  %v3429 = vmul.f32 %v3428, %v2768
  %v3430 = vmul.f32 %v3429, %v3428
  %v3431 = vmul.f32 0.5, %v3430
  %v3432 = vsub.f32 1.5, %v3431
  %v3433 = vmul.f32 %v3428, %v3432
  %v3434 = vmul.f32 %v2768, %v3433
  %vm3435 = vcmp.eq.f32.partialorder %v2768, inf
  %v3436 = vsel %vm3435, %v2768, %v3434
  %vm3437 = vcmp.eq.f32.partialorder %v2768, 0.0
  %v3438 = vand.u32 %v2768, 2147483648
  %v3439 = vsel %vm3437, %v3438, %v3436
  %v3440 = vrsqrt.pop %v2769
  %v3441 = vmul.f32 %v3440, %v2769
  %v3442 = vmul.f32 %v3441, %v3440
  %v3443 = vmul.f32 0.5, %v3442
  %v3444 = vsub.f32 1.5, %v3443
  %v3445 = vmul.f32 %v3440, %v3444
  %v3446 = vmul.f32 %v2769, %v3445
  %vm3447 = vcmp.eq.f32.partialorder %v2769, inf
  %v3448 = vsel %vm3447, %v2769, %v3446
  %vm3449 = vcmp.eq.f32.partialorder %v2769, 0.0
  %v3450 = vand.u32 %v2769, 2147483648
  %v3451 = vsel %vm3449, %v3450, %v3448
  %v3452 = vrsqrt.pop %v2770
  %v3453 = vmul.f32 %v3452, %v2770
  %v3454 = vmul.f32 %v3453, %v3452
  %v3455 = vmul.f32 0.5, %v3454
  %v3456 = vsub.f32 1.5, %v3455
  %v3457 = vmul.f32 %v3452, %v3456
  %v3458 = vmul.f32 %v2770, %v3457
  %vm3459 = vcmp.eq.f32.partialorder %v2770, inf
  %v3460 = vsel %vm3459, %v2770, %v3458
  %vm3461 = vcmp.eq.f32.partialorder %v2770, 0.0
  %v3462 = vand.u32 %v2770, 2147483648
  %v3463 = vsel %vm3461, %v3462, %v3460
  %v3464 = vrsqrt.pop %v2771
  %v3465 = vmul.f32 %v3464, %v2771
  %v3466 = vmul.f32 %v3465, %v3464
  %v3467 = vmul.f32 0.5, %v3466
  %v3468 = vsub.f32 1.5, %v3467
  %v3469 = vmul.f32 %v3464, %v3468
  %v3470 = vmul.f32 %v2771, %v3469
  %vm3471 = vcmp.eq.f32.partialorder %v2771, inf
  %v3472 = vsel %vm3471, %v2771, %v3470
  %vm3473 = vcmp.eq.f32.partialorder %v2771, 0.0
  %v3474 = vand.u32 %v2771, 2147483648
  %v3475 = vsel %vm3473, %v3474, %v3472
  %v3476 = vrsqrt.pop %v2772
  %v3477 = vmul.f32 %v3476, %v2772
  %v3478 = vmul.f32 %v3477, %v3476
  %v3479 = vmul.f32 0.5, %v3478
  %v3480 = vsub.f32 1.5, %v3479
  %v3481 = vmul.f32 %v3476, %v3480
  %v3482 = vmul.f32 %v2772, %v3481
  %vm3483 = vcmp.eq.f32.partialorder %v2772, inf
  %v3484 = vsel %vm3483, %v2772, %v3482
  %vm3485 = vcmp.eq.f32.partialorder %v2772, 0.0
  %v3486 = vand.u32 %v2772, 2147483648
  %v3487 = vsel %vm3485, %v3486, %v3484
  %v3488 = vrsqrt.pop %v2773
  %v3489 = vmul.f32 %v3488, %v2773
  %v3490 = vmul.f32 %v3489, %v3488
  %v3491 = vmul.f32 0.5, %v3490
  %v3492 = vsub.f32 1.5, %v3491
  %v3493 = vmul.f32 %v3488, %v3492
  %v3494 = vmul.f32 %v2773, %v3493
  %vm3495 = vcmp.eq.f32.partialorder %v2773, inf
  %v3496 = vsel %vm3495, %v2773, %v3494
  %vm3497 = vcmp.eq.f32.partialorder %v2773, 0.0
  %v3498 = vand.u32 %v2773, 2147483648
  %v3499 = vsel %vm3497, %v3498, %v3496
  %v3500 = vrsqrt.pop %v2774
  %v3501 = vmul.f32 %v3500, %v2774
  %v3502 = vmul.f32 %v3501, %v3500
  %v3503 = vmul.f32 0.5, %v3502
  %v3504 = vsub.f32 1.5, %v3503
  %v3505 = vmul.f32 %v3500, %v3504
  %v3506 = vmul.f32 %v2774, %v3505
  %vm3507 = vcmp.eq.f32.partialorder %v2774, inf
  %v3508 = vsel %vm3507, %v2774, %v3506
  %vm3509 = vcmp.eq.f32.partialorder %v2774, 0.0
  %v3510 = vand.u32 %v2774, 2147483648
  %v3511 = vsel %vm3509, %v3510, %v3508
  %v3512 = vrsqrt.pop %v2775
  %v3513 = vmul.f32 %v3512, %v2775
  %v3514 = vmul.f32 %v3513, %v3512
  %v3515 = vmul.f32 0.5, %v3514
  %v3516 = vsub.f32 1.5, %v3515
  %v3517 = vmul.f32 %v3512, %v3516
  %v3518 = vmul.f32 %v2775, %v3517
  %vm3519 = vcmp.eq.f32.partialorder %v2775, inf
  %v3520 = vsel %vm3519, %v2775, %v3518
  %vm3521 = vcmp.eq.f32.partialorder %v2775, 0.0
  %v3522 = vand.u32 %v2775, 2147483648
  %v3523 = vsel %vm3521, %v3522, %v3520
  %v3524 = vrsqrt.pop %v2776
  %v3525 = vmul.f32 %v3524, %v2776
  %v3526 = vmul.f32 %v3525, %v3524
  %v3527 = vmul.f32 0.5, %v3526
  %v3528 = vsub.f32 1.5, %v3527
  %v3529 = vmul.f32 %v3524, %v3528
  %v3530 = vmul.f32 %v2776, %v3529
  %vm3531 = vcmp.eq.f32.partialorder %v2776, inf
  %v3532 = vsel %vm3531, %v2776, %v3530
  %vm3533 = vcmp.eq.f32.partialorder %v2776, 0.0
  %v3534 = vand.u32 %v2776, 2147483648
  %v3535 = vsel %vm3533, %v3534, %v3532
  %v3536 = vrsqrt.pop %v2777
  %v3537 = vmul.f32 %v3536, %v2777
  %v3538 = vmul.f32 %v3537, %v3536
  %v3539 = vmul.f32 0.5, %v3538
  %v3540 = vsub.f32 1.5, %v3539
  %v3541 = vmul.f32 %v3536, %v3540
  %v3542 = vmul.f32 %v2777, %v3541
  %vm3543 = vcmp.eq.f32.partialorder %v2777, inf
  %v3544 = vsel %vm3543, %v2777, %v3542
  %vm3545 = vcmp.eq.f32.partialorder %v2777, 0.0
  %v3546 = vand.u32 %v2777, 2147483648
  %v3547 = vsel %vm3545, %v3546, %v3544
  %v3548 = vrsqrt.pop %v2778
  %v3549 = vmul.f32 %v3548, %v2778
  %v3550 = vmul.f32 %v3549, %v3548
  %v3551 = vmul.f32 0.5, %v3550
  %v3552 = vsub.f32 1.5, %v3551
  %v3553 = vmul.f32 %v3548, %v3552
  %v3554 = vmul.f32 %v2778, %v3553
  %vm3555 = vcmp.eq.f32.partialorder %v2778, inf
  %v3556 = vsel %vm3555, %v2778, %v3554
  %vm3557 = vcmp.eq.f32.partialorder %v2778, 0.0
  %v3558 = vand.u32 %v2778, 2147483648
  %v3559 = vsel %vm3557, %v3558, %v3556
  %v3560 = vrsqrt.pop %v2779
  %v3561 = vmul.f32 %v3560, %v2779
  %v3562 = vmul.f32 %v3561, %v3560
  %v3563 = vmul.f32 0.5, %v3562
  %v3564 = vsub.f32 1.5, %v3563
  %v3565 = vmul.f32 %v3560, %v3564
  %v3566 = vmul.f32 %v2779, %v3565
  %vm3567 = vcmp.eq.f32.partialorder %v2779, inf
  %v3568 = vsel %vm3567, %v2779, %v3566
  %vm3569 = vcmp.eq.f32.partialorder %v2779, 0.0
  %v3570 = vand.u32 %v2779, 2147483648
  %v3571 = vsel %vm3569, %v3570, %v3568
  %v3572 = vld [vmem:[%s2] sm:$0xff]
  %v3573 = vld [vmem:[%s2 + $0x8] sm:$0xff]
  %v3574 = vld [vmem:[%s2 + $0x10] sm:$0xff]
  %v3575 = vld [vmem:[%s2 + $0x18] sm:$0xff]
  %v3576 = vld [vmem:[%s2 + $0x20] sm:$0xff]
  %v3577 = vld [vmem:[%s2 + $0x28] sm:$0xff]
  %v3578 = vld [vmem:[%s2 + $0x30] sm:$0xff]
  %v3579 = vld [vmem:[%s2 + $0x38] sm:$0xff]
  %v3580 = vld [vmem:[%s2 + $0x40] sm:$0xff]
  %v3581 = vld [vmem:[%s2 + $0x48] sm:$0xff]
  %v3582 = vld [vmem:[%s2 + $0x50] sm:$0xff]
  %v3583 = vld [vmem:[%s2 + $0x58] sm:$0xff]
  %v3584 = vld [vmem:[%s2 + $0x60] sm:$0xff]
  %v3585 = vld [vmem:[%s2 + $0x68] sm:$0xff]
  %v3586 = vld [vmem:[%s2 + $0x70] sm:$0xff]
  %v3587 = vld [vmem:[%s2 + $0x78] sm:$0xff]
  %v3588 = vld [vmem:[%s2 + $0x80] sm:$0xff]
  %v3589 = vld [vmem:[%s2 + $0x88] sm:$0xff]
  %v3590 = vld [vmem:[%s2 + $0x90] sm:$0xff]
  %v3591 = vld [vmem:[%s2 + $0x98] sm:$0xff]
  %v3592 = vld [vmem:[%s2 + $0xa0] sm:$0xff]
  %v3593 = vld [vmem:[%s2 + $0xa8] sm:$0xff]
  %v3594 = vld [vmem:[%s2 + $0xb0] sm:$0xff]
  %v3595 = vld [vmem:[%s2 + $0xb8] sm:$0xff]
  %v3596 = vld [vmem:[%s2 + $0xc0] sm:$0xff]
  %v3597 = vld [vmem:[%s2 + $0xc8] sm:$0xff]
  %v3598 = vld [vmem:[%s2 + $0xd0] sm:$0xff]
  %v3599 = vld [vmem:[%s2 + $0xd8] sm:$0xff]
  %v3600 = vld [vmem:[%s2 + $0xe0] sm:$0xff]
  %v3601 = vld [vmem:[%s2 + $0xe8] sm:$0xff]
  %vm3602 = vcmask 64512
  %v3604 = vsel %vm3602, %v3574, 0
  %v3607 = vsel %vm3602, %v3577, 0
  %v3610 = vsel %vm3602, %v3580, 0
  %v3613 = vsel %vm3602, %v3583, 0
  %v3616 = vsel %vm3602, %v3586, 0
  %v3619 = vsel %vm3602, %v3589, 0
  %v3622 = vsel %vm3602, %v3592, 0
  %v3625 = vsel %vm3602, %v3595, 0
  %v3628 = vsel %vm3602, %v3598, 0
  %v3631 = vsel %vm3602, %v3601, 0
  %3633 = vmatpush.msra.mxu0 %v3151
  %3634 = vmatpush.msra.mxu0 %v3127
  %3635 = vmatpush.msra.mxu0 %v3103
  %3636 = vmatpush.msra.mxu0 %v3079
  %3637 = vmatpush.msra.mxu0 %v3055
  %3638 = vmatpush.msra.mxu0 %v3031
  %3639 = vmatpush.msra.mxu0 %v3007
  %3640 = vmatpush.msra.mxu0 %v2983
  %3641 = vmatpush.msra.mxu0 %v2959
  %3642 = vmatpush.msra.mxu0 %v2935
  %3643 = vmatpush.msra.mxu0 %v2911
  %3644 = vmatpush.msra.mxu0 %v2887
  %3645 = vmatpush.msra.mxu0 %v2863
  %3646 = vmatpush.msra.mxu0 %v2839
  %3647 = vmatpush.msra.mxu0 %v2815
  %3648 = vmatpush.msra.mxu0 %v2791
  %3649 = vmatmul.f32.gmra.mxu0 %v3572
  %v3650 = vpop.f32.mrf.mxu0
  %v3651 = vadd.f32 0.0, %v3650
  %3652 = vmatmul.f32.gmra.mxu0 %v3575
  %v3653 = vpop.f32.mrf.mxu0
  %v3654 = vadd.f32 0.0, %v3653
  %3655 = vmatmul.f32.gmra.mxu0 %v3578
  %v3656 = vpop.f32.mrf.mxu0
  %v3657 = vadd.f32 0.0, %v3656
  %3658 = vmatmul.f32.gmra.mxu0 %v3581
  %v3659 = vpop.f32.mrf.mxu0
  %v3660 = vadd.f32 0.0, %v3659
  %3661 = vmatmul.f32.gmra.mxu0 %v3584
  %v3662 = vpop.f32.mrf.mxu0
  %v3663 = vadd.f32 0.0, %v3662
  %3664 = vmatmul.f32.gmra.mxu0 %v3587
  %v3665 = vpop.f32.mrf.mxu0
  %v3666 = vadd.f32 0.0, %v3665
  %3667 = vmatmul.f32.gmra.mxu0 %v3590
  %v3668 = vpop.f32.mrf.mxu0
  %v3669 = vadd.f32 0.0, %v3668
  %3670 = vmatmul.f32.gmra.mxu0 %v3593
  %v3671 = vpop.f32.mrf.mxu0
  %v3672 = vadd.f32 0.0, %v3671
  %3673 = vmatmul.f32.gmra.mxu0 %v3596
  %v3674 = vpop.f32.mrf.mxu0
  %v3675 = vadd.f32 0.0, %v3674
  %3676 = vmatmul.f32.gmra.mxu0 %v3599
  %v3677 = vpop.f32.mrf.mxu0
  %v3678 = vadd.f32 0.0, %v3677
  %3679 = vdwg.mxu0
  %3680 = vmatpush.msra.mxu0 %v3535
  %3681 = vmatpush.msra.mxu0 %v3511
  %3682 = vmatpush.msra.mxu0 %v3487
  %3683 = vmatpush.msra.mxu0 %v3463
  %3684 = vmatpush.msra.mxu0 %v3439
  %3685 = vmatpush.msra.mxu0 %v3415
  %3686 = vmatpush.msra.mxu0 %v3391
  %3687 = vmatpush.msra.mxu0 %v3367
  %3688 = vmatpush.msra.mxu0 %v3343
  %3689 = vmatpush.msra.mxu0 %v3319
  %3690 = vmatpush.msra.mxu0 %v3295
  %3691 = vmatpush.msra.mxu0 %v3271
  %3692 = vmatpush.msra.mxu0 %v3247
  %3693 = vmatpush.msra.mxu0 %v3223
  %3694 = vmatpush.msra.mxu0 %v3199
  %3695 = vmatpush.msra.mxu0 %v3175
  %3696 = vmatmul.f32.gmra.mxu0 %v3573
  %v3697 = vpop.f32.mrf.mxu0
  %v3698 = vadd.f32 %v3651, %v3697
  %3699 = vmatmul.f32.gmra.mxu0 %v3576
  %v3700 = vpop.f32.mrf.mxu0
  %v3701 = vadd.f32 %v3654, %v3700
  %3702 = vmatmul.f32.gmra.mxu0 %v3579
  %v3703 = vpop.f32.mrf.mxu0
  %v3704 = vadd.f32 %v3657, %v3703
  %3705 = vmatmul.f32.gmra.mxu0 %v3582
  %v3706 = vpop.f32.mrf.mxu0
  %v3707 = vadd.f32 %v3660, %v3706
  %3708 = vmatmul.f32.gmra.mxu0 %v3585
  %v3709 = vpop.f32.mrf.mxu0
  %v3710 = vadd.f32 %v3663, %v3709
  %3711 = vmatmul.f32.gmra.mxu0 %v3588
  %v3712 = vpop.f32.mrf.mxu0
  %v3713 = vadd.f32 %v3666, %v3712
  %3714 = vmatmul.f32.gmra.mxu0 %v3591
  %v3715 = vpop.f32.mrf.mxu0
  %v3716 = vadd.f32 %v3669, %v3715
  %3717 = vmatmul.f32.gmra.mxu0 %v3594
  %v3718 = vpop.f32.mrf.mxu0
  %v3719 = vadd.f32 %v3672, %v3718
  %3720 = vmatmul.f32.gmra.mxu0 %v3597
  %v3721 = vpop.f32.mrf.mxu0
  %v3722 = vadd.f32 %v3675, %v3721
  %3723 = vmatmul.f32.gmra.mxu0 %v3600
  %v3724 = vpop.f32.mrf.mxu0
  %v3725 = vadd.f32 %v3678, %v3724
  %3726 = vdwg.mxu0
  %3727 = vmatpush.msra.mxu0 0.0
  %3728 = vmatpush.msra.mxu0 0.0
  %3729 = vmatpush.msra.mxu0 0.0
  %3730 = vmatpush.msra.mxu0 0.0
  %3731 = vmatpush.msra.mxu0 0.0
  %3732 = vmatpush.msra.mxu0 0.0
  %3733 = vmatpush.msra.mxu0 0.0
  %3734 = vmatpush.msra.mxu0 0.0
  %3735 = vmatpush.msra.mxu0 0.0
  %3736 = vmatpush.msra.mxu0 0.0
  %3737 = vmatpush.msra.mxu0 0.0
  %3738 = vmatpush.msra.mxu0 0.0
  %3739 = vmatpush.msra.mxu0 0.0
  %3740 = vmatpush.msra.mxu0 0.0
  %3741 = vmatpush.msra.mxu0 0.0
  %3742 = vmatpush.msra.mxu0 %v3559
  %3743 = vmatmul.f32.gmra.mxu0 %v3604
  %v3744 = vpop.f32.mrf.mxu0
  %v3745 = vadd.f32 %v3698, %v3744
  %3746 = vmatmul.f32.gmra.mxu0 %v3607
  %v3747 = vpop.f32.mrf.mxu0
  %v3748 = vadd.f32 %v3701, %v3747
  %3749 = vmatmul.f32.gmra.mxu0 %v3610
  %v3750 = vpop.f32.mrf.mxu0
  %v3751 = vadd.f32 %v3704, %v3750
  %3752 = vmatmul.f32.gmra.mxu0 %v3613
  %v3753 = vpop.f32.mrf.mxu0
  %v3754 = vadd.f32 %v3707, %v3753
  %3755 = vmatmul.f32.gmra.mxu0 %v3616
  %v3756 = vpop.f32.mrf.mxu0
  %v3757 = vadd.f32 %v3710, %v3756
  %3758 = vmatmul.f32.gmra.mxu0 %v3619
  %v3759 = vpop.f32.mrf.mxu0
  %v3760 = vadd.f32 %v3713, %v3759
  %3761 = vmatmul.f32.gmra.mxu0 %v3622
  %v3762 = vpop.f32.mrf.mxu0
  %v3763 = vadd.f32 %v3716, %v3762
  %3764 = vmatmul.f32.gmra.mxu0 %v3625
  %v3765 = vpop.f32.mrf.mxu0
  %v3766 = vadd.f32 %v3719, %v3765
  %3767 = vmatmul.f32.gmra.mxu0 %v3628
  %v3768 = vpop.f32.mrf.mxu0
  %v3769 = vadd.f32 %v3722, %v3768
  %3770 = vmatmul.f32.gmra.mxu0 %v3631
  %v3771 = vpop.f32.mrf.mxu0
  %v3772 = vadd.f32 %v3725, %v3771
  %3773 = vdwg.mxu0
  %3774 = vmatpush.msra.mxu0 %v3163
  %3775 = vmatpush.msra.mxu0 %v3139
  %3776 = vmatpush.msra.mxu0 %v3115
  %3777 = vmatpush.msra.mxu0 %v3091
  %3778 = vmatpush.msra.mxu0 %v3067
  %3779 = vmatpush.msra.mxu0 %v3043
  %3780 = vmatpush.msra.mxu0 %v3019
  %3781 = vmatpush.msra.mxu0 %v2995
  %3782 = vmatpush.msra.mxu0 %v2971
  %3783 = vmatpush.msra.mxu0 %v2947
  %3784 = vmatpush.msra.mxu0 %v2923
  %3785 = vmatpush.msra.mxu0 %v2899
  %3786 = vmatpush.msra.mxu0 %v2875
  %3787 = vmatpush.msra.mxu0 %v2851
  %3788 = vmatpush.msra.mxu0 %v2827
  %3789 = vmatpush.msra.mxu0 %v2803
  %3790 = vmatmul.f32.gmra.mxu0 %v3572
  %v3791 = vpop.f32.mrf.mxu0
  %v3792 = vadd.f32 0.0, %v3791
  %3793 = vmatmul.f32.gmra.mxu0 %v3575
  %v3794 = vpop.f32.mrf.mxu0
  %v3795 = vadd.f32 0.0, %v3794
  %3796 = vmatmul.f32.gmra.mxu0 %v3578
  %v3797 = vpop.f32.mrf.mxu0
  %v3798 = vadd.f32 0.0, %v3797
  %3799 = vmatmul.f32.gmra.mxu0 %v3581
  %v3800 = vpop.f32.mrf.mxu0
  %v3801 = vadd.f32 0.0, %v3800
  %3802 = vmatmul.f32.gmra.mxu0 %v3584
  %v3803 = vpop.f32.mrf.mxu0
  %v3804 = vadd.f32 0.0, %v3803
  %3805 = vmatmul.f32.gmra.mxu0 %v3587
  %v3806 = vpop.f32.mrf.mxu0
  %v3807 = vadd.f32 0.0, %v3806
  %3808 = vmatmul.f32.gmra.mxu0 %v3590
  %v3809 = vpop.f32.mrf.mxu0
  %v3810 = vadd.f32 0.0, %v3809
  %3811 = vmatmul.f32.gmra.mxu0 %v3593
  %v3812 = vpop.f32.mrf.mxu0
  %v3813 = vadd.f32 0.0, %v3812
  %3814 = vmatmul.f32.gmra.mxu0 %v3596
  %v3815 = vpop.f32.mrf.mxu0
  %v3816 = vadd.f32 0.0, %v3815
  %3817 = vmatmul.f32.gmra.mxu0 %v3599
  %v3818 = vpop.f32.mrf.mxu0
  %v3819 = vadd.f32 0.0, %v3818
  %3820 = vdwg.mxu0
  %3821 = vmatpush.msra.mxu0 %v3547
  %3822 = vmatpush.msra.mxu0 %v3523
  %3823 = vmatpush.msra.mxu0 %v3499
  %3824 = vmatpush.msra.mxu0 %v3475
  %3825 = vmatpush.msra.mxu0 %v3451
  %3826 = vmatpush.msra.mxu0 %v3427
  %3827 = vmatpush.msra.mxu0 %v3403
  %3828 = vmatpush.msra.mxu0 %v3379
  %3829 = vmatpush.msra.mxu0 %v3355
  %3830 = vmatpush.msra.mxu0 %v3331
  %3831 = vmatpush.msra.mxu0 %v3307
  %3832 = vmatpush.msra.mxu0 %v3283
  %3833 = vmatpush.msra.mxu0 %v3259
  %3834 = vmatpush.msra.mxu0 %v3235
  %3835 = vmatpush.msra.mxu0 %v3211
  %3836 = vmatpush.msra.mxu0 %v3187
  %3837 = vmatmul.f32.gmra.mxu0 %v3573
  %v3838 = vpop.f32.mrf.mxu0
  %v3839 = vadd.f32 %v3792, %v3838
  %3840 = vmatmul.f32.gmra.mxu0 %v3576
  %v3841 = vpop.f32.mrf.mxu0
  %v3842 = vadd.f32 %v3795, %v3841
  %3843 = vmatmul.f32.gmra.mxu0 %v3579
  %v3844 = vpop.f32.mrf.mxu0
  %v3845 = vadd.f32 %v3798, %v3844
  %3846 = vmatmul.f32.gmra.mxu0 %v3582
  %v3847 = vpop.f32.mrf.mxu0
  %v3848 = vadd.f32 %v3801, %v3847
  %3849 = vmatmul.f32.gmra.mxu0 %v3585
  %v3850 = vpop.f32.mrf.mxu0
  %v3851 = vadd.f32 %v3804, %v3850
  %3852 = vmatmul.f32.gmra.mxu0 %v3588
  %v3853 = vpop.f32.mrf.mxu0
  %v3854 = vadd.f32 %v3807, %v3853
  %3855 = vmatmul.f32.gmra.mxu0 %v3591
  %v3856 = vpop.f32.mrf.mxu0
  %v3857 = vadd.f32 %v3810, %v3856
  %3858 = vmatmul.f32.gmra.mxu0 %v3594
  %v3859 = vpop.f32.mrf.mxu0
  %v3860 = vadd.f32 %v3813, %v3859
  %3861 = vmatmul.f32.gmra.mxu0 %v3597
  %v3862 = vpop.f32.mrf.mxu0
  %v3863 = vadd.f32 %v3816, %v3862
  %3864 = vmatmul.f32.gmra.mxu0 %v3600
  %v3865 = vpop.f32.mrf.mxu0
  %v3866 = vadd.f32 %v3819, %v3865
  %3867 = vdwg.mxu0
  %3868 = vmatpush.msra.mxu0 0.0
  %3869 = vmatpush.msra.mxu0 0.0
  %3870 = vmatpush.msra.mxu0 0.0
  %3871 = vmatpush.msra.mxu0 0.0
  %3872 = vmatpush.msra.mxu0 0.0
  %3873 = vmatpush.msra.mxu0 0.0
  %3874 = vmatpush.msra.mxu0 0.0
  %3875 = vmatpush.msra.mxu0 0.0
  %3876 = vmatpush.msra.mxu0 0.0
  %3877 = vmatpush.msra.mxu0 0.0
  %3878 = vmatpush.msra.mxu0 0.0
  %3879 = vmatpush.msra.mxu0 0.0
  %3880 = vmatpush.msra.mxu0 0.0
  %3881 = vmatpush.msra.mxu0 0.0
  %3882 = vmatpush.msra.mxu0 0.0
  %3883 = vmatpush.msra.mxu0 %v3571
  %3884 = vmatmul.f32.gmra.mxu0 %v3604
  %v3885 = vpop.f32.mrf.mxu0
  %v3886 = vadd.f32 %v3839, %v3885
  %3887 = vmatmul.f32.gmra.mxu0 %v3607
  %v3888 = vpop.f32.mrf.mxu0
  %v3889 = vadd.f32 %v3842, %v3888
  %3890 = vmatmul.f32.gmra.mxu0 %v3610
  %v3891 = vpop.f32.mrf.mxu0
  %v3892 = vadd.f32 %v3845, %v3891
  %3893 = vmatmul.f32.gmra.mxu0 %v3613
  %v3894 = vpop.f32.mrf.mxu0
  %v3895 = vadd.f32 %v3848, %v3894
  %3896 = vmatmul.f32.gmra.mxu0 %v3616
  %v3897 = vpop.f32.mrf.mxu0
  %v3898 = vadd.f32 %v3851, %v3897
  %3899 = vmatmul.f32.gmra.mxu0 %v3619
  %v3900 = vpop.f32.mrf.mxu0
  %v3901 = vadd.f32 %v3854, %v3900
  %3902 = vmatmul.f32.gmra.mxu0 %v3622
  %v3903 = vpop.f32.mrf.mxu0
  %v3904 = vadd.f32 %v3857, %v3903
  %3905 = vmatmul.f32.gmra.mxu0 %v3625
  %v3906 = vpop.f32.mrf.mxu0
  %v3907 = vadd.f32 %v3860, %v3906
  %3908 = vmatmul.f32.gmra.mxu0 %v3628
  %v3909 = vpop.f32.mrf.mxu0
  %v3910 = vadd.f32 %v3863, %v3909
  %3911 = vmatmul.f32.gmra.mxu0 %v3631
  %v3912 = vpop.f32.mrf.mxu0
  %v3913 = vadd.f32 %v3866, %v3912
  %3914 = vdwg.mxu0
  %v3915 = vadd.f32 %v3745, %v3748
  %v3916 = vadd.f32 %v3915, %v3751
  %v3917 = vadd.f32 %v3916, %v3754
  %v3918 = vadd.f32 %v3917, %v3757
  %v3919 = vadd.f32 %v3918, %v3760
  %v3920 = vadd.f32 %v3919, %v3763
  %v3921 = vadd.f32 %v3920, %v3766
  %v3922 = vadd.f32 %v3921, %v3769
  %v3923 = vadd.f32 %v3922, %v3772
  %v3924 = vrot.slane %v3923, 4
  %v3925 = vadd.f32 %v3923, %v3924
  %v3926 = vrot.slane %v3925, 2
  %v3927 = vadd.f32 %v3925, %v3926
  %v3928 = vrot.slane %v3927, 1
  %v3929 = vadd.f32 %v3927, %v3928
  %v3930 = vadd.f32 %v3886, %v3889
  %v3931 = vadd.f32 %v3930, %v3892
  %v3932 = vadd.f32 %v3931, %v3895
  %v3933 = vadd.f32 %v3932, %v3898
  %v3934 = vadd.f32 %v3933, %v3901
  %v3935 = vadd.f32 %v3934, %v3904
  %v3936 = vadd.f32 %v3935, %v3907
  %v3937 = vadd.f32 %v3936, %v3910
  %v3938 = vadd.f32 %v3937, %v3913
  %v3939 = vrot.slane %v3938, 4
  %v3940 = vadd.f32 %v3938, %v3939
  %v3941 = vrot.slane %v3940, 2
  %v3942 = vadd.f32 %v3940, %v3941
  %v3943 = vrot.slane %v3942, 1
  %v3944 = vadd.f32 %v3942, %v3943
  %v3945 = vmul.f32 %v3929, 0.0125
  %v3946 = vmul.f32 %v3944, 0.0125
  %v3947 = vsub.f32 %v3745, %v3945
  %v3948 = vsub.f32 %v3886, %v3946
  %v3949 = vsub.f32 %v3748, %v3945
  %v3950 = vsub.f32 %v3889, %v3946
  %v3951 = vsub.f32 %v3751, %v3945
  %v3952 = vsub.f32 %v3892, %v3946
  %v3953 = vsub.f32 %v3754, %v3945
  %v3954 = vsub.f32 %v3895, %v3946
  %v3955 = vsub.f32 %v3757, %v3945
  %v3956 = vsub.f32 %v3898, %v3946
  %v3957 = vsub.f32 %v3760, %v3945
  %v3958 = vsub.f32 %v3901, %v3946
  %v3959 = vsub.f32 %v3763, %v3945
  %v3960 = vsub.f32 %v3904, %v3946
  %v3961 = vsub.f32 %v3766, %v3945
  %v3962 = vsub.f32 %v3907, %v3946
  %v3963 = vsub.f32 %v3769, %v3945
  %v3964 = vsub.f32 %v3910, %v3946
  %v3965 = vsub.f32 %v3772, %v3945
  %v3966 = vsub.f32 %v3913, %v3946
  %v3967 = vmul.f32 %v3947, %v3947
  %v3968 = vmul.f32 %v3948, %v3948
  %v3969 = vmul.f32 %v3949, %v3949
  %v3970 = vmul.f32 %v3950, %v3950
  %v3971 = vmul.f32 %v3951, %v3951
  %v3972 = vmul.f32 %v3952, %v3952
  %v3973 = vmul.f32 %v3953, %v3953
  %v3974 = vmul.f32 %v3954, %v3954
  %v3975 = vmul.f32 %v3955, %v3955
  %v3976 = vmul.f32 %v3956, %v3956
  %v3977 = vmul.f32 %v3957, %v3957
  %v3978 = vmul.f32 %v3958, %v3958
  %v3979 = vmul.f32 %v3959, %v3959
  %v3980 = vmul.f32 %v3960, %v3960
  %v3981 = vmul.f32 %v3961, %v3961
  %v3982 = vmul.f32 %v3962, %v3962
  %v3983 = vmul.f32 %v3963, %v3963
  %v3984 = vmul.f32 %v3964, %v3964
  %v3985 = vmul.f32 %v3965, %v3965
  %v3986 = vmul.f32 %v3966, %v3966
  %v3987 = vadd.f32 %v3967, %v3969
  %v3988 = vadd.f32 %v3987, %v3971
  %v3989 = vadd.f32 %v3988, %v3973
  %v3990 = vadd.f32 %v3989, %v3975
  %v3991 = vadd.f32 %v3990, %v3977
  %v3992 = vadd.f32 %v3991, %v3979
  %v3993 = vadd.f32 %v3992, %v3981
  %v3994 = vadd.f32 %v3993, %v3983
  %v3995 = vadd.f32 %v3994, %v3985
  %v3996 = vrot.slane %v3995, 4
  %v3997 = vadd.f32 %v3995, %v3996
  %v3998 = vrot.slane %v3997, 2
  %v3999 = vadd.f32 %v3997, %v3998
  %v4000 = vrot.slane %v3999, 1
  %v4001 = vadd.f32 %v3999, %v4000
  %v4002 = vadd.f32 %v3968, %v3970
  %v4003 = vadd.f32 %v4002, %v3972
  %v4004 = vadd.f32 %v4003, %v3974
  %v4005 = vadd.f32 %v4004, %v3976
  %v4006 = vadd.f32 %v4005, %v3978
  %v4007 = vadd.f32 %v4006, %v3980
  %v4008 = vadd.f32 %v4007, %v3982
  %v4009 = vadd.f32 %v4008, %v3984
  %v4010 = vadd.f32 %v4009, %v3986
  %v4011 = vrot.slane %v4010, 4
  %v4012 = vadd.f32 %v4010, %v4011
  %v4013 = vrot.slane %v4012, 2
  %v4014 = vadd.f32 %v4012, %v4013
  %v4015 = vrot.slane %v4014, 1
  %v4016 = vadd.f32 %v4014, %v4015
  %v4017 = vmul.f32 %v4001, 0.012658228
  %v4018 = vmul.f32 %v4016, 0.012658228
  %v4019 = vrsqrt.pop %v4017
  %v4020 = vmul.f32 %v4019, %v4017
  %v4021 = vmul.f32 %v4020, %v4019
  %v4022 = vmul.f32 0.5, %v4021
  %v4023 = vsub.f32 1.5, %v4022
  %v4024 = vmul.f32 %v4019, %v4023
  %v4025 = vmul.f32 %v4017, %v4024
  %vm4026 = vcmp.eq.f32.partialorder %v4017, inf
  %v4027 = vsel %vm4026, %v4017, %v4025
  %vm4028 = vcmp.eq.f32.partialorder %v4017, 0.0
  %v4029 = vand.u32 %v4017, 2147483648
  %v4030 = vsel %vm4028, %v4029, %v4027
  %v4031 = vrsqrt.pop %v4018
  %v4032 = vmul.f32 %v4031, %v4018
  %v4033 = vmul.f32 %v4032, %v4031
  %v4034 = vmul.f32 0.5, %v4033
  %v4035 = vsub.f32 1.5, %v4034
  %v4036 = vmul.f32 %v4031, %v4035
  %v4037 = vmul.f32 %v4018, %v4036
  %vm4038 = vcmp.eq.f32.partialorder %v4018, inf
  %v4039 = vsel %vm4038, %v4018, %v4037
  %vm4040 = vcmp.eq.f32.partialorder %v4018, 0.0
  %v4041 = vand.u32 %v4018, 2147483648
  %v4042 = vsel %vm4040, %v4041, %v4039
  %v4043 = vlaneseq
  %v4044 = vshrl.u32 %v4043, 7
  %vm4045 = vcmp.eq.s32.totalorder %v4044, 0
  %v4046 = vsel %vm4045, %v3945, %v4030
  %v4047 = vsel %vm4045, %v3946, %v4042
  %v4050 = vrot.slane %v4047, 6
  %vm4051 = vcmask 1041408
  %v4052 = vsel %vm4051, %v4046, %v4050
  %4054 = vst [vmem:[%s3] sm:$0xf] %v4052
  // Predicated region
  $region14: #{freq_mean_spread.1} parent=0 // pred_check
    _
  $region15: #{freq_mean_spread.1} parent=0 // pred_check_branch
    %4056 = sbr.rel (0) target = $region17
  $region16: #{freq_mean_spread.1} parent=0 // pred_region
    _
  $region17: #{freq_mean_spread.1} parent=0 // pred_fallthru
    _
  // Predicated region
  $region18: #{freq_mean_spread.1} parent=0 // pred_check
    _
  $region19: #{freq_mean_spread.1} parent=0 // pred_check_branch
    %4058 = sbr.rel (0) target = $region21
  $region20: #{freq_mean_spread.1} parent=0 // pred_region
    _
  $region21: #{freq_mean_spread.1} parent=0 // pred_fallthru
    _

</llo_original>
